<compile_context>
chip_gen: v7x
topology: tpu7x:2x2x1
jax: 0.10.0
libtpu: 0.0.40
codegen_flags: <defaults>
</compile_context>

<pallas_src>
import math
import jax
import jax.numpy as jnp
from jax.experimental import pallas as pl
from jax.experimental.pallas import tpu as pltpu  # noqa: F401  (kept for TPU-specific params if sizes grow)

# ----- small, module-consistent sizes -----
B, S, S_SRC, D = 2, 8, 8, 32    # batch, tgt seq, src (memory) seq, d_model
H = 4                           # attention heads
DK = D // H                     # per-head dim
D_FF = 64                       # feed-forward hidden
EPS = 1e-6
NEG_INF = -1e9

# Packed-weight column offsets inside the (D, 320) slab.
_QKV1 = (0, 3 * D)              # fused Wq|Wk|Wv of self-attention
_O1 = (3 * D, 4 * D)
_Q2 = (4 * D, 5 * D)
_KV2 = (5 * D, 7 * D)           # fused Wk|Wv of cross-attention
_O2 = (7 * D, 8 * D)
_W1 = (8 * D, 8 * D + D_FF)
WD_COLS = 8 * D + D_FF          # 320

# Bias / LayerNorm slab row indices (each row padded to 128 lanes).
_BQKV1, _BO1, _BQ2, _BKV2, _BO2, _BD1, _BD2 = 0, 1, 2, 3, 4, 5, 6
_A1, _C1, _A2, _C2, _A3, _C3 = 7, 8, 9, 10, 11, 12
N_BIAS_ROWS = 16                # padded to a sublane multiple


def decoder_layer_kernel(x_ref, mem_ref, self_bias_ref, src_bias_ref,
                         wd_ref, w2_ref, bias_ref, out_ref):
    x = x_ref[...]                                  # (B*S, D) f32
    scale = 1.0 / math.sqrt(DK)

    def vec(row, width):
        # static slice of the bias/LN slab -> (1, width) f32
        return bias_ref[row:row + 1, :width]

    def layer_norm(v, a_row, c_row):
        mean = jnp.mean(v, axis=-1, keepdims=True)
        # torch.std default is unbiased (ddof=1); exact divide to keep LN tight.
        var = jnp.sum((v - mean) ** 2, axis=-1, keepdims=True) * (1.0 / (D - 1))
        return vec(a_row, D) * (v - mean) / (jnp.sqrt(var) + EPS) + vec(c_row, D)

    def proj(act, w_cols, b_row, b_width):
        # bf16 MXU inputs, f32 accumulation, f32 bias add.
        w = wd_ref[:, w_cols[0]:w_cols[1]]          # bf16, static slice
        y = jax.lax.dot_general(act.astype(jnp.bfloat16), w,
                                (((1,), (0,)), ((), ())),
                                preferred_element_type=jnp.float32)
        return y + vec(b_row, b_width)

    def pack_heads(t, sx):
        # (B*sx, H*DK) -> (B*H*sx, DK); rows grouped (batch, head, seq)
        return t.reshape(B, sx, H, DK).transpose(0, 2, 1, 3).reshape(B * H * sx, DK)

    def unpack_heads(t, sx):
        # (B*H*sx, DK) -> (B*sx, D)  (inverse of pack_heads)
        return t.reshape(B, H, sx, DK).transpose(0, 2, 1, 3).reshape(B * sx, D)

    def attend(q, k, v, bias, sq, sk):
        # Block-diagonal packed attention: one score matmul + one PV matmul for
        # all batches and heads; `bias` is -1e9 off the (batch, head) diagonal
        # blocks and carries the user mask inside them.
        qp = pack_heads(q, sq).astype(jnp.bfloat16)     # (B*H*sq, DK)
        kp = pack_heads(k, sk).astype(jnp.bfloat16)     # (B*H*sk, DK)
        vp = pack_heads(v, sk).astype(jnp.bfloat16)
        s = jax.lax.dot_general(qp, kp, (((1,), (1,)), ((), ())),
                                preferred_element_type=jnp.float32) * scale
        s = s + bias
        s = s - jnp.max(s, axis=-1, keepdims=True)
        p = jnp.exp(s)
        p = p * pl.reciprocal(jnp.sum(p, axis=-1, keepdims=True), approx=True)
        o = jax.lax.dot_general(p.astype(jnp.bfloat16), vp,
                                (((1,), (0,)), ((), ())),
                                preferred_element_type=jnp.float32)
        return unpack_heads(o, sq)                       # (B*sq, D) f32

    # ---- sublayer 0: masked self-attention (fused QKV projection) ----
    y = layer_norm(x, _A1, _C1)
    qkv = proj(y, _QKV1, _BQKV1, 3 * D)                  # (B*S, 3D)
    attn = attend(qkv[:, :D], qkv[:, D:2 * D], qkv[:, 2 * D:],
                  self_bias_ref[...], S, S)
    x = x + proj(attn, _O1, _BO1, D)

    # ---- sublayer 1: cross-attention over encoder memory (fused K/V) ----
    y = layer_norm(x, _A2, _C2)
    q2 = proj(y, _Q2, _BQ2, D)                           # (B*S, D)
    kv = proj(mem_ref[...], _KV2, _BKV2, 2 * D)          # (B*S_SRC, 2D)
    attn2 = attend(q2, kv[:, :D], kv[:, D:], src_bias_ref[...], S, S_SRC)
    x = x + proj(attn2, _O2, _BO2, D)

    # ---- sublayer 2: position-wise feed-forward ----
    y = layer_norm(x, _A3, _C3)
    h1 = jnp.maximum(proj(y, _W1, _BD1, D_FF), 0.0)      # (B*S, D_FF)
    ffn = jax.lax.dot_general(h1.astype(jnp.bfloat16), w2_ref[...],
                              (((1,), (0,)), ((), ())),
                              preferred_element_type=jnp.float32) + vec(_BD2, D)
    # TODO(synk): dropout in SublayerConnection is identity here (inference).
    # TODO(synk): on v5e consider a lane-dense (B, S*D) out view to avoid
    # D=32-wide masked stores; only worth it if the relayout copy is cheaper.
    out_ref[...] = (x + ffn).astype(out_ref.dtype)


def _make_block_bias(mask):
    """mask: (B, Sq, Sk) with 1=keep, 0=masked ->
    (B*H*Sq, B*H*Sk) additive bias, -1e9 off the (batch, head) diagonal blocks."""
    bsz, sq, sk = mask.shape
    inner = jnp.where(mask == 0, jnp.float32(NEG_INF), jnp.float32(0.0))
    b1 = jnp.arange(bsz).reshape(bsz, 1, 1, 1, 1, 1)
    h1 = jnp.arange(H).reshape(1, H, 1, 1, 1, 1)
    b2 = jnp.arange(bsz).reshape(1, 1, 1, bsz, 1, 1)
    h2 = jnp.arange(H).reshape(1, 1, 1, 1, H, 1)
    same = (b1 == b2) & (h1 == h2)                       # (B,H,1,B,H,1)
    inner_b = inner[:, None, :, None, None, :]           # (B,1,Sq,1,1,Sk)
    full = jnp.where(same, inner_b, jnp.float32(NEG_INF))
    return full.reshape(bsz * H * sq, bsz * H * sk)


def decoder_layer(x, memory, src_mask, tgt_mask, params):
    """x: (B,S,D), memory: (B,S_SRC,D), masks are 1=keep / 0=masked."""
    p = params
    # Free metadata reshapes (contiguous arrays).
    x_flat = x.reshape(B * S, D)
    mem_flat = memory.reshape(B * S_SRC, D)

    # Attention biases precomputed wrapper-side (block-diagonal over batch+head).
    self_bias = _make_block_bias(tgt_mask)               # (B*H*S, B*H*S)
    src_bias = _make_block_bias(src_mask)                # (B*H*S, B*H*S_SRC)

    # Parameter slabs. In production these would be packed once at load time.
    wd = jnp.concatenate(
        [p["wq1"], p["wk1"], p["wv1"], p["wo1"],
         p["wq2"], p["wk2"], p["wv2"], p["wo2"], p["w1"]],
        axis=1).astype(jnp.bfloat16)                     # (D, 320) bf16
    w2 = p["w2"].astype(jnp.bfloat16)                    # (D_FF, D) bf16

    def pad_row(v):
        return jnp.pad(v, ((0, 0), (0, 128 - v.shape[1])))

    bias_slab = jnp.concatenate([
        pad_row(jnp.concatenate([p["bq1"], p["bk1"], p["bv1"]], axis=1)),
        pad_row(p["bo1"]),
        pad_row(p["bq2"]),
        pad_row(jnp.concatenate([p["bk2"], p["bv2"]], axis=1)),
        pad_row(p["bo2"]),
        pad_row(p["d1"]),
        pad_row(p["d2"]),
        pad_row(p["a1"]), pad_row(p["c1"]),
        pad_row(p["a2"]), pad_row(p["c2"]),
        pad_row(p["a3"]), pad_row(p["c3"]),
    ], axis=0)
    bias_slab = jnp.pad(bias_slab,
                        ((0, N_BIAS_ROWS - bias_slab.shape[0]), (0, 0)))  # (16,128) f32

    # Single invocation, no grid: total footprint is a few tens of KiB, so every
    # operand lives whole in VMEM (default BlockSpecs) and there is no per-step
    # pipeline overhead.
    out_flat = pl.pallas_call(
        decoder_layer_kernel,
        out_shape=jax.ShapeDtypeStruct((B * S, D), x.dtype),
    )(x_flat, mem_flat, self_bias, src_bias, wd, w2, bias_slab)
    return out_flat.reshape(B, S, D)


def make_params(key):
    """Deterministic synthetic parameters (PyTorch-shape-consistent)."""
    ks = jax.random.split(key, 20)

    def w(i, shape, s=0.1):
        return jax.random.normal(ks[i], shape, jnp.float32) * s

    return {
        # self-attention (4 linears), biases as (1, D)
        "wq1": w(0, (D, D)), "bq1": w(1, (1, D), 0.05),
        "wk1": w(2, (D, D)), "bk1": w(3, (1, D), 0.05),
        "wv1": w(4, (D, D)), "bv1": w(5, (1, D), 0.05),
        "wo1": w(6, (D, D)), "bo1": w(7, (1, D), 0.05),
        # source (cross) attention (4 linears)
        "wq2": w(8, (D, D)), "bq2": w(9, (1, D), 0.05),
        "wk2": w(10, (D, D)), "bk2": w(11, (1, D), 0.05),
        "wv2": w(12, (D, D)), "bv2": w(13, (1, D), 0.05),
        "wo2": w(14, (D, D)), "bo2": w(15, (1, D), 0.05),
        # LayerNorm params (a_2 = ones, b_2 = zeros) for the 3 sublayers
        "a1": jnp.ones((1, D), jnp.float32), "c1": jnp.zeros((1, D), jnp.float32),
        "a2": jnp.ones((1, D), jnp.float32), "c2": jnp.zeros((1, D), jnp.float32),
        "a3": jnp.ones((1, D), jnp.float32), "c3": jnp.zeros((1, D), jnp.float32),
        # position-wise FFN
        "w1": w(16, (D, D_FF)), "d1": w(17, (1, D_FF), 0.05),
        "w2": w(18, (D_FF, D)), "d2": w(19, (1, D), 0.05),
    }


def reference(x, memory, src_mask, tgt_mask, p):
    """Pure-JAX f32 reference matching the PyTorch DecoderLayer forward semantics."""
    def ln(v, a, b):
        mean = jnp.mean(v, axis=-1, keepdims=True)
        std = jnp.sqrt(jnp.sum((v - mean) ** 2, axis=-1, keepdims=True) / (D - 1))
        return a * (v - mean) / (std + EPS) + b

    def mha(q_in, k_in, v_in, mask, wq, bq, wk, bk, wv, bv, wo, bo):
        q = q_in @ wq + bq
        k = k_in @ wk + bk
        v = v_in @ wv + bv
        bsz, sq, _ = q.shape
        sk = k.shape[1]
        qh = q.reshape(bsz, sq, H, DK).transpose(0, 2, 1, 3)
        kh = k.reshape(bsz, sk, H, DK).transpose(0, 2, 1, 3)
        vh = v.reshape(bsz, sk, H, DK).transpose(0, 2, 1, 3)
        s = jnp.einsum("bhqd,bhkd->bhqk", qh, kh) / math.sqrt(DK)
        s = jnp.where(mask[:, None, :, :] == 0, -1e9, s)
        a = jax.nn.softmax(s, axis=-1)
        o = jnp.einsum("bhqk,bhkd->bhqd", a, vh).transpose(0, 2, 1, 3)
        return o.reshape(bsz, sq, D) @ wo + bo

    y = ln(x, p["a1"], p["c1"])
    x = x + mha(y, y, y, tgt_mask,
                p["wq1"], p["bq1"], p["wk1"], p["bk1"],
                p["wv1"], p["bv1"], p["wo1"], p["bo1"])
    y = ln(x, p["a2"], p["c2"])
    x = x + mha(y, memory, memory, src_mask,
                p["wq2"], p["bq2"], p["wk2"], p["bk2"],
                p["wv2"], p["bv2"], p["wo2"], p["bo2"])
    y = ln(x, p["a3"], p["c3"])
    ffn = jnp.maximum(y @ p["w1"] + p["d1"], 0.0) @ p["w2"] + p["d2"]
    return x + ffn


if __name__ == "__main__":
    key = jax.random.PRNGKey(0)
    kx, km, ksm, kp = jax.random.split(key, 4)
    x = jax.random.normal(kx, (B, S, D), jnp.float32)
    memory = jax.random.normal(km, (B, S_SRC, D), jnp.float32)

    # tgt_mask: causal (subsequent) mask, broadcast over batch
    tgt_mask = jnp.broadcast_to(
        jnp.tril(jnp.ones((S, S), jnp.float32))[None], (B, S, S))
    # src_mask: padding-style (1 = attend, 0 = masked), broadcast over queries
    keep = (jax.random.uniform(ksm, (B, 1, S_SRC)) > 0.2).astype(jnp.float32)
    keep = keep.at[:, :, 0].set(1.0)                     # never fully masked
    src_mask = jnp.broadcast_to(keep, (B, S, S_SRC))

    params = make_params(kp)

    out = jax.block_until_ready(decoder_layer(x, memory, src_mask, tgt_mask, params))
    ref = reference(x, memory, src_mask, tgt_mask, params)

    # Tolerance accounts for bf16 MXU inputs (f32 accumulation) and the
    # approximate EUP reciprocal in the softmax denominator; LayerNorm and all
    # other elementwise math remain exact f32.
    max_err = float(jnp.max(jnp.abs(out - ref)))
    assert jnp.allclose(out, ref, atol=3e-2, rtol=3e-2), max_err
    print("KERNEL_OK")
</pallas_src>

<mosaic_0001>
module attributes {stable_mosaic.version = 11 : i64} {
  func.func @decoder_layer_kernel(%arg0: memref<16x32xf32, #tpu.memory_space<vmem>>, %arg1: memref<16x32xf32, #tpu.memory_space<vmem>>, %arg2: memref<64x64xf32, #tpu.memory_space<vmem>>, %arg3: memref<64x64xf32, #tpu.memory_space<vmem>>, %arg4: memref<32x320xbf16, #tpu.memory_space<vmem>>, %arg5: memref<64x32xbf16, #tpu.memory_space<vmem>>, %arg6: memref<16x128xf32, #tpu.memory_space<vmem>>, %arg7: memref<16x32xf32, #tpu.memory_space<vmem>>) attributes {dimension_semantics = [], scalar_prefetch = 0 : i64, scratch_operands = 0 : i64, tpu.core_type = #tpu.core_type<tc>} {
    %c0 = arith.constant 0 : index
    %c0_0 = arith.constant 0 : index
    %0 = vector.load %arg0[%c0, %c0_0] : memref<16x32xf32, #tpu.memory_space<vmem>>, vector<16x32xf32>
    %cst = arith.constant dense<0.000000e+00> : vector<16xf32>
    %1 = vector.multi_reduction <add>, %0, %cst [1] : vector<16x32xf32> to vector<16xf32>
    %2 = vector.shape_cast %1 : vector<16xf32> to vector<16x1xf32>
    %cst_1 = arith.constant 3.200000e+01 : f32
    %3 = vector.broadcast %cst_1 : f32 to vector<16x1xf32>
    %4 = arith.divf %2, %3 : vector<16x1xf32>
    %5 = vector.broadcast %4 : vector<16x1xf32> to vector<16x32xf32>
    %6 = arith.subf %0, %5 : vector<16x32xf32>
    %7 = arith.mulf %6, %6 : vector<16x32xf32>
    %cst_2 = arith.constant dense<0.000000e+00> : vector<16xf32>
    %8 = vector.multi_reduction <add>, %7, %cst_2 [1] : vector<16x32xf32> to vector<16xf32>
    %9 = vector.shape_cast %8 : vector<16xf32> to vector<16x1xf32>
    %cst_3 = arith.constant 0.0322580636 : f32
    %10 = vector.broadcast %cst_3 : f32 to vector<16x1xf32>
    %11 = arith.mulf %9, %10 : vector<16x1xf32>
    %c7 = arith.constant 7 : index
    %c0_4 = arith.constant 0 : index
    %12 = vector.load %arg6[%c7, %c0_4] : memref<16x128xf32, #tpu.memory_space<vmem>>, vector<1x32xf32>
    %13 = vector.broadcast %4 : vector<16x1xf32> to vector<16x32xf32>
    %14 = arith.subf %0, %13 : vector<16x32xf32>
    %15 = vector.broadcast %12 : vector<1x32xf32> to vector<16x32xf32>
    %16 = arith.mulf %15, %14 : vector<16x32xf32>
    %17 = math.sqrt %11 : vector<16x1xf32>
    %cst_5 = arith.constant 9.99999997E-7 : f32
    %18 = vector.broadcast %cst_5 : f32 to vector<16x1xf32>
    %19 = arith.addf %17, %18 : vector<16x1xf32>
    %20 = vector.broadcast %19 : vector<16x1xf32> to vector<16x32xf32>
    %21 = arith.divf %16, %20 : vector<16x32xf32>
    %c8 = arith.constant 8 : index
    %c0_6 = arith.constant 0 : index
    %22 = vector.load %arg6[%c8, %c0_6] : memref<16x128xf32, #tpu.memory_space<vmem>>, vector<1x32xf32>
    %23 = vector.broadcast %22 : vector<1x32xf32> to vector<16x32xf32>
    %24 = arith.addf %21, %23 : vector<16x32xf32>
    %c0_7 = arith.constant 0 : index
    %c0_8 = arith.constant 0 : index
    %25 = vector.load %arg4[%c0_7, %c0_8] : memref<32x320xbf16, #tpu.memory_space<vmem>>, vector<32x96xbf16>
    %26 = arith.truncf %24 : vector<16x32xf32> to vector<16x32xbf16>
    %cst_9 = arith.constant dense<0.000000e+00> : vector<16x96xf32>
    %27 = tpu.matmul %26, %25, %cst_9 {dimension_numbers = #tpu.dot_dimension_numbers<[1], [0], [0], [1], [0, 0, 1, 1], [], []>} : vector<16x32xbf16>, vector<32x96xbf16>, vector<16x96xf32> -> vector<16x96xf32>
    %c0_10 = arith.constant 0 : index
    %c0_11 = arith.constant 0 : index
    %28 = vector.load %arg6[%c0_10, %c0_11] : memref<16x128xf32, #tpu.memory_space<vmem>>, vector<1x96xf32>
    %29 = vector.broadcast %28 : vector<1x96xf32> to vector<16x96xf32>
    %30 = arith.addf %27, %29 : vector<16x96xf32>
    %31 = vector.extract_strided_slice %30 {offsets = [0, 0], sizes = [16, 32], strides = [1, 1]} : vector<16x96xf32> to vector<16x32xf32>
    %32 = vector.extract_strided_slice %30 {offsets = [0, 32], sizes = [16, 32], strides = [1, 1]} : vector<16x96xf32> to vector<16x32xf32>
    %33 = vector.extract_strided_slice %30 {offsets = [0, 64], sizes = [16, 32], strides = [1, 1]} : vector<16x96xf32> to vector<16x32xf32>
    %c0_12 = arith.constant 0 : index
    %c0_13 = arith.constant 0 : index
    %34 = vector.load %arg2[%c0_12, %c0_13] : memref<64x64xf32, #tpu.memory_space<vmem>>, vector<64x64xf32>
    %35 = vector.shape_cast %31 : vector<16x32xf32> to vector<2x8x4x8xf32>
    %36 = tpu.transpose %35, [0, 2, 1, 3] : vector<2x8x4x8xf32> -> vector<2x4x8x8xf32>
    %37 = vector.shape_cast %36 : vector<2x4x8x8xf32> to vector<64x8xf32>
    %38 = arith.truncf %37 : vector<64x8xf32> to vector<64x8xbf16>
    %39 = vector.shape_cast %32 : vector<16x32xf32> to vector<2x8x4x8xf32>
    %40 = tpu.transpose %39, [0, 2, 1, 3] : vector<2x8x4x8xf32> -> vector<2x4x8x8xf32>
    %41 = vector.shape_cast %40 : vector<2x4x8x8xf32> to vector<64x8xf32>
    %42 = arith.truncf %41 : vector<64x8xf32> to vector<64x8xbf16>
    %43 = vector.shape_cast %33 : vector<16x32xf32> to vector<2x8x4x8xf32>
    %44 = tpu.transpose %43, [0, 2, 1, 3] : vector<2x8x4x8xf32> -> vector<2x4x8x8xf32>
    %45 = vector.shape_cast %44 : vector<2x4x8x8xf32> to vector<64x8xf32>
    %46 = arith.truncf %45 : vector<64x8xf32> to vector<64x8xbf16>
    %cst_14 = arith.constant dense<0.000000e+00> : vector<64x64xf32>
    %47 = tpu.matmul %38, %42, %cst_14 {dimension_numbers = #tpu.dot_dimension_numbers<[1], [1], [0], [0], [0, 0, 1, 0], [], []>} : vector<64x8xbf16>, vector<64x8xbf16>, vector<64x64xf32> -> vector<64x64xf32>
    %cst_15 = arith.constant 0.353553385 : f32
    %48 = vector.broadcast %cst_15 : f32 to vector<64x64xf32>
    %49 = arith.mulf %47, %48 : vector<64x64xf32>
    %50 = arith.addf %49, %34 : vector<64x64xf32>
    %cst_16 = arith.constant dense<0xFF800000> : vector<64xf32>
    %51 = vector.multi_reduction <maximumf>, %50, %cst_16 [1] : vector<64x64xf32> to vector<64xf32>
    %52 = vector.shape_cast %51 : vector<64xf32> to vector<64x1xf32>
    %53 = vector.broadcast %52 : vector<64x1xf32> to vector<64x64xf32>
    %54 = arith.subf %50, %53 : vector<64x64xf32>
    %55 = math.exp %54 : vector<64x64xf32>
    %cst_17 = arith.constant dense<0.000000e+00> : vector<64xf32>
    %56 = vector.multi_reduction <add>, %55, %cst_17 [1] : vector<64x64xf32> to vector<64xf32>
    %57 = vector.shape_cast %56 : vector<64xf32> to vector<64x1xf32>
    %58 = tpu.reciprocal %57 {approx = true} : vector<64x1xf32> -> vector<64x1xf32>
    %59 = vector.broadcast %58 : vector<64x1xf32> to vector<64x64xf32>
    %60 = arith.mulf %55, %59 : vector<64x64xf32>
    %61 = arith.truncf %60 : vector<64x64xf32> to vector<64x64xbf16>
    %cst_18 = arith.constant dense<0.000000e+00> : vector<64x8xf32>
    %62 = tpu.matmul %61, %46, %cst_18 {dimension_numbers = #tpu.dot_dimension_numbers<[1], [0], [0], [1], [0, 0, 1, 1], [], []>} : vector<64x64xbf16>, vector<64x8xbf16>, vector<64x8xf32> -> vector<64x8xf32>
    %63 = vector.shape_cast %62 : vector<64x8xf32> to vector<2x4x8x8xf32>
    %64 = tpu.transpose %63, [0, 2, 1, 3] : vector<2x4x8x8xf32> -> vector<2x8x4x8xf32>
    %65 = vector.shape_cast %64 : vector<2x8x4x8xf32> to vector<16x32xf32>
    %c0_19 = arith.constant 0 : index
    %c96 = arith.constant 96 : index
    %66 = vector.load %arg4[%c0_19, %c96] : memref<32x320xbf16, #tpu.memory_space<vmem>>, vector<32x32xbf16>
    %67 = arith.truncf %65 : vector<16x32xf32> to vector<16x32xbf16>
    %cst_20 = arith.constant dense<0.000000e+00> : vector<16x32xf32>
    %68 = tpu.matmul %67, %66, %cst_20 {dimension_numbers = #tpu.dot_dimension_numbers<[1], [0], [0], [1], [0, 0, 1, 1], [], []>} : vector<16x32xbf16>, vector<32x32xbf16>, vector<16x32xf32> -> vector<16x32xf32>
    %c1 = arith.constant 1 : index
    %c0_21 = arith.constant 0 : index
    %69 = vector.load %arg6[%c1, %c0_21] : memref<16x128xf32, #tpu.memory_space<vmem>>, vector<1x32xf32>
    %70 = vector.broadcast %69 : vector<1x32xf32> to vector<16x32xf32>
    %71 = arith.addf %68, %70 : vector<16x32xf32>
    %72 = arith.addf %0, %71 : vector<16x32xf32>
    %cst_22 = arith.constant dense<0.000000e+00> : vector<16xf32>
    %73 = vector.multi_reduction <add>, %72, %cst_22 [1] : vector<16x32xf32> to vector<16xf32>
    %74 = vector.shape_cast %73 : vector<16xf32> to vector<16x1xf32>
    %cst_23 = arith.constant 3.200000e+01 : f32
    %75 = vector.broadcast %cst_23 : f32 to vector<16x1xf32>
    %76 = arith.divf %74, %75 : vector<16x1xf32>
    %77 = vector.broadcast %76 : vector<16x1xf32> to vector<16x32xf32>
    %78 = arith.subf %72, %77 : vector<16x32xf32>
    %79 = arith.mulf %78, %78 : vector<16x32xf32>
    %cst_24 = arith.constant dense<0.000000e+00> : vector<16xf32>
    %80 = vector.multi_reduction <add>, %79, %cst_24 [1] : vector<16x32xf32> to vector<16xf32>
    %81 = vector.shape_cast %80 : vector<16xf32> to vector<16x1xf32>
    %cst_25 = arith.constant 0.0322580636 : f32
    %82 = vector.broadcast %cst_25 : f32 to vector<16x1xf32>
    %83 = arith.mulf %81, %82 : vector<16x1xf32>
    %c9 = arith.constant 9 : index
    %c0_26 = arith.constant 0 : index
    %84 = vector.load %arg6[%c9, %c0_26] : memref<16x128xf32, #tpu.memory_space<vmem>>, vector<1x32xf32>
    %85 = vector.broadcast %76 : vector<16x1xf32> to vector<16x32xf32>
    %86 = arith.subf %72, %85 : vector<16x32xf32>
    %87 = vector.broadcast %84 : vector<1x32xf32> to vector<16x32xf32>
    %88 = arith.mulf %87, %86 : vector<16x32xf32>
    %89 = math.sqrt %83 : vector<16x1xf32>
    %cst_27 = arith.constant 9.99999997E-7 : f32
    %90 = vector.broadcast %cst_27 : f32 to vector<16x1xf32>
    %91 = arith.addf %89, %90 : vector<16x1xf32>
    %92 = vector.broadcast %91 : vector<16x1xf32> to vector<16x32xf32>
    %93 = arith.divf %88, %92 : vector<16x32xf32>
    %c10 = arith.constant 10 : index
    %c0_28 = arith.constant 0 : index
    %94 = vector.load %arg6[%c10, %c0_28] : memref<16x128xf32, #tpu.memory_space<vmem>>, vector<1x32xf32>
    %95 = vector.broadcast %94 : vector<1x32xf32> to vector<16x32xf32>
    %96 = arith.addf %93, %95 : vector<16x32xf32>
    %c0_29 = arith.constant 0 : index
    %c128 = arith.constant 128 : index
    %97 = vector.load %arg4[%c0_29, %c128] : memref<32x320xbf16, #tpu.memory_space<vmem>>, vector<32x32xbf16>
    %98 = arith.truncf %96 : vector<16x32xf32> to vector<16x32xbf16>
    %cst_30 = arith.constant dense<0.000000e+00> : vector<16x32xf32>
    %99 = tpu.matmul %98, %97, %cst_30 {dimension_numbers = #tpu.dot_dimension_numbers<[1], [0], [0], [1], [0, 0, 1, 1], [], []>} : vector<16x32xbf16>, vector<32x32xbf16>, vector<16x32xf32> -> vector<16x32xf32>
    %c2 = arith.constant 2 : index
    %c0_31 = arith.constant 0 : index
    %100 = vector.load %arg6[%c2, %c0_31] : memref<16x128xf32, #tpu.memory_space<vmem>>, vector<1x32xf32>
    %101 = vector.broadcast %100 : vector<1x32xf32> to vector<16x32xf32>
    %102 = arith.addf %99, %101 : vector<16x32xf32>
    %c0_32 = arith.constant 0 : index
    %c0_33 = arith.constant 0 : index
    %103 = vector.load %arg1[%c0_32, %c0_33] : memref<16x32xf32, #tpu.memory_space<vmem>>, vector<16x32xf32>
    %c0_34 = arith.constant 0 : index
    %c160 = arith.constant 160 : index
    %104 = vector.load %arg4[%c0_34, %c160] : memref<32x320xbf16, #tpu.memory_space<vmem>>, vector<32x64xbf16>
    %105 = arith.truncf %103 : vector<16x32xf32> to vector<16x32xbf16>
    %cst_35 = arith.constant dense<0.000000e+00> : vector<16x64xf32>
    %106 = tpu.matmul %105, %104, %cst_35 {dimension_numbers = #tpu.dot_dimension_numbers<[1], [0], [0], [1], [0, 0, 1, 1], [], []>} : vector<16x32xbf16>, vector<32x64xbf16>, vector<16x64xf32> -> vector<16x64xf32>
    %c3 = arith.constant 3 : index
    %c0_36 = arith.constant 0 : index
    %107 = vector.load %arg6[%c3, %c0_36] : memref<16x128xf32, #tpu.memory_space<vmem>>, vector<1x64xf32>
    %108 = vector.broadcast %107 : vector<1x64xf32> to vector<16x64xf32>
    %109 = arith.addf %106, %108 : vector<16x64xf32>
    %110 = vector.extract_strided_slice %109 {offsets = [0, 0], sizes = [16, 32], strides = [1, 1]} : vector<16x64xf32> to vector<16x32xf32>
    %111 = vector.extract_strided_slice %109 {offsets = [0, 32], sizes = [16, 32], strides = [1, 1]} : vector<16x64xf32> to vector<16x32xf32>
    %c0_37 = arith.constant 0 : index
    %c0_38 = arith.constant 0 : index
    %112 = vector.load %arg3[%c0_37, %c0_38] : memref<64x64xf32, #tpu.memory_space<vmem>>, vector<64x64xf32>
    %113 = vector.shape_cast %102 : vector<16x32xf32> to vector<2x8x4x8xf32>
    %114 = tpu.transpose %113, [0, 2, 1, 3] : vector<2x8x4x8xf32> -> vector<2x4x8x8xf32>
    %115 = vector.shape_cast %114 : vector<2x4x8x8xf32> to vector<64x8xf32>
    %116 = arith.truncf %115 : vector<64x8xf32> to vector<64x8xbf16>
    %117 = vector.shape_cast %110 : vector<16x32xf32> to vector<2x8x4x8xf32>
    %118 = tpu.transpose %117, [0, 2, 1, 3] : vector<2x8x4x8xf32> -> vector<2x4x8x8xf32>
    %119 = vector.shape_cast %118 : vector<2x4x8x8xf32> to vector<64x8xf32>
    %120 = arith.truncf %119 : vector<64x8xf32> to vector<64x8xbf16>
    %121 = vector.shape_cast %111 : vector<16x32xf32> to vector<2x8x4x8xf32>
    %122 = tpu.transpose %121, [0, 2, 1, 3] : vector<2x8x4x8xf32> -> vector<2x4x8x8xf32>
    %123 = vector.shape_cast %122 : vector<2x4x8x8xf32> to vector<64x8xf32>
    %124 = arith.truncf %123 : vector<64x8xf32> to vector<64x8xbf16>
    %cst_39 = arith.constant dense<0.000000e+00> : vector<64x64xf32>
    %125 = tpu.matmul %116, %120, %cst_39 {dimension_numbers = #tpu.dot_dimension_numbers<[1], [1], [0], [0], [0, 0, 1, 0], [], []>} : vector<64x8xbf16>, vector<64x8xbf16>, vector<64x64xf32> -> vector<64x64xf32>
    %cst_40 = arith.constant 0.353553385 : f32
    %126 = vector.broadcast %cst_40 : f32 to vector<64x64xf32>
    %127 = arith.mulf %125, %126 : vector<64x64xf32>
    %128 = arith.addf %127, %112 : vector<64x64xf32>
    %cst_41 = arith.constant dense<0xFF800000> : vector<64xf32>
    %129 = vector.multi_reduction <maximumf>, %128, %cst_41 [1] : vector<64x64xf32> to vector<64xf32>
    %130 = vector.shape_cast %129 : vector<64xf32> to vector<64x1xf32>
    %131 = vector.broadcast %130 : vector<64x1xf32> to vector<64x64xf32>
    %132 = arith.subf %128, %131 : vector<64x64xf32>
    %133 = math.exp %132 : vector<64x64xf32>
    %cst_42 = arith.constant dense<0.000000e+00> : vector<64xf32>
    %134 = vector.multi_reduction <add>, %133, %cst_42 [1] : vector<64x64xf32> to vector<64xf32>
    %135 = vector.shape_cast %134 : vector<64xf32> to vector<64x1xf32>
    %136 = tpu.reciprocal %135 {approx = true} : vector<64x1xf32> -> vector<64x1xf32>
    %137 = vector.broadcast %136 : vector<64x1xf32> to vector<64x64xf32>
    %138 = arith.mulf %133, %137 : vector<64x64xf32>
    %139 = arith.truncf %138 : vector<64x64xf32> to vector<64x64xbf16>
    %cst_43 = arith.constant dense<0.000000e+00> : vector<64x8xf32>
    %140 = tpu.matmul %139, %124, %cst_43 {dimension_numbers = #tpu.dot_dimension_numbers<[1], [0], [0], [1], [0, 0, 1, 1], [], []>} : vector<64x64xbf16>, vector<64x8xbf16>, vector<64x8xf32> -> vector<64x8xf32>
    %141 = vector.shape_cast %140 : vector<64x8xf32> to vector<2x4x8x8xf32>
    %142 = tpu.transpose %141, [0, 2, 1, 3] : vector<2x4x8x8xf32> -> vector<2x8x4x8xf32>
    %143 = vector.shape_cast %142 : vector<2x8x4x8xf32> to vector<16x32xf32>
    %c0_44 = arith.constant 0 : index
    %c224 = arith.constant 224 : index
    %144 = vector.load %arg4[%c0_44, %c224] : memref<32x320xbf16, #tpu.memory_space<vmem>>, vector<32x32xbf16>
    %145 = arith.truncf %143 : vector<16x32xf32> to vector<16x32xbf16>
    %cst_45 = arith.constant dense<0.000000e+00> : vector<16x32xf32>
    %146 = tpu.matmul %145, %144, %cst_45 {dimension_numbers = #tpu.dot_dimension_numbers<[1], [0], [0], [1], [0, 0, 1, 1], [], []>} : vector<16x32xbf16>, vector<32x32xbf16>, vector<16x32xf32> -> vector<16x32xf32>
    %c4 = arith.constant 4 : index
    %c0_46 = arith.constant 0 : index
    %147 = vector.load %arg6[%c4, %c0_46] : memref<16x128xf32, #tpu.memory_space<vmem>>, vector<1x32xf32>
    %148 = vector.broadcast %147 : vector<1x32xf32> to vector<16x32xf32>
    %149 = arith.addf %146, %148 : vector<16x32xf32>
    %150 = arith.addf %72, %149 : vector<16x32xf32>
    %cst_47 = arith.constant dense<0.000000e+00> : vector<16xf32>
    %151 = vector.multi_reduction <add>, %150, %cst_47 [1] : vector<16x32xf32> to vector<16xf32>
    %152 = vector.shape_cast %151 : vector<16xf32> to vector<16x1xf32>
    %cst_48 = arith.constant 3.200000e+01 : f32
    %153 = vector.broadcast %cst_48 : f32 to vector<16x1xf32>
    %154 = arith.divf %152, %153 : vector<16x1xf32>
    %155 = vector.broadcast %154 : vector<16x1xf32> to vector<16x32xf32>
    %156 = arith.subf %150, %155 : vector<16x32xf32>
    %157 = arith.mulf %156, %156 : vector<16x32xf32>
    %cst_49 = arith.constant dense<0.000000e+00> : vector<16xf32>
    %158 = vector.multi_reduction <add>, %157, %cst_49 [1] : vector<16x32xf32> to vector<16xf32>
    %159 = vector.shape_cast %158 : vector<16xf32> to vector<16x1xf32>
    %cst_50 = arith.constant 0.0322580636 : f32
    %160 = vector.broadcast %cst_50 : f32 to vector<16x1xf32>
    %161 = arith.mulf %159, %160 : vector<16x1xf32>
    %c11 = arith.constant 11 : index
    %c0_51 = arith.constant 0 : index
    %162 = vector.load %arg6[%c11, %c0_51] : memref<16x128xf32, #tpu.memory_space<vmem>>, vector<1x32xf32>
    %163 = vector.broadcast %154 : vector<16x1xf32> to vector<16x32xf32>
    %164 = arith.subf %150, %163 : vector<16x32xf32>
    %165 = vector.broadcast %162 : vector<1x32xf32> to vector<16x32xf32>
    %166 = arith.mulf %165, %164 : vector<16x32xf32>
    %167 = math.sqrt %161 : vector<16x1xf32>
    %cst_52 = arith.constant 9.99999997E-7 : f32
    %168 = vector.broadcast %cst_52 : f32 to vector<16x1xf32>
    %169 = arith.addf %167, %168 : vector<16x1xf32>
    %170 = vector.broadcast %169 : vector<16x1xf32> to vector<16x32xf32>
    %171 = arith.divf %166, %170 : vector<16x32xf32>
    %c12 = arith.constant 12 : index
    %c0_53 = arith.constant 0 : index
    %172 = vector.load %arg6[%c12, %c0_53] : memref<16x128xf32, #tpu.memory_space<vmem>>, vector<1x32xf32>
    %173 = vector.broadcast %172 : vector<1x32xf32> to vector<16x32xf32>
    %174 = arith.addf %171, %173 : vector<16x32xf32>
    %c0_54 = arith.constant 0 : index
    %c256 = arith.constant 256 : index
    %175 = vector.load %arg4[%c0_54, %c256] : memref<32x320xbf16, #tpu.memory_space<vmem>>, vector<32x64xbf16>
    %176 = arith.truncf %174 : vector<16x32xf32> to vector<16x32xbf16>
    %cst_55 = arith.constant dense<0.000000e+00> : vector<16x64xf32>
    %177 = tpu.matmul %176, %175, %cst_55 {dimension_numbers = #tpu.dot_dimension_numbers<[1], [0], [0], [1], [0, 0, 1, 1], [], []>} : vector<16x32xbf16>, vector<32x64xbf16>, vector<16x64xf32> -> vector<16x64xf32>
    %c5 = arith.constant 5 : index
    %c0_56 = arith.constant 0 : index
    %178 = vector.load %arg6[%c5, %c0_56] : memref<16x128xf32, #tpu.memory_space<vmem>>, vector<1x64xf32>
    %179 = vector.broadcast %178 : vector<1x64xf32> to vector<16x64xf32>
    %180 = arith.addf %177, %179 : vector<16x64xf32>
    %cst_57 = arith.constant 0.000000e+00 : f32
    %181 = vector.broadcast %cst_57 : f32 to vector<16x64xf32>
    %182 = arith.maximumf %180, %181 : vector<16x64xf32>
    %183 = arith.truncf %182 : vector<16x64xf32> to vector<16x64xbf16>
    %c0_58 = arith.constant 0 : index
    %c0_59 = arith.constant 0 : index
    %184 = vector.load %arg5[%c0_58, %c0_59] : memref<64x32xbf16, #tpu.memory_space<vmem>>, vector<64x32xbf16>
    %cst_60 = arith.constant dense<0.000000e+00> : vector<16x32xf32>
    %185 = tpu.matmul %183, %184, %cst_60 {dimension_numbers = #tpu.dot_dimension_numbers<[1], [0], [0], [1], [0, 0, 1, 1], [], []>} : vector<16x64xbf16>, vector<64x32xbf16>, vector<16x32xf32> -> vector<16x32xf32>
    %c6 = arith.constant 6 : index
    %c0_61 = arith.constant 0 : index
    %186 = vector.load %arg6[%c6, %c0_61] : memref<16x128xf32, #tpu.memory_space<vmem>>, vector<1x32xf32>
    %187 = vector.broadcast %186 : vector<1x32xf32> to vector<16x32xf32>
    %188 = arith.addf %185, %187 : vector<16x32xf32>
    %189 = arith.addf %150, %188 : vector<16x32xf32>
    %c0_62 = arith.constant 0 : index
    %c0_63 = arith.constant 0 : index
    %190 = vector.load %arg7[%c0_62, %c0_63] : memref<16x32xf32, #tpu.memory_space<vmem>>, vector<16x32xf32>
    tpu.vector_store %arg7[%c0_62, %c0_63], %189 {strides = array<i32>} : memref<16x32xf32, #tpu.memory_space<vmem>>, vector<16x32xf32>,
    return
  }
}

</mosaic_0001>

<llo_original>
// kernel: tpu_custom_call.1
$region0: #{tpu_custom_call.1}
  #allocation0 [shape = 'u32[]', space=smem, size = 0x4, offset = 0x4, fixed_abs, tag = 'smem constant byte address 0x4 - core index']
  #allocation1 [shape = 'u32[144,128]{1,0:T(1,128)}', space=vmem, size = 0x12000, scoped, tag = 'internal scratch']
  %s0 = inlined_call_operand.hbm [shape: f32[16,32], index: 0, kind: input, shape index: {}]
  %s1 = inlined_call_operand.hbm [shape: f32[16,32], index: 1, kind: input, shape index: {}]
  %s2 = inlined_call_operand.hbm [shape: f32[64,64], index: 2, kind: input, shape index: {}]
  %s3 = inlined_call_operand.hbm [shape: f32[64,64], index: 3, kind: input, shape index: {}]
  %s4 = inlined_call_operand.vmem [shape: bf16[32,320], index: 4, kind: input, shape index: {}]
  %s5 = inlined_call_operand.vmem [shape: bf16[64,32], index: 5, kind: input, shape index: {}]
  %s6 = inlined_call_operand.hbm [shape: f32[16,128], index: 6, kind: input, shape index: {}]
  %s7 = inlined_call_operand.hbm [shape: f32[16,32], index: 7, kind: output, shape index: {}]
  %s8 = sld [smem:[#allocation0]]
  $region58: #{tpu_custom_call.1} parent=0
    _
  %s10 = ssub.s32 1, %s8
  %s11 = scalar_select 0, %s10, %s8
  $region1: #{tpu_custom_call.1} parent=0
    #allocation2 [shape = 'u8[8192]{0}', space=vmem, size = 0x2000, scoped, tag = 'input window, operand 0, single buffered']
    #allocation3 [shape = 's32[1]{0}', space=sflag, size = 0x4, scoped, tag = 'scoped memory for tpu_custom_call.1']
    #allocation4 [shape = 's32[1]{0}', space=sflag, size = 0x4, scoped, tag = 'scoped memory for tpu_custom_call.1']
    #allocation5 [shape = 'u8[8192]{0}', space=vmem, size = 0x2000, scoped, tag = 'input window, operand 1, single buffered']
    #allocation6 [shape = 's32[1]{0}', space=sflag, size = 0x4, scoped, tag = 'scoped memory for tpu_custom_call.1']
    #allocation7 [shape = 'u8[32768]{0}', space=vmem, size = 0x8000, scoped, tag = 'input window, operand 2, single buffered']
    #allocation8 [shape = 'u8[32768]{0}', space=vmem, size = 0x8000, scoped, tag = 'input window, operand 3, single buffered']
    #allocation9 [shape = 's32[1]{0}', space=sflag, size = 0x4, scoped, tag = 'scoped memory for tpu_custom_call.1']
    #allocation10 [shape = 'u8[8192]{0}', space=vmem, size = 0x2000, scoped, tag = 'input window, operand 6, single buffered']
    #allocation11 [shape = 'u8[8192]{0}', space=vmem, size = 0x2000, scoped, tag = 'output window, operand 0, single buffered']
    %12 = vsyncpa [#allocation3], 0
    %13 = vsyncpa [#allocation6], 0
    %14 = vsyncpa [#allocation9], 0
    %15 = vsyncpa [#allocation4], 0
    // Predicated region
    $region2: #{tpu_custom_call.1} parent=1 // pred_check
      _
    $region3: #{tpu_custom_call.1} parent=1 // pred_check_branch
      %17 = sbr.rel (0) target = $region5
    $region4: #{tpu_custom_call.1} parent=1 // pred_region
      %s19 = ssub.s32 256, 256
      %20 = vsyncadd [#allocation3], %s19
      %s21 = sshll.u32 [#allocation2], 4
      %s22 = int_to_ptr.vmem [resolvable:$true] %s21
      %27 = dma.hbm_to_vmem [thread:$0]  %s0, 256, %s22, [#allocation3], 128, 128, 8
    $region5: #{tpu_custom_call.1} parent=1 // pred_fallthru
      _
    // Predicated region
    $region6: #{tpu_custom_call.1} parent=1 // pred_check
      _
    $region7: #{tpu_custom_call.1} parent=1 // pred_check_branch
      %29 = sbr.rel (0) target = $region9
    $region8: #{tpu_custom_call.1} parent=1 // pred_region
      %s31 = ssub.s32 256, 256
      %32 = vsyncadd [#allocation6], %s31
      %s33 = sshll.u32 [#allocation5], 4
      %s34 = int_to_ptr.vmem [resolvable:$true] %s33
      %39 = dma.hbm_to_vmem [thread:$0]  %s1, 256, %s34, [#allocation6], 128, 128, 8
    $region9: #{tpu_custom_call.1} parent=1 // pred_fallthru
      _
    // Predicated region
    $region10: #{tpu_custom_call.1} parent=1 // pred_check
      _
    $region11: #{tpu_custom_call.1} parent=1 // pred_check_branch
      %41 = sbr.rel (0) target = $region13
    $region12: #{tpu_custom_call.1} parent=1 // pred_region
      %s43 = ssub.s32 1024, 1024
      %44 = vsyncadd [#allocation6], %s43
      %s45 = sshll.u32 [#allocation7], 4
      %s46 = int_to_ptr.vmem [resolvable:$true] %s45
      %51 = dma.hbm_to_vmem [thread:$0]  %s2, 1024, %s46, [#allocation6], 128, 128, 8
    $region13: #{tpu_custom_call.1} parent=1 // pred_fallthru
      _
    // Predicated region
    $region14: #{tpu_custom_call.1} parent=1 // pred_check
      _
    $region15: #{tpu_custom_call.1} parent=1 // pred_check_branch
      %53 = sbr.rel (0) target = $region17
    $region16: #{tpu_custom_call.1} parent=1 // pred_region
      %s55 = ssub.s32 1024, 1024
      %56 = vsyncadd [#allocation9], %s55
      %s57 = sshll.u32 [#allocation8], 4
      %s58 = int_to_ptr.vmem [resolvable:$true] %s57
      %63 = dma.hbm_to_vmem [thread:$0]  %s3, 1024, %s58, [#allocation9], 128, 128, 8
    $region17: #{tpu_custom_call.1} parent=1 // pred_fallthru
      _
    // Predicated region
    $region18: #{tpu_custom_call.1} parent=1 // pred_check
      _
    $region19: #{tpu_custom_call.1} parent=1 // pred_check_branch
      %65 = sbr.rel (0) target = $region21
    $region20: #{tpu_custom_call.1} parent=1 // pred_region
      _
    $region21: #{tpu_custom_call.1} parent=1 // pred_fallthru
      _
    // Predicated region
    $region22: #{tpu_custom_call.1} parent=1 // pred_check
      _
    $region23: #{tpu_custom_call.1} parent=1 // pred_check_branch
      %67 = sbr.rel (0) target = $region25
    $region24: #{tpu_custom_call.1} parent=1 // pred_region
      _
    $region25: #{tpu_custom_call.1} parent=1 // pred_fallthru
      _
    // Predicated region
    $region26: #{tpu_custom_call.1} parent=1 // pred_check
      _
    $region27: #{tpu_custom_call.1} parent=1 // pred_check_branch
      %69 = sbr.rel (0) target = $region29
    $region28: #{tpu_custom_call.1} parent=1 // pred_region
      %s71 = ssub.s32 256, 256
      %72 = vsyncadd [#allocation9], %s71
      %s73 = sshll.u32 [#allocation10], 4
      %s74 = int_to_ptr.vmem [resolvable:$true] %s73
      %79 = dma.hbm_to_vmem [thread:$0]  %s6, 256, %s74, [#allocation9], 128, 128, 8
    $region29: #{tpu_custom_call.1} parent=1 // pred_fallthru
      _
    // Predicated region
    $region30: #{tpu_custom_call.1} parent=1 // pred_check
      _
    $region31: #{tpu_custom_call.1} parent=1 // pred_check_branch
      %81 = sbr.rel (0) target = $region33
    $region32: #{tpu_custom_call.1} parent=1 // pred_region
      %82 = dma.done [#allocation3], 256
    $region33: #{tpu_custom_call.1} parent=1 // pred_fallthru
      _
    // Predicated region
    $region34: #{tpu_custom_call.1} parent=1 // pred_check
      _
    $region35: #{tpu_custom_call.1} parent=1 // pred_check_branch
      %84 = sbr.rel (0) target = $region37
    $region36: #{tpu_custom_call.1} parent=1 // pred_region
      %85 = dma.done [#allocation6], 256
    $region37: #{tpu_custom_call.1} parent=1 // pred_fallthru
      _
    // Predicated region
    $region38: #{tpu_custom_call.1} parent=1 // pred_check
      _
    $region39: #{tpu_custom_call.1} parent=1 // pred_check_branch
      %87 = sbr.rel (0) target = $region41
    $region40: #{tpu_custom_call.1} parent=1 // pred_region
      %88 = dma.done [#allocation6], 1024
    $region41: #{tpu_custom_call.1} parent=1 // pred_fallthru
      _
    // Predicated region
    $region42: #{tpu_custom_call.1} parent=1 // pred_check
      _
    $region43: #{tpu_custom_call.1} parent=1 // pred_check_branch
      %90 = sbr.rel (0) target = $region45
    $region44: #{tpu_custom_call.1} parent=1 // pred_region
      %91 = dma.done [#allocation9], 1024
    $region45: #{tpu_custom_call.1} parent=1 // pred_fallthru
      _
    // Predicated region
    $region46: #{tpu_custom_call.1} parent=1 // pred_check
      _
    $region47: #{tpu_custom_call.1} parent=1 // pred_check_branch
      %93 = sbr.rel (0) target = $region49
    $region48: #{tpu_custom_call.1} parent=1 // pred_region
      %94 = dma.done [#allocation9], 256
    $region49: #{tpu_custom_call.1} parent=1 // pred_fallthru
      _
    %v96 = vld [vmem:[#allocation2] sm:$0xff]
    %v97 = vld [vmem:[#allocation2 + $0x8] sm:$0xff]
    %vm98 = vcmask 261120
    %v99 = vsel %vm98, %v96, 0.0
    %100 = vadd.xlane.f32.xlu0 %v99
    %v101 = vpop.xlane.xlu0 %100
    %v102 = vsel %vm98, %v97, 0.0
    %103 = vadd.xlane.f32.xlu0 %v102
    %v104 = vpop.xlane.xlu0 %103
    %v105 = vrcp.pop 32.0
    %v106 = vmul.f32 %v101, %v105
    %v107 = vmul.f32 %v104, %v105
    %v108 = vsub.f32 %v96, %v106
    %v109 = vsub.f32 %v97, %v107
    %v110 = vmul.f32 %v108, %v108
    %v111 = vmul.f32 %v109, %v109
    %v112 = vsel %vm98, %v110, 0.0
    %113 = vadd.xlane.f32.xlu0 %v112
    %v114 = vpop.xlane.xlu0 %113
    %v115 = vsel %vm98, %v111, 0.0
    %116 = vadd.xlane.f32.xlu0 %v115
    %v117 = vpop.xlane.xlu0 %116
    %v118 = vmul.f32 %v114, 0.032258064
    %v119 = vmul.f32 %v117, 0.032258064
    %v120 = vld [vmem:[#allocation10 + $0x7] sm:$0x1]
    %v121 = vlaneseq
    %v122 = vshrl.u32 %v121, 7
    %v123 = vsub.s32 0, %v122
    %v124 = vrot.slane %v120, %v123
    %v125 = vmul.f32 %v124, %v108
    %v126 = vmul.f32 %v124, %v109
    %v127 = vrsqrt.pop %v118
    %v128 = vmul.f32 %v118, %v127
    %vm129 = vcmp.eq.f32.partialorder %v118, inf
    %v130 = vsel %vm129, %v118, %v128
    %vm131 = vcmp.eq.f32.partialorder %v118, 0.0
    %v132 = vand.u32 %v118, 2147483648
    %v133 = vsel %vm131, %v132, %v130
    %v134 = vrsqrt.pop %v119
    %v135 = vmul.f32 %v119, %v134
    %vm136 = vcmp.eq.f32.partialorder %v119, inf
    %v137 = vsel %vm136, %v119, %v135
    %vm138 = vcmp.eq.f32.partialorder %v119, 0.0
    %v139 = vand.u32 %v119, 2147483648
    %v140 = vsel %vm138, %v139, %v137
    %v141 = vadd.f32 %v133, 1e-06
    %v142 = vadd.f32 %v140, 1e-06
    %v143 = vrcp.pop %v141
    %v144 = vmul.f32 %v125, %v143
    %v145 = vrcp.pop %v142
    %v146 = vmul.f32 %v126, %v145
    %v147 = vld [vmem:[#allocation10 + $0x8] sm:$0x1]
    %v148 = vlaneseq
    %v149 = vshrl.u32 %v148, 7
    %v150 = vsub.s32 0, %v149
    %v151 = vrot.slane %v147, %v150
    %v152 = vadd.f32 %v144, %v151
    %v153 = vadd.f32 %v146, %v151
    %v154 = vld [vmem:[%s4] sm:$0xf]
    %v155 = vld [vmem:[%s4 + $0xc] sm:$0xf]
    %v156 = vld [vmem:[%s4 + $0x18] sm:$0xf]
    %v157 = vld [vmem:[%s4 + $0x24] sm:$0xf]
    %v158 = vpack.c.bf16 %v153, %v152
    %v159 = vld [vmem:[#allocation10] sm:$0x1]
    %v160 = vlaneseq
    %v161 = vshrl.u32 %v160, 7
    %v162 = vsub.s32 0, %v161
    %v163 = vrot.slane %v159, %v162
    %v168 = vunpack.c.l.b16 %v154
    %v169 = vunpack.c.l.b16 %v155
    %v170 = vunpack.c.l.b16 %v156
    %v171 = vunpack.c.l.b16 %v157
    %v172 = vpack.c.b16 %v169, %v168
    %v173 = vpack.c.b16 %v171, %v170
    %v177 = vsel %vm98, %v158, 0
    %179 = vmatprep.subr.bf16.mxu0 0
    %180 = vmatpush1.bf16.msra.mxu0 %v172
    %181 = vmatprep.subr.bf16.mxu0 0
    %182 = vmatpush1.bf16.msra.mxu0 %v173
    %183 = vmatprep.subr.bf16.mxu0 0
    %184 = vmatpush1.bf16.msra.mxu0 0
    %185 = vmatprep.subr.bf16.mxu0 0
    %186 = vmatpush1.bf16.msra.mxu0 0
    %187 = vmatprep.subr.bf16.mxu0 0
    %188 = vmatpush1.bf16.msra.mxu0 0
    %189 = vmatprep.subr.bf16.mxu0 0
    %190 = vmatpush1.bf16.msra.mxu0 0
    %191 = vmatprep.subr.bf16.mxu0 0
    %192 = vmatpush1.bf16.msra.mxu0 0
    %193 = vmatprep.subr.bf16.mxu0 0
    %194 = vmatpush1.bf16.msra.mxu0 0
    %195 = vmatprep.subr.bf16.mxu0 0
    %196 = vmatpush1.bf16.msra.mxu0 0
    %197 = vmatprep.subr.bf16.mxu0 0
    %198 = vmatpush1.bf16.msra.mxu0 0
    %199 = vmatprep.subr.bf16.mxu0 0
    %200 = vmatpush1.bf16.msra.mxu0 0
    %201 = vmatprep.subr.bf16.mxu0 0
    %202 = vmatpush1.bf16.msra.mxu0 0
    %203 = vmatprep.subr.bf16.mxu0 0
    %204 = vmatpush1.bf16.msra.mxu0 0
    %205 = vmatprep.subr.bf16.mxu0 0
    %206 = vmatpush1.bf16.msra.mxu0 0
    %207 = vmatprep.subr.bf16.mxu0 0
    %208 = vmatpush1.bf16.msra.mxu0 0
    %209 = vmatprep.subr.bf16.mxu0 0
    %210 = vmatpush1.bf16.msra.mxu0 0
    %211 = vmatprep.mubr.bf16.mxu0 0
    %212 = vmatmul.mubr.bf16.gmra.mrb[0].mxu0 %v177
    %v213 = vpop.f32.mrb[0].mxu0
    %v214 = vadd.f32 %v163, %v213
    %v215 = vpop.f32.mrb[0].mxu0
    %v216 = vpop.f32.mrb[0].mxu0
    %v217 = vadd.f32 %v163, %v216
    %v218 = vpop.f32.mrb[0].mxu0
    %219 = vdwg.mxu0
    %v220 = vld [vmem:[#allocation7] sm:$0xff]
    %v221 = vld [vmem:[#allocation7 + $0x8] sm:$0xff]
    %v222 = vld [vmem:[#allocation7 + $0x10] sm:$0xff]
    %v223 = vld [vmem:[#allocation7 + $0x18] sm:$0xff]
    %v224 = vld [vmem:[#allocation7 + $0x20] sm:$0xff]
    %v225 = vld [vmem:[#allocation7 + $0x28] sm:$0xff]
    %v226 = vld [vmem:[#allocation7 + $0x30] sm:$0xff]
    %v227 = vld [vmem:[#allocation7 + $0x38] sm:$0xff]
    %230 = vrot.lane.b32.xlu0 %v214, 120
    %v231 = vpop.permute.xlu0 %230
    %232 = vrot.lane.b32.xlu0 %v217, 120
    %v233 = vpop.permute.xlu0 %232
    %236 = vrot.lane.b32.xlu0 %v214, 112
    %v237 = vpop.permute.xlu0 %236
    %238 = vrot.lane.b32.xlu0 %v217, 112
    %v239 = vpop.permute.xlu0 %238
    %242 = vrot.lane.b32.xlu0 %v214, 104
    %v243 = vpop.permute.xlu0 %242
    %244 = vrot.lane.b32.xlu0 %v217, 104
    %v245 = vpop.permute.xlu0 %244
    %v248 = vcombine.low %v214, %v237
    %v249 = vcombine.high %v214, %v237
    %v251 = vunpack.c.l.s4 1983009808
    %v252 = vunpack.c.0.s8 %v251
    %v253 = vlaneseq
    %v254 = vshrl.u32 %v253, 7
    %v255 = vsub.s32 %v252, %v254
    %v256 = vrot.slane %v248, %v255
    %v258 = vunpack.c.l.s4 1983009808
    %v259 = vunpack.c.0.s8 %v258
    %v260 = vlaneseq
    %v261 = vshrl.u32 %v260, 7
    %v262 = vsub.s32 %v259, %v261
    %v263 = vrot.slane %v249, %v262
    %v264 = vcombine.low %v231, %v243
    %v265 = vcombine.high %v231, %v243
    %v267 = vunpack.c.l.s4 1983009808
    %v268 = vunpack.c.0.s8 %v267
    %v269 = vlaneseq
    %v270 = vshrl.u32 %v269, 7
    %v271 = vsub.s32 %v268, %v270
    %v272 = vrot.slane %v264, %v271
    %v274 = vunpack.c.l.s4 1983009808
    %v275 = vunpack.c.0.s8 %v274
    %v276 = vlaneseq
    %v277 = vshrl.u32 %v276, 7
    %v278 = vsub.s32 %v275, %v277
    %v279 = vrot.slane %v265, %v278
    %v280 = vcombine.low %v256, %v272
    %v281 = vcombine.high %v256, %v272
    %v283 = vunpack.c.l.s4 1934713408
    %v284 = vunpack.c.0.s8 %v283
    %v285 = vlaneseq
    %v286 = vshrl.u32 %v285, 7
    %v287 = vsub.s32 %v284, %v286
    %v288 = vrot.slane %v280, %v287
    %v290 = vunpack.c.l.s4 1934713408
    %v291 = vunpack.c.0.s8 %v290
    %v292 = vlaneseq
    %v293 = vshrl.u32 %v292, 7
    %v294 = vsub.s32 %v291, %v293
    %v295 = vrot.slane %v281, %v294
    %v296 = vcombine.low %v263, %v279
    %v297 = vcombine.high %v263, %v279
    %v299 = vunpack.c.l.s4 1934713408
    %v300 = vunpack.c.0.s8 %v299
    %v301 = vlaneseq
    %v302 = vshrl.u32 %v301, 7
    %v303 = vsub.s32 %v300, %v302
    %v304 = vrot.slane %v296, %v303
    %v306 = vunpack.c.l.s4 1934713408
    %v307 = vunpack.c.0.s8 %v306
    %v308 = vlaneseq
    %v309 = vshrl.u32 %v308, 7
    %v310 = vsub.s32 %v307, %v309
    %v311 = vrot.slane %v297, %v310
    %v312 = vcombine.high %v288, 0.0
    %v313 = vcombine.high %v295, 0.0
    %v314 = vcombine.high %v304, 0.0
    %v315 = vcombine.high %v311, 0.0
    %v316 = vcombine.low %v217, %v239
    %v317 = vcombine.high %v217, %v239
    %v319 = vunpack.c.l.s4 1983009808
    %v320 = vunpack.c.0.s8 %v319
    %v321 = vlaneseq
    %v322 = vshrl.u32 %v321, 7
    %v323 = vsub.s32 %v320, %v322
    %v324 = vrot.slane %v316, %v323
    %v326 = vunpack.c.l.s4 1983009808
    %v327 = vunpack.c.0.s8 %v326
    %v328 = vlaneseq
    %v329 = vshrl.u32 %v328, 7
    %v330 = vsub.s32 %v327, %v329
    %v331 = vrot.slane %v317, %v330
    %v332 = vcombine.low %v233, %v245
    %v333 = vcombine.high %v233, %v245
    %v335 = vunpack.c.l.s4 1983009808
    %v336 = vunpack.c.0.s8 %v335
    %v337 = vlaneseq
    %v338 = vshrl.u32 %v337, 7
    %v339 = vsub.s32 %v336, %v338
    %v340 = vrot.slane %v332, %v339
    %v342 = vunpack.c.l.s4 1983009808
    %v343 = vunpack.c.0.s8 %v342
    %v344 = vlaneseq
    %v345 = vshrl.u32 %v344, 7
    %v346 = vsub.s32 %v343, %v345
    %v347 = vrot.slane %v333, %v346
    %v348 = vcombine.low %v324, %v340
    %v349 = vcombine.high %v324, %v340
    %v351 = vunpack.c.l.s4 1934713408
    %v352 = vunpack.c.0.s8 %v351
    %v353 = vlaneseq
    %v354 = vshrl.u32 %v353, 7
    %v355 = vsub.s32 %v352, %v354
    %v356 = vrot.slane %v348, %v355
    %v358 = vunpack.c.l.s4 1934713408
    %v359 = vunpack.c.0.s8 %v358
    %v360 = vlaneseq
    %v361 = vshrl.u32 %v360, 7
    %v362 = vsub.s32 %v359, %v361
    %v363 = vrot.slane %v349, %v362
    %v364 = vcombine.low %v331, %v347
    %v365 = vcombine.high %v331, %v347
    %v367 = vunpack.c.l.s4 1934713408
    %v368 = vunpack.c.0.s8 %v367
    %v369 = vlaneseq
    %v370 = vshrl.u32 %v369, 7
    %v371 = vsub.s32 %v368, %v370
    %v372 = vrot.slane %v364, %v371
    %v374 = vunpack.c.l.s4 1934713408
    %v375 = vunpack.c.0.s8 %v374
    %v376 = vlaneseq
    %v377 = vshrl.u32 %v376, 7
    %v378 = vsub.s32 %v375, %v377
    %v379 = vrot.slane %v365, %v378
    %v380 = vcombine.high %v356, 0.0
    %v381 = vcombine.high %v363, 0.0
    %v382 = vcombine.high %v372, 0.0
    %v383 = vcombine.high %v379, 0.0
    %v384 = vcombine.low %v288, %v295
    %v386 = vunpack.c.l.s4 1983009808
    %v387 = vunpack.c.0.s8 %v386
    %v388 = vlaneseq
    %v389 = vshrl.u32 %v388, 7
    %v390 = vsub.s32 %v387, %v389
    %v391 = vrot.slane %v384, %v390
    %v392 = vcombine.low %v312, %v313
    %v394 = vunpack.c.l.s4 1983009808
    %v395 = vunpack.c.0.s8 %v394
    %v396 = vlaneseq
    %v397 = vshrl.u32 %v396, 7
    %v398 = vsub.s32 %v395, %v397
    %v399 = vrot.slane %v392, %v398
    %v400 = vcombine.low %v304, %v311
    %v402 = vunpack.c.l.s4 1983009808
    %v403 = vunpack.c.0.s8 %v402
    %v404 = vlaneseq
    %v405 = vshrl.u32 %v404, 7
    %v406 = vsub.s32 %v403, %v405
    %v407 = vrot.slane %v400, %v406
    %v408 = vcombine.low %v314, %v315
    %v410 = vunpack.c.l.s4 1983009808
    %v411 = vunpack.c.0.s8 %v410
    %v412 = vlaneseq
    %v413 = vshrl.u32 %v412, 7
    %v414 = vsub.s32 %v411, %v413
    %v415 = vrot.slane %v408, %v414
    %v416 = vcombine.low %v391, %v399
    %v417 = vcombine.high %v391, %v399
    %v419 = vunpack.c.l.s4 1934713408
    %v420 = vunpack.c.0.s8 %v419
    %v421 = vlaneseq
    %v422 = vshrl.u32 %v421, 7
    %v423 = vsub.s32 %v420, %v422
    %v424 = vrot.slane %v416, %v423
    %v426 = vunpack.c.l.s4 1934713408
    %v427 = vunpack.c.0.s8 %v426
    %v428 = vlaneseq
    %v429 = vshrl.u32 %v428, 7
    %v430 = vsub.s32 %v427, %v429
    %v431 = vrot.slane %v417, %v430
    %v432 = vcombine.low %v407, %v415
    %v433 = vcombine.high %v407, %v415
    %v435 = vunpack.c.l.s4 1934713408
    %v436 = vunpack.c.0.s8 %v435
    %v437 = vlaneseq
    %v438 = vshrl.u32 %v437, 7
    %v439 = vsub.s32 %v436, %v438
    %v440 = vrot.slane %v432, %v439
    %v442 = vunpack.c.l.s4 1934713408
    %v443 = vunpack.c.0.s8 %v442
    %v444 = vlaneseq
    %v445 = vshrl.u32 %v444, 7
    %v446 = vsub.s32 %v443, %v445
    %v447 = vrot.slane %v433, %v446
    %v448 = vcombine.low %v424, %v440
    %v449 = vcombine.high %v424, %v440
    %v450 = vcombine.low %v431, %v447
    %v451 = vcombine.high %v431, %v447
    %v452 = vcombine.low %v356, %v363
    %v454 = vunpack.c.l.s4 1983009808
    %v455 = vunpack.c.0.s8 %v454
    %v456 = vlaneseq
    %v457 = vshrl.u32 %v456, 7
    %v458 = vsub.s32 %v455, %v457
    %v459 = vrot.slane %v452, %v458
    %v460 = vcombine.low %v380, %v381
    %v462 = vunpack.c.l.s4 1983009808
    %v463 = vunpack.c.0.s8 %v462
    %v464 = vlaneseq
    %v465 = vshrl.u32 %v464, 7
    %v466 = vsub.s32 %v463, %v465
    %v467 = vrot.slane %v460, %v466
    %v468 = vcombine.low %v372, %v379
    %v470 = vunpack.c.l.s4 1983009808
    %v471 = vunpack.c.0.s8 %v470
    %v472 = vlaneseq
    %v473 = vshrl.u32 %v472, 7
    %v474 = vsub.s32 %v471, %v473
    %v475 = vrot.slane %v468, %v474
    %v476 = vcombine.low %v382, %v383
    %v478 = vunpack.c.l.s4 1983009808
    %v479 = vunpack.c.0.s8 %v478
    %v480 = vlaneseq
    %v481 = vshrl.u32 %v480, 7
    %v482 = vsub.s32 %v479, %v481
    %v483 = vrot.slane %v476, %v482
    %v484 = vcombine.low %v459, %v467
    %v485 = vcombine.high %v459, %v467
    %v487 = vunpack.c.l.s4 1934713408
    %v488 = vunpack.c.0.s8 %v487
    %v489 = vlaneseq
    %v490 = vshrl.u32 %v489, 7
    %v491 = vsub.s32 %v488, %v490
    %v492 = vrot.slane %v484, %v491
    %v494 = vunpack.c.l.s4 1934713408
    %v495 = vunpack.c.0.s8 %v494
    %v496 = vlaneseq
    %v497 = vshrl.u32 %v496, 7
    %v498 = vsub.s32 %v495, %v497
    %v499 = vrot.slane %v485, %v498
    %v500 = vcombine.low %v475, %v483
    %v501 = vcombine.high %v475, %v483
    %v503 = vunpack.c.l.s4 1934713408
    %v504 = vunpack.c.0.s8 %v503
    %v505 = vlaneseq
    %v506 = vshrl.u32 %v505, 7
    %v507 = vsub.s32 %v504, %v506
    %v508 = vrot.slane %v500, %v507
    %v510 = vunpack.c.l.s4 1934713408
    %v511 = vunpack.c.0.s8 %v510
    %v512 = vlaneseq
    %v513 = vshrl.u32 %v512, 7
    %v514 = vsub.s32 %v511, %v513
    %v515 = vrot.slane %v501, %v514
    %v516 = vcombine.low %v492, %v508
    %v517 = vcombine.high %v492, %v508
    %v518 = vcombine.low %v499, %v515
    %v519 = vcombine.high %v499, %v515
    %v520 = vpack.c.bf16 %v449, %v448
    %v521 = vpack.c.bf16 %v451, %v450
    %v522 = vpack.c.bf16 %v517, %v516
    %v523 = vpack.c.bf16 %v519, %v518
    %524 = vrot.lane.b32.xlu0 %v214, 96
    %v525 = vpop.permute.xlu0 %524
    %526 = vrot.lane.b32.xlu0 %v217, 96
    %v527 = vpop.permute.xlu0 %526
    %528 = vrot.lane.b32.xlu0 %v231, 96
    %v529 = vpop.permute.xlu0 %528
    %530 = vrot.lane.b32.xlu0 %v233, 96
    %v531 = vpop.permute.xlu0 %530
    %532 = vrot.lane.b32.xlu0 %v237, 96
    %v533 = vpop.permute.xlu0 %532
    %534 = vrot.lane.b32.xlu0 %v239, 96
    %v535 = vpop.permute.xlu0 %534
    %536 = vrot.lane.b32.xlu0 %v243, 96
    %v537 = vpop.permute.xlu0 %536
    %538 = vrot.lane.b32.xlu0 %v245, 96
    %v539 = vpop.permute.xlu0 %538
    %v548 = vcombine.low %v525, %v533
    %v549 = vcombine.high %v525, %v533
    %v551 = vunpack.c.l.s4 1983009808
    %v552 = vunpack.c.0.s8 %v551
    %v553 = vlaneseq
    %v554 = vshrl.u32 %v553, 7
    %v555 = vsub.s32 %v552, %v554
    %v556 = vrot.slane %v548, %v555
    %v558 = vunpack.c.l.s4 1983009808
    %v559 = vunpack.c.0.s8 %v558
    %v560 = vlaneseq
    %v561 = vshrl.u32 %v560, 7
    %v562 = vsub.s32 %v559, %v561
    %v563 = vrot.slane %v549, %v562
    %v564 = vcombine.low %v529, %v537
    %v565 = vcombine.high %v529, %v537
    %v567 = vunpack.c.l.s4 1983009808
    %v568 = vunpack.c.0.s8 %v567
    %v569 = vlaneseq
    %v570 = vshrl.u32 %v569, 7
    %v571 = vsub.s32 %v568, %v570
    %v572 = vrot.slane %v564, %v571
    %v574 = vunpack.c.l.s4 1983009808
    %v575 = vunpack.c.0.s8 %v574
    %v576 = vlaneseq
    %v577 = vshrl.u32 %v576, 7
    %v578 = vsub.s32 %v575, %v577
    %v579 = vrot.slane %v565, %v578
    %v580 = vcombine.low %v556, %v572
    %v581 = vcombine.high %v556, %v572
    %v583 = vunpack.c.l.s4 1934713408
    %v584 = vunpack.c.0.s8 %v583
    %v585 = vlaneseq
    %v586 = vshrl.u32 %v585, 7
    %v587 = vsub.s32 %v584, %v586
    %v588 = vrot.slane %v580, %v587
    %v590 = vunpack.c.l.s4 1934713408
    %v591 = vunpack.c.0.s8 %v590
    %v592 = vlaneseq
    %v593 = vshrl.u32 %v592, 7
    %v594 = vsub.s32 %v591, %v593
    %v595 = vrot.slane %v581, %v594
    %v596 = vcombine.low %v563, %v579
    %v597 = vcombine.high %v563, %v579
    %v599 = vunpack.c.l.s4 1934713408
    %v600 = vunpack.c.0.s8 %v599
    %v601 = vlaneseq
    %v602 = vshrl.u32 %v601, 7
    %v603 = vsub.s32 %v600, %v602
    %v604 = vrot.slane %v596, %v603
    %v606 = vunpack.c.l.s4 1934713408
    %v607 = vunpack.c.0.s8 %v606
    %v608 = vlaneseq
    %v609 = vshrl.u32 %v608, 7
    %v610 = vsub.s32 %v607, %v609
    %v611 = vrot.slane %v597, %v610
    %v612 = vcombine.high %v588, 0.0
    %v613 = vcombine.high %v595, 0.0
    %v614 = vcombine.high %v604, 0.0
    %v615 = vcombine.high %v611, 0.0
    %v616 = vcombine.low %v527, %v535
    %v617 = vcombine.high %v527, %v535
    %v619 = vunpack.c.l.s4 1983009808
    %v620 = vunpack.c.0.s8 %v619
    %v621 = vlaneseq
    %v622 = vshrl.u32 %v621, 7
    %v623 = vsub.s32 %v620, %v622
    %v624 = vrot.slane %v616, %v623
    %v626 = vunpack.c.l.s4 1983009808
    %v627 = vunpack.c.0.s8 %v626
    %v628 = vlaneseq
    %v629 = vshrl.u32 %v628, 7
    %v630 = vsub.s32 %v627, %v629
    %v631 = vrot.slane %v617, %v630
    %v632 = vcombine.low %v531, %v539
    %v633 = vcombine.high %v531, %v539
    %v635 = vunpack.c.l.s4 1983009808
    %v636 = vunpack.c.0.s8 %v635
    %v637 = vlaneseq
    %v638 = vshrl.u32 %v637, 7
    %v639 = vsub.s32 %v636, %v638
    %v640 = vrot.slane %v632, %v639
    %v642 = vunpack.c.l.s4 1983009808
    %v643 = vunpack.c.0.s8 %v642
    %v644 = vlaneseq
    %v645 = vshrl.u32 %v644, 7
    %v646 = vsub.s32 %v643, %v645
    %v647 = vrot.slane %v633, %v646
    %v648 = vcombine.low %v624, %v640
    %v649 = vcombine.high %v624, %v640
    %v651 = vunpack.c.l.s4 1934713408
    %v652 = vunpack.c.0.s8 %v651
    %v653 = vlaneseq
    %v654 = vshrl.u32 %v653, 7
    %v655 = vsub.s32 %v652, %v654
    %v656 = vrot.slane %v648, %v655
    %v658 = vunpack.c.l.s4 1934713408
    %v659 = vunpack.c.0.s8 %v658
    %v660 = vlaneseq
    %v661 = vshrl.u32 %v660, 7
    %v662 = vsub.s32 %v659, %v661
    %v663 = vrot.slane %v649, %v662
    %v664 = vcombine.low %v631, %v647
    %v665 = vcombine.high %v631, %v647
    %v667 = vunpack.c.l.s4 1934713408
    %v668 = vunpack.c.0.s8 %v667
    %v669 = vlaneseq
    %v670 = vshrl.u32 %v669, 7
    %v671 = vsub.s32 %v668, %v670
    %v672 = vrot.slane %v664, %v671
    %v674 = vunpack.c.l.s4 1934713408
    %v675 = vunpack.c.0.s8 %v674
    %v676 = vlaneseq
    %v677 = vshrl.u32 %v676, 7
    %v678 = vsub.s32 %v675, %v677
    %v679 = vrot.slane %v665, %v678
    %v680 = vcombine.high %v656, 0.0
    %v681 = vcombine.high %v663, 0.0
    %v682 = vcombine.high %v672, 0.0
    %v683 = vcombine.high %v679, 0.0
    %v684 = vcombine.low %v588, %v595
    %v686 = vunpack.c.l.s4 1983009808
    %v687 = vunpack.c.0.s8 %v686
    %v688 = vlaneseq
    %v689 = vshrl.u32 %v688, 7
    %v690 = vsub.s32 %v687, %v689
    %v691 = vrot.slane %v684, %v690
    %v692 = vcombine.low %v612, %v613
    %v694 = vunpack.c.l.s4 1983009808
    %v695 = vunpack.c.0.s8 %v694
    %v696 = vlaneseq
    %v697 = vshrl.u32 %v696, 7
    %v698 = vsub.s32 %v695, %v697
    %v699 = vrot.slane %v692, %v698
    %v700 = vcombine.low %v604, %v611
    %v702 = vunpack.c.l.s4 1983009808
    %v703 = vunpack.c.0.s8 %v702
    %v704 = vlaneseq
    %v705 = vshrl.u32 %v704, 7
    %v706 = vsub.s32 %v703, %v705
    %v707 = vrot.slane %v700, %v706
    %v708 = vcombine.low %v614, %v615
    %v710 = vunpack.c.l.s4 1983009808
    %v711 = vunpack.c.0.s8 %v710
    %v712 = vlaneseq
    %v713 = vshrl.u32 %v712, 7
    %v714 = vsub.s32 %v711, %v713
    %v715 = vrot.slane %v708, %v714
    %v716 = vcombine.low %v691, %v699
    %v717 = vcombine.high %v691, %v699
    %v719 = vunpack.c.l.s4 1934713408
    %v720 = vunpack.c.0.s8 %v719
    %v721 = vlaneseq
    %v722 = vshrl.u32 %v721, 7
    %v723 = vsub.s32 %v720, %v722
    %v724 = vrot.slane %v716, %v723
    %v726 = vunpack.c.l.s4 1934713408
    %v727 = vunpack.c.0.s8 %v726
    %v728 = vlaneseq
    %v729 = vshrl.u32 %v728, 7
    %v730 = vsub.s32 %v727, %v729
    %v731 = vrot.slane %v717, %v730
    %v732 = vcombine.low %v707, %v715
    %v733 = vcombine.high %v707, %v715
    %v735 = vunpack.c.l.s4 1934713408
    %v736 = vunpack.c.0.s8 %v735
    %v737 = vlaneseq
    %v738 = vshrl.u32 %v737, 7
    %v739 = vsub.s32 %v736, %v738
    %v740 = vrot.slane %v732, %v739
    %v742 = vunpack.c.l.s4 1934713408
    %v743 = vunpack.c.0.s8 %v742
    %v744 = vlaneseq
    %v745 = vshrl.u32 %v744, 7
    %v746 = vsub.s32 %v743, %v745
    %v747 = vrot.slane %v733, %v746
    %v748 = vcombine.low %v724, %v740
    %v749 = vcombine.high %v724, %v740
    %v750 = vcombine.low %v731, %v747
    %v751 = vcombine.high %v731, %v747
    %v752 = vcombine.low %v656, %v663
    %v754 = vunpack.c.l.s4 1983009808
    %v755 = vunpack.c.0.s8 %v754
    %v756 = vlaneseq
    %v757 = vshrl.u32 %v756, 7
    %v758 = vsub.s32 %v755, %v757
    %v759 = vrot.slane %v752, %v758
    %v760 = vcombine.low %v680, %v681
    %v762 = vunpack.c.l.s4 1983009808
    %v763 = vunpack.c.0.s8 %v762
    %v764 = vlaneseq
    %v765 = vshrl.u32 %v764, 7
    %v766 = vsub.s32 %v763, %v765
    %v767 = vrot.slane %v760, %v766
    %v768 = vcombine.low %v672, %v679
    %v770 = vunpack.c.l.s4 1983009808
    %v771 = vunpack.c.0.s8 %v770
    %v772 = vlaneseq
    %v773 = vshrl.u32 %v772, 7
    %v774 = vsub.s32 %v771, %v773
    %v775 = vrot.slane %v768, %v774
    %v776 = vcombine.low %v682, %v683
    %v778 = vunpack.c.l.s4 1983009808
    %v779 = vunpack.c.0.s8 %v778
    %v780 = vlaneseq
    %v781 = vshrl.u32 %v780, 7
    %v782 = vsub.s32 %v779, %v781
    %v783 = vrot.slane %v776, %v782
    %v784 = vcombine.low %v759, %v767
    %v785 = vcombine.high %v759, %v767
    %v787 = vunpack.c.l.s4 1934713408
    %v788 = vunpack.c.0.s8 %v787
    %v789 = vlaneseq
    %v790 = vshrl.u32 %v789, 7
    %v791 = vsub.s32 %v788, %v790
    %v792 = vrot.slane %v784, %v791
    %v794 = vunpack.c.l.s4 1934713408
    %v795 = vunpack.c.0.s8 %v794
    %v796 = vlaneseq
    %v797 = vshrl.u32 %v796, 7
    %v798 = vsub.s32 %v795, %v797
    %v799 = vrot.slane %v785, %v798
    %v800 = vcombine.low %v775, %v783
    %v801 = vcombine.high %v775, %v783
    %v803 = vunpack.c.l.s4 1934713408
    %v804 = vunpack.c.0.s8 %v803
    %v805 = vlaneseq
    %v806 = vshrl.u32 %v805, 7
    %v807 = vsub.s32 %v804, %v806
    %v808 = vrot.slane %v800, %v807
    %v810 = vunpack.c.l.s4 1934713408
    %v811 = vunpack.c.0.s8 %v810
    %v812 = vlaneseq
    %v813 = vshrl.u32 %v812, 7
    %v814 = vsub.s32 %v811, %v813
    %v815 = vrot.slane %v801, %v814
    %v816 = vcombine.low %v792, %v808
    %v817 = vcombine.high %v792, %v808
    %v818 = vcombine.low %v799, %v815
    %v819 = vcombine.high %v799, %v815
    %v820 = vpack.c.bf16 %v749, %v748
    %v821 = vpack.c.bf16 %v751, %v750
    %v822 = vpack.c.bf16 %v817, %v816
    %v823 = vpack.c.bf16 %v819, %v818
    %824 = vrot.lane.b32.xlu0 %v214, 64
    %v825 = vpop.permute.xlu0 %824
    %826 = vrot.lane.b32.xlu0 %v217, 64
    %v827 = vpop.permute.xlu0 %826
    %828 = vrot.lane.b32.xlu0 %v231, 64
    %v829 = vpop.permute.xlu0 %828
    %830 = vrot.lane.b32.xlu0 %v233, 64
    %v831 = vpop.permute.xlu0 %830
    %832 = vrot.lane.b32.xlu0 %v237, 64
    %v833 = vpop.permute.xlu0 %832
    %834 = vrot.lane.b32.xlu0 %v239, 64
    %v835 = vpop.permute.xlu0 %834
    %836 = vrot.lane.b32.xlu0 %v243, 64
    %v837 = vpop.permute.xlu0 %836
    %838 = vrot.lane.b32.xlu0 %v245, 64
    %v839 = vpop.permute.xlu0 %838
    %v848 = vcombine.low %v825, %v833
    %v849 = vcombine.high %v825, %v833
    %v851 = vunpack.c.l.s4 1983009808
    %v852 = vunpack.c.0.s8 %v851
    %v853 = vlaneseq
    %v854 = vshrl.u32 %v853, 7
    %v855 = vsub.s32 %v852, %v854
    %v856 = vrot.slane %v848, %v855
    %v858 = vunpack.c.l.s4 1983009808
    %v859 = vunpack.c.0.s8 %v858
    %v860 = vlaneseq
    %v861 = vshrl.u32 %v860, 7
    %v862 = vsub.s32 %v859, %v861
    %v863 = vrot.slane %v849, %v862
    %v864 = vcombine.low %v829, %v837
    %v865 = vcombine.high %v829, %v837
    %v867 = vunpack.c.l.s4 1983009808
    %v868 = vunpack.c.0.s8 %v867
    %v869 = vlaneseq
    %v870 = vshrl.u32 %v869, 7
    %v871 = vsub.s32 %v868, %v870
    %v872 = vrot.slane %v864, %v871
    %v874 = vunpack.c.l.s4 1983009808
    %v875 = vunpack.c.0.s8 %v874
    %v876 = vlaneseq
    %v877 = vshrl.u32 %v876, 7
    %v878 = vsub.s32 %v875, %v877
    %v879 = vrot.slane %v865, %v878
    %v880 = vcombine.low %v856, %v872
    %v881 = vcombine.high %v856, %v872
    %v883 = vunpack.c.l.s4 1934713408
    %v884 = vunpack.c.0.s8 %v883
    %v885 = vlaneseq
    %v886 = vshrl.u32 %v885, 7
    %v887 = vsub.s32 %v884, %v886
    %v888 = vrot.slane %v880, %v887
    %v890 = vunpack.c.l.s4 1934713408
    %v891 = vunpack.c.0.s8 %v890
    %v892 = vlaneseq
    %v893 = vshrl.u32 %v892, 7
    %v894 = vsub.s32 %v891, %v893
    %v895 = vrot.slane %v881, %v894
    %v896 = vcombine.low %v863, %v879
    %v897 = vcombine.high %v863, %v879
    %v899 = vunpack.c.l.s4 1934713408
    %v900 = vunpack.c.0.s8 %v899
    %v901 = vlaneseq
    %v902 = vshrl.u32 %v901, 7
    %v903 = vsub.s32 %v900, %v902
    %v904 = vrot.slane %v896, %v903
    %v906 = vunpack.c.l.s4 1934713408
    %v907 = vunpack.c.0.s8 %v906
    %v908 = vlaneseq
    %v909 = vshrl.u32 %v908, 7
    %v910 = vsub.s32 %v907, %v909
    %v911 = vrot.slane %v897, %v910
    %v912 = vcombine.high %v888, 0.0
    %v913 = vcombine.high %v895, 0.0
    %v914 = vcombine.high %v904, 0.0
    %v915 = vcombine.high %v911, 0.0
    %v916 = vcombine.low %v827, %v835
    %v917 = vcombine.high %v827, %v835
    %v919 = vunpack.c.l.s4 1983009808
    %v920 = vunpack.c.0.s8 %v919
    %v921 = vlaneseq
    %v922 = vshrl.u32 %v921, 7
    %v923 = vsub.s32 %v920, %v922
    %v924 = vrot.slane %v916, %v923
    %v926 = vunpack.c.l.s4 1983009808
    %v927 = vunpack.c.0.s8 %v926
    %v928 = vlaneseq
    %v929 = vshrl.u32 %v928, 7
    %v930 = vsub.s32 %v927, %v929
    %v931 = vrot.slane %v917, %v930
    %v932 = vcombine.low %v831, %v839
    %v933 = vcombine.high %v831, %v839
    %v935 = vunpack.c.l.s4 1983009808
    %v936 = vunpack.c.0.s8 %v935
    %v937 = vlaneseq
    %v938 = vshrl.u32 %v937, 7
    %v939 = vsub.s32 %v936, %v938
    %v940 = vrot.slane %v932, %v939
    %v942 = vunpack.c.l.s4 1983009808
    %v943 = vunpack.c.0.s8 %v942
    %v944 = vlaneseq
    %v945 = vshrl.u32 %v944, 7
    %v946 = vsub.s32 %v943, %v945
    %v947 = vrot.slane %v933, %v946
    %v948 = vcombine.low %v924, %v940
    %v949 = vcombine.high %v924, %v940
    %v951 = vunpack.c.l.s4 1934713408
    %v952 = vunpack.c.0.s8 %v951
    %v953 = vlaneseq
    %v954 = vshrl.u32 %v953, 7
    %v955 = vsub.s32 %v952, %v954
    %v956 = vrot.slane %v948, %v955
    %v958 = vunpack.c.l.s4 1934713408
    %v959 = vunpack.c.0.s8 %v958
    %v960 = vlaneseq
    %v961 = vshrl.u32 %v960, 7
    %v962 = vsub.s32 %v959, %v961
    %v963 = vrot.slane %v949, %v962
    %v964 = vcombine.low %v931, %v947
    %v965 = vcombine.high %v931, %v947
    %v967 = vunpack.c.l.s4 1934713408
    %v968 = vunpack.c.0.s8 %v967
    %v969 = vlaneseq
    %v970 = vshrl.u32 %v969, 7
    %v971 = vsub.s32 %v968, %v970
    %v972 = vrot.slane %v964, %v971
    %v974 = vunpack.c.l.s4 1934713408
    %v975 = vunpack.c.0.s8 %v974
    %v976 = vlaneseq
    %v977 = vshrl.u32 %v976, 7
    %v978 = vsub.s32 %v975, %v977
    %v979 = vrot.slane %v965, %v978
    %v980 = vcombine.high %v956, 0.0
    %v981 = vcombine.high %v963, 0.0
    %v982 = vcombine.high %v972, 0.0
    %v983 = vcombine.high %v979, 0.0
    %v984 = vcombine.low %v888, %v895
    %v986 = vunpack.c.l.s4 1983009808
    %v987 = vunpack.c.0.s8 %v986
    %v988 = vlaneseq
    %v989 = vshrl.u32 %v988, 7
    %v990 = vsub.s32 %v987, %v989
    %v991 = vrot.slane %v984, %v990
    %v992 = vcombine.low %v912, %v913
    %v994 = vunpack.c.l.s4 1983009808
    %v995 = vunpack.c.0.s8 %v994
    %v996 = vlaneseq
    %v997 = vshrl.u32 %v996, 7
    %v998 = vsub.s32 %v995, %v997
    %v999 = vrot.slane %v992, %v998
    %v1000 = vcombine.low %v904, %v911
    %v1002 = vunpack.c.l.s4 1983009808
    %v1003 = vunpack.c.0.s8 %v1002
    %v1004 = vlaneseq
    %v1005 = vshrl.u32 %v1004, 7
    %v1006 = vsub.s32 %v1003, %v1005
    %v1007 = vrot.slane %v1000, %v1006
    %v1008 = vcombine.low %v914, %v915
    %v1010 = vunpack.c.l.s4 1983009808
    %v1011 = vunpack.c.0.s8 %v1010
    %v1012 = vlaneseq
    %v1013 = vshrl.u32 %v1012, 7
    %v1014 = vsub.s32 %v1011, %v1013
    %v1015 = vrot.slane %v1008, %v1014
    %v1016 = vcombine.low %v991, %v999
    %v1017 = vcombine.high %v991, %v999
    %v1019 = vunpack.c.l.s4 1934713408
    %v1020 = vunpack.c.0.s8 %v1019
    %v1021 = vlaneseq
    %v1022 = vshrl.u32 %v1021, 7
    %v1023 = vsub.s32 %v1020, %v1022
    %v1024 = vrot.slane %v1016, %v1023
    %v1026 = vunpack.c.l.s4 1934713408
    %v1027 = vunpack.c.0.s8 %v1026
    %v1028 = vlaneseq
    %v1029 = vshrl.u32 %v1028, 7
    %v1030 = vsub.s32 %v1027, %v1029
    %v1031 = vrot.slane %v1017, %v1030
    %v1032 = vcombine.low %v1007, %v1015
    %v1033 = vcombine.high %v1007, %v1015
    %v1035 = vunpack.c.l.s4 1934713408
    %v1036 = vunpack.c.0.s8 %v1035
    %v1037 = vlaneseq
    %v1038 = vshrl.u32 %v1037, 7
    %v1039 = vsub.s32 %v1036, %v1038
    %v1040 = vrot.slane %v1032, %v1039
    %v1042 = vunpack.c.l.s4 1934713408
    %v1043 = vunpack.c.0.s8 %v1042
    %v1044 = vlaneseq
    %v1045 = vshrl.u32 %v1044, 7
    %v1046 = vsub.s32 %v1043, %v1045
    %v1047 = vrot.slane %v1033, %v1046
    %v1048 = vcombine.low %v1024, %v1040
    %v1049 = vcombine.high %v1024, %v1040
    %v1050 = vcombine.low %v1031, %v1047
    %v1051 = vcombine.high %v1031, %v1047
    %v1052 = vcombine.low %v956, %v963
    %v1054 = vunpack.c.l.s4 1983009808
    %v1055 = vunpack.c.0.s8 %v1054
    %v1056 = vlaneseq
    %v1057 = vshrl.u32 %v1056, 7
    %v1058 = vsub.s32 %v1055, %v1057
    %v1059 = vrot.slane %v1052, %v1058
    %v1060 = vcombine.low %v980, %v981
    %v1062 = vunpack.c.l.s4 1983009808
    %v1063 = vunpack.c.0.s8 %v1062
    %v1064 = vlaneseq
    %v1065 = vshrl.u32 %v1064, 7
    %v1066 = vsub.s32 %v1063, %v1065
    %v1067 = vrot.slane %v1060, %v1066
    %v1068 = vcombine.low %v972, %v979
    %v1070 = vunpack.c.l.s4 1983009808
    %v1071 = vunpack.c.0.s8 %v1070
    %v1072 = vlaneseq
    %v1073 = vshrl.u32 %v1072, 7
    %v1074 = vsub.s32 %v1071, %v1073
    %v1075 = vrot.slane %v1068, %v1074
    %v1076 = vcombine.low %v982, %v983
    %v1078 = vunpack.c.l.s4 1983009808
    %v1079 = vunpack.c.0.s8 %v1078
    %v1080 = vlaneseq
    %v1081 = vshrl.u32 %v1080, 7
    %v1082 = vsub.s32 %v1079, %v1081
    %v1083 = vrot.slane %v1076, %v1082
    %v1084 = vcombine.low %v1059, %v1067
    %v1085 = vcombine.high %v1059, %v1067
    %v1087 = vunpack.c.l.s4 1934713408
    %v1088 = vunpack.c.0.s8 %v1087
    %v1089 = vlaneseq
    %v1090 = vshrl.u32 %v1089, 7
    %v1091 = vsub.s32 %v1088, %v1090
    %v1092 = vrot.slane %v1084, %v1091
    %v1094 = vunpack.c.l.s4 1934713408
    %v1095 = vunpack.c.0.s8 %v1094
    %v1096 = vlaneseq
    %v1097 = vshrl.u32 %v1096, 7
    %v1098 = vsub.s32 %v1095, %v1097
    %v1099 = vrot.slane %v1085, %v1098
    %v1100 = vcombine.low %v1075, %v1083
    %v1101 = vcombine.high %v1075, %v1083
    %v1103 = vunpack.c.l.s4 1934713408
    %v1104 = vunpack.c.0.s8 %v1103
    %v1105 = vlaneseq
    %v1106 = vshrl.u32 %v1105, 7
    %v1107 = vsub.s32 %v1104, %v1106
    %v1108 = vrot.slane %v1100, %v1107
    %v1110 = vunpack.c.l.s4 1934713408
    %v1111 = vunpack.c.0.s8 %v1110
    %v1112 = vlaneseq
    %v1113 = vshrl.u32 %v1112, 7
    %v1114 = vsub.s32 %v1111, %v1113
    %v1115 = vrot.slane %v1101, %v1114
    %v1116 = vcombine.low %v1092, %v1108
    %v1117 = vcombine.high %v1092, %v1108
    %v1118 = vcombine.low %v1099, %v1115
    %v1119 = vcombine.high %v1099, %v1115
    %v1120 = vpack.c.bf16 %v1049, %v1048
    %v1121 = vpack.c.bf16 %v1051, %v1050
    %v1122 = vpack.c.bf16 %v1117, %v1116
    %v1123 = vpack.c.bf16 %v1119, %v1118
    %vm1124 = vcmask 64512
    %v1126 = vsel %vm1124, %v520, 0
    %v1129 = vsel %vm1124, %v521, 0
    %v1132 = vsel %vm1124, %v522, 0
    %v1135 = vsel %vm1124, %v523, 0
    %v1138 = vsel %vm1124, %v820, 0
    %v1141 = vsel %vm1124, %v821, 0
    %v1144 = vsel %vm1124, %v822, 0
    %v1147 = vsel %vm1124, %v823, 0
    %1149 = vmatprep.subr.bf16.mxu0 0
    %1150 = vmatpush1.bf16.xpose.msra.mxu0 %v1138
    %1151 = vmatprep.subr.bf16.mxu0 0
    %1152 = vmatpush1.bf16.xpose.msra.mxu0 %v1141
    %1153 = vmatprep.subr.bf16.mxu0 0
    %1154 = vmatpush1.bf16.xpose.msra.mxu0 %v1144
    %1155 = vmatprep.subr.bf16.mxu0 0
    %1156 = vmatpush1.bf16.xpose.msra.mxu0 %v1147
    %1157 = vmatprep.subr.bf16.mxu0 0
    %1158 = vmatpush1.bf16.xpose.msra.mxu0 0
    %1159 = vmatprep.subr.bf16.mxu0 0
    %1160 = vmatpush1.bf16.xpose.msra.mxu0 0
    %1161 = vmatprep.subr.bf16.mxu0 0
    %1162 = vmatpush1.bf16.xpose.msra.mxu0 0
    %1163 = vmatprep.subr.bf16.mxu0 0
    %1164 = vmatpush1.bf16.xpose.msra.mxu0 0
    %1165 = vmatprep.subr.bf16.mxu0 0
    %1166 = vmatpush1.bf16.xpose.msra.mxu0 0
    %1167 = vmatprep.subr.bf16.mxu0 0
    %1168 = vmatpush1.bf16.xpose.msra.mxu0 0
    %1169 = vmatprep.subr.bf16.mxu0 0
    %1170 = vmatpush1.bf16.xpose.msra.mxu0 0
    %1171 = vmatprep.subr.bf16.mxu0 0
    %1172 = vmatpush1.bf16.xpose.msra.mxu0 0
    %1173 = vmatprep.subr.bf16.mxu0 0
    %1174 = vmatpush1.bf16.xpose.msra.mxu0 0
    %1175 = vmatprep.subr.bf16.mxu0 0
    %1176 = vmatpush1.bf16.xpose.msra.mxu0 0
    %1177 = vmatprep.subr.bf16.mxu0 0
    %1178 = vmatpush1.bf16.xpose.msra.mxu0 0
    %1179 = vmatprep.subr.bf16.mxu0 0
    %1180 = vmatpush1.bf16.xpose.msra.mxu0 0
    %1181 = vmatprep.mubr.bf16.mxu0 0
    %1182 = vmatmul.mubr.bf16.gmra.mrb[0].mxu0 %v1126
    %v1183 = vpop.f32.mrb[0].mxu0
    %v1184 = vadd.f32 0.0, %v1183
    %v1185 = vpop.f32.mrb[0].mxu0
    %v1186 = vpop.f32.mrb[0].mxu0
    %v1187 = vadd.f32 0.0, %v1186
    %v1188 = vpop.f32.mrb[0].mxu0
    %1189 = vmatprep.mubr.bf16.mxu0 0
    %1190 = vmatmul.mubr.bf16.gmra.mrb[0].mxu0 %v1129
    %v1191 = vpop.f32.mrb[0].mxu0
    %v1192 = vadd.f32 0.0, %v1191
    %v1193 = vpop.f32.mrb[0].mxu0
    %v1194 = vpop.f32.mrb[0].mxu0
    %v1195 = vadd.f32 0.0, %v1194
    %v1196 = vpop.f32.mrb[0].mxu0
    %1197 = vmatprep.mubr.bf16.mxu0 0
    %1198 = vmatmul.mubr.bf16.gmra.mrb[0].mxu0 %v1132
    %v1199 = vpop.f32.mrb[0].mxu0
    %v1200 = vadd.f32 0.0, %v1199
    %v1201 = vpop.f32.mrb[0].mxu0
    %v1202 = vpop.f32.mrb[0].mxu0
    %v1203 = vadd.f32 0.0, %v1202
    %v1204 = vpop.f32.mrb[0].mxu0
    %1205 = vmatprep.mubr.bf16.mxu0 0
    %1206 = vmatmul.mubr.bf16.gmra.mrb[0].mxu0 %v1135
    %v1207 = vpop.f32.mrb[0].mxu0
    %v1208 = vadd.f32 0.0, %v1207
    %v1209 = vpop.f32.mrb[0].mxu0
    %v1210 = vpop.f32.mrb[0].mxu0
    %v1211 = vadd.f32 0.0, %v1210
    %v1212 = vpop.f32.mrb[0].mxu0
    %1213 = vdwg.mxu0
    %v1214 = vmul.f32 %v1184, 0.35355338
    %v1215 = vmul.f32 %v1187, 0.35355338
    %v1216 = vmul.f32 %v1192, 0.35355338
    %v1217 = vmul.f32 %v1195, 0.35355338
    %v1218 = vmul.f32 %v1200, 0.35355338
    %v1219 = vmul.f32 %v1203, 0.35355338
    %v1220 = vmul.f32 %v1208, 0.35355338
    %v1221 = vmul.f32 %v1211, 0.35355338
    %v1222 = vadd.f32 %v1214, %v220
    %v1223 = vadd.f32 %v1215, %v221
    %v1224 = vadd.f32 %v1216, %v222
    %v1225 = vadd.f32 %v1217, %v223
    %v1226 = vadd.f32 %v1218, %v224
    %v1227 = vadd.f32 %v1219, %v225
    %v1228 = vadd.f32 %v1220, %v226
    %v1229 = vadd.f32 %v1221, %v227
    %vm1230 = vcmask 523264
    %v1231 = vsel %vm1230, %v1222, -inf
    %1232 = vmax.xlane.f32.xlu0 %v1231
    %v1233 = vpop.xlane.xlu0 %1232
    %v1234 = vsel %vm1230, %v1223, -inf
    %1235 = vmax.xlane.f32.xlu0 %v1234
    %v1236 = vpop.xlane.xlu0 %1235
    %v1237 = vsel %vm1230, %v1224, -inf
    %1238 = vmax.xlane.f32.xlu0 %v1237
    %v1239 = vpop.xlane.xlu0 %1238
    %v1240 = vsel %vm1230, %v1225, -inf
    %1241 = vmax.xlane.f32.xlu0 %v1240
    %v1242 = vpop.xlane.xlu0 %1241
    %v1243 = vsel %vm1230, %v1226, -inf
    %1244 = vmax.xlane.f32.xlu0 %v1243
    %v1245 = vpop.xlane.xlu0 %1244
    %v1246 = vsel %vm1230, %v1227, -inf
    %1247 = vmax.xlane.f32.xlu0 %v1246
    %v1248 = vpop.xlane.xlu0 %1247
    %v1249 = vsel %vm1230, %v1228, -inf
    %1250 = vmax.xlane.f32.xlu0 %v1249
    %v1251 = vpop.xlane.xlu0 %1250
    %v1252 = vsel %vm1230, %v1229, -inf
    %1253 = vmax.xlane.f32.xlu0 %v1252
    %v1254 = vpop.xlane.xlu0 %1253
    %v1255 = vsub.f32 %v1222, %v1233
    %v1256 = vsub.f32 %v1223, %v1236
    %v1257 = vsub.f32 %v1224, %v1239
    %v1258 = vsub.f32 %v1225, %v1242
    %v1259 = vsub.f32 %v1226, %v1245
    %v1260 = vsub.f32 %v1227, %v1248
    %v1261 = vsub.f32 %v1228, %v1251
    %v1262 = vsub.f32 %v1229, %v1254
    %v1263 = vmul.f32 %v1255, 1.442695
    %v1264 = vpow.pop %v1263
    %v1265 = vmul.f32 %v1256, 1.442695
    %v1266 = vpow.pop %v1265
    %v1267 = vmul.f32 %v1257, 1.442695
    %v1268 = vpow.pop %v1267
    %v1269 = vmul.f32 %v1258, 1.442695
    %v1270 = vpow.pop %v1269
    %v1271 = vmul.f32 %v1259, 1.442695
    %v1272 = vpow.pop %v1271
    %v1273 = vmul.f32 %v1260, 1.442695
    %v1274 = vpow.pop %v1273
    %v1275 = vmul.f32 %v1261, 1.442695
    %v1276 = vpow.pop %v1275
    %v1277 = vmul.f32 %v1262, 1.442695
    %v1278 = vpow.pop %v1277
    %v1279 = vsel %vm1230, %v1264, 0.0
    %1280 = vadd.xlane.f32.xlu0 %v1279
    %v1281 = vpop.xlane.xlu0 %1280
    %v1282 = vsel %vm1230, %v1266, 0.0
    %1283 = vadd.xlane.f32.xlu0 %v1282
    %v1284 = vpop.xlane.xlu0 %1283
    %v1285 = vsel %vm1230, %v1268, 0.0
    %1286 = vadd.xlane.f32.xlu0 %v1285
    %v1287 = vpop.xlane.xlu0 %1286
    %v1288 = vsel %vm1230, %v1270, 0.0
    %1289 = vadd.xlane.f32.xlu0 %v1288
    %v1290 = vpop.xlane.xlu0 %1289
    %v1291 = vsel %vm1230, %v1272, 0.0
    %1292 = vadd.xlane.f32.xlu0 %v1291
    %v1293 = vpop.xlane.xlu0 %1292
    %v1294 = vsel %vm1230, %v1274, 0.0
    %1295 = vadd.xlane.f32.xlu0 %v1294
    %v1296 = vpop.xlane.xlu0 %1295
    %v1297 = vsel %vm1230, %v1276, 0.0
    %1298 = vadd.xlane.f32.xlu0 %v1297
    %v1299 = vpop.xlane.xlu0 %1298
    %v1300 = vsel %vm1230, %v1278, 0.0
    %1301 = vadd.xlane.f32.xlu0 %v1300
    %v1302 = vpop.xlane.xlu0 %1301
    %v1303 = vrcp.pop %v1281
    %v1304 = vrcp.pop %v1284
    %v1305 = vrcp.pop %v1287
    %v1306 = vrcp.pop %v1290
    %v1307 = vrcp.pop %v1293
    %v1308 = vrcp.pop %v1296
    %v1309 = vrcp.pop %v1299
    %v1310 = vrcp.pop %v1302
    %v1311 = vmul.f32 %v1264, %v1303
    %v1312 = vmul.f32 %v1266, %v1304
    %v1313 = vmul.f32 %v1268, %v1305
    %v1314 = vmul.f32 %v1270, %v1306
    %v1315 = vmul.f32 %v1272, %v1307
    %v1316 = vmul.f32 %v1274, %v1308
    %v1317 = vmul.f32 %v1276, %v1309
    %v1318 = vmul.f32 %v1278, %v1310
    %v1319 = vpack.c.bf16 %v1312, %v1311
    %v1320 = vpack.c.bf16 %v1314, %v1313
    %v1321 = vpack.c.bf16 %v1316, %v1315
    %v1322 = vpack.c.bf16 %v1318, %v1317
    %v1324 = vsel %vm1230, %v1319, 0
    %v1327 = vsel %vm1230, %v1320, 0
    %v1330 = vsel %vm1230, %v1321, 0
    %v1333 = vsel %vm1230, %v1322, 0
    %1335 = vmatprep.subr.bf16.mxu0 0
    %1336 = vmatpush1.bf16.msra.mxu0 %v1120
    %1337 = vmatprep.subr.bf16.mxu0 0
    %1338 = vmatpush1.bf16.msra.mxu0 %v1121
    %1339 = vmatprep.subr.bf16.mxu0 0
    %1340 = vmatpush1.bf16.msra.mxu0 %v1122
    %1341 = vmatprep.subr.bf16.mxu0 0
    %1342 = vmatpush1.bf16.msra.mxu0 %v1123
    %1343 = vmatprep.subr.bf16.mxu0 0
    %1344 = vmatpush1.bf16.msra.mxu0 0
    %1345 = vmatprep.subr.bf16.mxu0 0
    %1346 = vmatpush1.bf16.msra.mxu0 0
    %1347 = vmatprep.subr.bf16.mxu0 0
    %1348 = vmatpush1.bf16.msra.mxu0 0
    %1349 = vmatprep.subr.bf16.mxu0 0
    %1350 = vmatpush1.bf16.msra.mxu0 0
    %1351 = vmatprep.subr.bf16.mxu0 0
    %1352 = vmatpush1.bf16.msra.mxu0 0
    %1353 = vmatprep.subr.bf16.mxu0 0
    %1354 = vmatpush1.bf16.msra.mxu0 0
    %1355 = vmatprep.subr.bf16.mxu0 0
    %1356 = vmatpush1.bf16.msra.mxu0 0
    %1357 = vmatprep.subr.bf16.mxu0 0
    %1358 = vmatpush1.bf16.msra.mxu0 0
    %1359 = vmatprep.subr.bf16.mxu0 0
    %1360 = vmatpush1.bf16.msra.mxu0 0
    %1361 = vmatprep.subr.bf16.mxu0 0
    %1362 = vmatpush1.bf16.msra.mxu0 0
    %1363 = vmatprep.subr.bf16.mxu0 0
    %1364 = vmatpush1.bf16.msra.mxu0 0
    %1365 = vmatprep.subr.bf16.mxu0 0
    %1366 = vmatpush1.bf16.msra.mxu0 0
    %1367 = vmatprep.mubr.bf16.mxu0 0
    %1368 = vmatmul.mubr.bf16.gmra.mrb[0].mxu0 %v1324
    %v1369 = vpop.f32.mrb[0].mxu0
    %v1370 = vadd.f32 0.0, %v1369
    %v1371 = vpop.f32.mrb[0].mxu0
    %v1372 = vpop.f32.mrb[0].mxu0
    %v1373 = vadd.f32 0.0, %v1372
    %v1374 = vpop.f32.mrb[0].mxu0
    %1375 = vmatprep.mubr.bf16.mxu0 0
    %1376 = vmatmul.mubr.bf16.gmra.mrb[0].mxu0 %v1327
    %v1377 = vpop.f32.mrb[0].mxu0
    %v1378 = vadd.f32 0.0, %v1377
    %v1379 = vpop.f32.mrb[0].mxu0
    %v1380 = vpop.f32.mrb[0].mxu0
    %v1381 = vadd.f32 0.0, %v1380
    %v1382 = vpop.f32.mrb[0].mxu0
    %1383 = vmatprep.mubr.bf16.mxu0 0
    %1384 = vmatmul.mubr.bf16.gmra.mrb[0].mxu0 %v1330
    %v1385 = vpop.f32.mrb[0].mxu0
    %v1386 = vadd.f32 0.0, %v1385
    %v1387 = vpop.f32.mrb[0].mxu0
    %v1388 = vpop.f32.mrb[0].mxu0
    %v1389 = vadd.f32 0.0, %v1388
    %v1390 = vpop.f32.mrb[0].mxu0
    %1391 = vmatprep.mubr.bf16.mxu0 0
    %1392 = vmatmul.mubr.bf16.gmra.mrb[0].mxu0 %v1333
    %v1393 = vpop.f32.mrb[0].mxu0
    %v1394 = vadd.f32 0.0, %v1393
    %v1395 = vpop.f32.mrb[0].mxu0
    %v1396 = vpop.f32.mrb[0].mxu0
    %v1397 = vadd.f32 0.0, %v1396
    %v1398 = vpop.f32.mrb[0].mxu0
    %1399 = vdwg.mxu0
    %v1400 = vcombine.low %v1370, %v1378
    %v1401 = vcombine.high %v1370, %v1378
    %v1403 = vunpack.c.l.s4 1983009808
    %v1404 = vunpack.c.0.s8 %v1403
    %v1405 = vlaneseq
    %v1406 = vshrl.u32 %v1405, 7
    %v1407 = vsub.s32 %v1404, %v1406
    %v1408 = vrot.slane %v1400, %v1407
    %v1410 = vunpack.c.l.s4 1983009808
    %v1411 = vunpack.c.0.s8 %v1410
    %v1412 = vlaneseq
    %v1413 = vshrl.u32 %v1412, 7
    %v1414 = vsub.s32 %v1411, %v1413
    %v1415 = vrot.slane %v1401, %v1414
    %v1416 = vcombine.low %v1373, %v1381
    %v1417 = vcombine.high %v1373, %v1381
    %v1419 = vunpack.c.l.s4 1983009808
    %v1420 = vunpack.c.0.s8 %v1419
    %v1421 = vlaneseq
    %v1422 = vshrl.u32 %v1421, 7
    %v1423 = vsub.s32 %v1420, %v1422
    %v1424 = vrot.slane %v1416, %v1423
    %v1426 = vunpack.c.l.s4 1983009808
    %v1427 = vunpack.c.0.s8 %v1426
    %v1428 = vlaneseq
    %v1429 = vshrl.u32 %v1428, 7
    %v1430 = vsub.s32 %v1427, %v1429
    %v1431 = vrot.slane %v1417, %v1430
    %v1432 = vcombine.low %v1408, %v1424
    %v1433 = vcombine.high %v1408, %v1424
    %v1435 = vunpack.c.l.s4 1934713408
    %v1436 = vunpack.c.0.s8 %v1435
    %v1437 = vlaneseq
    %v1438 = vshrl.u32 %v1437, 7
    %v1439 = vsub.s32 %v1436, %v1438
    %v1440 = vrot.slane %v1432, %v1439
    %v1442 = vunpack.c.l.s4 1934713408
    %v1443 = vunpack.c.0.s8 %v1442
    %v1444 = vlaneseq
    %v1445 = vshrl.u32 %v1444, 7
    %v1446 = vsub.s32 %v1443, %v1445
    %v1447 = vrot.slane %v1433, %v1446
    %v1448 = vcombine.low %v1415, %v1431
    %v1449 = vcombine.high %v1415, %v1431
    %v1451 = vunpack.c.l.s4 1934713408
    %v1452 = vunpack.c.0.s8 %v1451
    %v1453 = vlaneseq
    %v1454 = vshrl.u32 %v1453, 7
    %v1455 = vsub.s32 %v1452, %v1454
    %v1456 = vrot.slane %v1448, %v1455
    %v1458 = vunpack.c.l.s4 1934713408
    %v1459 = vunpack.c.0.s8 %v1458
    %v1460 = vlaneseq
    %v1461 = vshrl.u32 %v1460, 7
    %v1462 = vsub.s32 %v1459, %v1461
    %v1463 = vrot.slane %v1449, %v1462
    %v1464 = vcombine.high %v1440, 0.0
    %v1465 = vcombine.high %v1447, 0.0
    %v1466 = vcombine.high %v1456, 0.0
    %v1467 = vcombine.high %v1463, 0.0
    %v1468 = vcombine.low %v1386, %v1394
    %v1469 = vcombine.high %v1386, %v1394
    %v1471 = vunpack.c.l.s4 1983009808
    %v1472 = vunpack.c.0.s8 %v1471
    %v1473 = vlaneseq
    %v1474 = vshrl.u32 %v1473, 7
    %v1475 = vsub.s32 %v1472, %v1474
    %v1476 = vrot.slane %v1468, %v1475
    %v1478 = vunpack.c.l.s4 1983009808
    %v1479 = vunpack.c.0.s8 %v1478
    %v1480 = vlaneseq
    %v1481 = vshrl.u32 %v1480, 7
    %v1482 = vsub.s32 %v1479, %v1481
    %v1483 = vrot.slane %v1469, %v1482
    %v1484 = vcombine.low %v1389, %v1397
    %v1485 = vcombine.high %v1389, %v1397
    %v1487 = vunpack.c.l.s4 1983009808
    %v1488 = vunpack.c.0.s8 %v1487
    %v1489 = vlaneseq
    %v1490 = vshrl.u32 %v1489, 7
    %v1491 = vsub.s32 %v1488, %v1490
    %v1492 = vrot.slane %v1484, %v1491
    %v1494 = vunpack.c.l.s4 1983009808
    %v1495 = vunpack.c.0.s8 %v1494
    %v1496 = vlaneseq
    %v1497 = vshrl.u32 %v1496, 7
    %v1498 = vsub.s32 %v1495, %v1497
    %v1499 = vrot.slane %v1485, %v1498
    %v1500 = vcombine.low %v1476, %v1492
    %v1501 = vcombine.high %v1476, %v1492
    %v1503 = vunpack.c.l.s4 1934713408
    %v1504 = vunpack.c.0.s8 %v1503
    %v1505 = vlaneseq
    %v1506 = vshrl.u32 %v1505, 7
    %v1507 = vsub.s32 %v1504, %v1506
    %v1508 = vrot.slane %v1500, %v1507
    %v1510 = vunpack.c.l.s4 1934713408
    %v1511 = vunpack.c.0.s8 %v1510
    %v1512 = vlaneseq
    %v1513 = vshrl.u32 %v1512, 7
    %v1514 = vsub.s32 %v1511, %v1513
    %v1515 = vrot.slane %v1501, %v1514
    %v1516 = vcombine.low %v1483, %v1499
    %v1517 = vcombine.high %v1483, %v1499
    %v1519 = vunpack.c.l.s4 1934713408
    %v1520 = vunpack.c.0.s8 %v1519
    %v1521 = vlaneseq
    %v1522 = vshrl.u32 %v1521, 7
    %v1523 = vsub.s32 %v1520, %v1522
    %v1524 = vrot.slane %v1516, %v1523
    %v1526 = vunpack.c.l.s4 1934713408
    %v1527 = vunpack.c.0.s8 %v1526
    %v1528 = vlaneseq
    %v1529 = vshrl.u32 %v1528, 7
    %v1530 = vsub.s32 %v1527, %v1529
    %v1531 = vrot.slane %v1517, %v1530
    %v1532 = vcombine.high %v1508, 0.0
    %v1533 = vcombine.high %v1515, 0.0
    %v1534 = vcombine.high %v1524, 0.0
    %v1535 = vcombine.high %v1531, 0.0
    %v1536 = vcombine.low %v1440, %v1447
    %v1538 = vunpack.c.l.s4 1983009808
    %v1539 = vunpack.c.0.s8 %v1538
    %v1540 = vlaneseq
    %v1541 = vshrl.u32 %v1540, 7
    %v1542 = vsub.s32 %v1539, %v1541
    %v1543 = vrot.slane %v1536, %v1542
    %v1544 = vcombine.low %v1464, %v1465
    %v1546 = vunpack.c.l.s4 1983009808
    %v1547 = vunpack.c.0.s8 %v1546
    %v1548 = vlaneseq
    %v1549 = vshrl.u32 %v1548, 7
    %v1550 = vsub.s32 %v1547, %v1549
    %v1551 = vrot.slane %v1544, %v1550
    %v1552 = vcombine.low %v1456, %v1463
    %v1554 = vunpack.c.l.s4 1983009808
    %v1555 = vunpack.c.0.s8 %v1554
    %v1556 = vlaneseq
    %v1557 = vshrl.u32 %v1556, 7
    %v1558 = vsub.s32 %v1555, %v1557
    %v1559 = vrot.slane %v1552, %v1558
    %v1560 = vcombine.low %v1466, %v1467
    %v1562 = vunpack.c.l.s4 1983009808
    %v1563 = vunpack.c.0.s8 %v1562
    %v1564 = vlaneseq
    %v1565 = vshrl.u32 %v1564, 7
    %v1566 = vsub.s32 %v1563, %v1565
    %v1567 = vrot.slane %v1560, %v1566
    %v1568 = vcombine.low %v1543, %v1551
    %v1569 = vcombine.high %v1543, %v1551
    %v1571 = vunpack.c.l.s4 1934713408
    %v1572 = vunpack.c.0.s8 %v1571
    %v1573 = vlaneseq
    %v1574 = vshrl.u32 %v1573, 7
    %v1575 = vsub.s32 %v1572, %v1574
    %v1576 = vrot.slane %v1568, %v1575
    %v1578 = vunpack.c.l.s4 1934713408
    %v1579 = vunpack.c.0.s8 %v1578
    %v1580 = vlaneseq
    %v1581 = vshrl.u32 %v1580, 7
    %v1582 = vsub.s32 %v1579, %v1581
    %v1583 = vrot.slane %v1569, %v1582
    %v1584 = vcombine.low %v1559, %v1567
    %v1585 = vcombine.high %v1559, %v1567
    %v1587 = vunpack.c.l.s4 1934713408
    %v1588 = vunpack.c.0.s8 %v1587
    %v1589 = vlaneseq
    %v1590 = vshrl.u32 %v1589, 7
    %v1591 = vsub.s32 %v1588, %v1590
    %v1592 = vrot.slane %v1584, %v1591
    %v1594 = vunpack.c.l.s4 1934713408
    %v1595 = vunpack.c.0.s8 %v1594
    %v1596 = vlaneseq
    %v1597 = vshrl.u32 %v1596, 7
    %v1598 = vsub.s32 %v1595, %v1597
    %v1599 = vrot.slane %v1585, %v1598
    %v1600 = vcombine.low %v1576, %v1592
    %v1601 = vcombine.high %v1576, %v1592
    %v1602 = vcombine.low %v1583, %v1599
    %v1603 = vcombine.high %v1583, %v1599
    %v1604 = vcombine.low %v1508, %v1515
    %v1606 = vunpack.c.l.s4 1983009808
    %v1607 = vunpack.c.0.s8 %v1606
    %v1608 = vlaneseq
    %v1609 = vshrl.u32 %v1608, 7
    %v1610 = vsub.s32 %v1607, %v1609
    %v1611 = vrot.slane %v1604, %v1610
    %v1612 = vcombine.low %v1532, %v1533
    %v1614 = vunpack.c.l.s4 1983009808
    %v1615 = vunpack.c.0.s8 %v1614
    %v1616 = vlaneseq
    %v1617 = vshrl.u32 %v1616, 7
    %v1618 = vsub.s32 %v1615, %v1617
    %v1619 = vrot.slane %v1612, %v1618
    %v1620 = vcombine.low %v1524, %v1531
    %v1622 = vunpack.c.l.s4 1983009808
    %v1623 = vunpack.c.0.s8 %v1622
    %v1624 = vlaneseq
    %v1625 = vshrl.u32 %v1624, 7
    %v1626 = vsub.s32 %v1623, %v1625
    %v1627 = vrot.slane %v1620, %v1626
    %v1628 = vcombine.low %v1534, %v1535
    %v1630 = vunpack.c.l.s4 1983009808
    %v1631 = vunpack.c.0.s8 %v1630
    %v1632 = vlaneseq
    %v1633 = vshrl.u32 %v1632, 7
    %v1634 = vsub.s32 %v1631, %v1633
    %v1635 = vrot.slane %v1628, %v1634
    %v1636 = vcombine.low %v1611, %v1619
    %v1637 = vcombine.high %v1611, %v1619
    %v1639 = vunpack.c.l.s4 1934713408
    %v1640 = vunpack.c.0.s8 %v1639
    %v1641 = vlaneseq
    %v1642 = vshrl.u32 %v1641, 7
    %v1643 = vsub.s32 %v1640, %v1642
    %v1644 = vrot.slane %v1636, %v1643
    %v1646 = vunpack.c.l.s4 1934713408
    %v1647 = vunpack.c.0.s8 %v1646
    %v1648 = vlaneseq
    %v1649 = vshrl.u32 %v1648, 7
    %v1650 = vsub.s32 %v1647, %v1649
    %v1651 = vrot.slane %v1637, %v1650
    %v1652 = vcombine.low %v1627, %v1635
    %v1653 = vcombine.high %v1627, %v1635
    %v1655 = vunpack.c.l.s4 1934713408
    %v1656 = vunpack.c.0.s8 %v1655
    %v1657 = vlaneseq
    %v1658 = vshrl.u32 %v1657, 7
    %v1659 = vsub.s32 %v1656, %v1658
    %v1660 = vrot.slane %v1652, %v1659
    %v1662 = vunpack.c.l.s4 1934713408
    %v1663 = vunpack.c.0.s8 %v1662
    %v1664 = vlaneseq
    %v1665 = vshrl.u32 %v1664, 7
    %v1666 = vsub.s32 %v1663, %v1665
    %v1667 = vrot.slane %v1653, %v1666
    %v1668 = vcombine.low %v1644, %v1660
    %v1669 = vcombine.high %v1644, %v1660
    %v1670 = vcombine.low %v1651, %v1667
    %v1671 = vcombine.high %v1651, %v1667
    %1674 = vrot.lane.b32.xlu0 %v1601, 8
    %v1675 = vpop.permute.xlu0 %1674
    %1676 = vrot.lane.b32.xlu0 %v1669, 8
    %v1677 = vpop.permute.xlu0 %1676
    %1682 = vrot.lane.b32.xlu0 %v1602, 16
    %v1683 = vpop.permute.xlu0 %1682
    %1684 = vrot.lane.b32.xlu0 %v1670, 16
    %v1685 = vpop.permute.xlu0 %1684
    %1690 = vrot.lane.b32.xlu0 %v1603, 24
    %v1691 = vpop.permute.xlu0 %1690
    %1692 = vrot.lane.b32.xlu0 %v1671, 24
    %v1693 = vpop.permute.xlu0 %1692
    %v1696 = vsel %vm1124, %v1600, %v1675
    %v1697 = vsel %vm1124, %v1668, %v1677
    %vm1698 = vcmask 130048
    %v1699 = vsel %vm1698, %v1696, %v1683
    %v1700 = vsel %vm1698, %v1697, %v1685
    %vm1701 = vcmask 195584
    %v1702 = vsel %vm1701, %v1699, %v1691
    %v1703 = vsel %vm1701, %v1700, %v1693
    %v1704 = vld [vmem:[%s4] sm:$0xf]
    %v1705 = vld [vmem:[%s4 + $0xc] sm:$0xf]
    %v1706 = vld [vmem:[%s4 + $0x18] sm:$0xf]
    %v1707 = vld [vmem:[%s4 + $0x24] sm:$0xf]
    %v1708 = vpack.c.bf16 %v1703, %v1702
    %v1709 = vld [vmem:[#allocation10 + $0x1] sm:$0x1]
    %v1710 = vlaneseq
    %v1711 = vshrl.u32 %v1710, 7
    %v1712 = vsub.s32 0, %v1711
    %v1713 = vrot.slane %v1709, %v1712
    %v1718 = vunpack.c.l.b16 %v1704
    %v1719 = vunpack.c.l.b16 %v1705
    %v1720 = vunpack.c.l.b16 %v1706
    %v1721 = vunpack.c.l.b16 %v1707
    %v1722 = vpack.c.b16 %v1719, %v1718
    %v1723 = vpack.c.b16 %v1721, %v1720
    %1724 = vrot.lane.b32.xlu0 %v1722, 32
    %v1725 = vpop.permute.xlu0 %1724
    %1726 = vrot.lane.b32.xlu0 %v1723, 32
    %v1727 = vpop.permute.xlu0 %1726
    %v1731 = vsel %vm98, %v1708, 0
    %1733 = vmatprep.subr.bf16.mxu0 0
    %1734 = vmatpush1.bf16.msra.mxu0 %v1725
    %1735 = vmatprep.subr.bf16.mxu0 0
    %1736 = vmatpush1.bf16.msra.mxu0 %v1727
    %1737 = vmatprep.subr.bf16.mxu0 0
    %1738 = vmatpush1.bf16.msra.mxu0 0
    %1739 = vmatprep.subr.bf16.mxu0 0
    %1740 = vmatpush1.bf16.msra.mxu0 0
    %1741 = vmatprep.subr.bf16.mxu0 0
    %1742 = vmatpush1.bf16.msra.mxu0 0
    %1743 = vmatprep.subr.bf16.mxu0 0
    %1744 = vmatpush1.bf16.msra.mxu0 0
    %1745 = vmatprep.subr.bf16.mxu0 0
    %1746 = vmatpush1.bf16.msra.mxu0 0
    %1747 = vmatprep.subr.bf16.mxu0 0
    %1748 = vmatpush1.bf16.msra.mxu0 0
    %1749 = vmatprep.subr.bf16.mxu0 0
    %1750 = vmatpush1.bf16.msra.mxu0 0
    %1751 = vmatprep.subr.bf16.mxu0 0
    %1752 = vmatpush1.bf16.msra.mxu0 0
    %1753 = vmatprep.subr.bf16.mxu0 0
    %1754 = vmatpush1.bf16.msra.mxu0 0
    %1755 = vmatprep.subr.bf16.mxu0 0
    %1756 = vmatpush1.bf16.msra.mxu0 0
    %1757 = vmatprep.subr.bf16.mxu0 0
    %1758 = vmatpush1.bf16.msra.mxu0 0
    %1759 = vmatprep.subr.bf16.mxu0 0
    %1760 = vmatpush1.bf16.msra.mxu0 0
    %1761 = vmatprep.subr.bf16.mxu0 0
    %1762 = vmatpush1.bf16.msra.mxu0 0
    %1763 = vmatprep.subr.bf16.mxu0 0
    %1764 = vmatpush1.bf16.msra.mxu0 0
    %1765 = vmatprep.mubr.bf16.mxu0 0
    %1766 = vmatmul.mubr.bf16.gmra.mrb[0].mxu0 %v1731
    %v1767 = vpop.f32.mrb[0].mxu0
    %v1768 = vadd.f32 %v1713, %v1767
    %v1769 = vpop.f32.mrb[0].mxu0
    %v1770 = vpop.f32.mrb[0].mxu0
    %v1771 = vadd.f32 %v1713, %v1770
    %v1772 = vpop.f32.mrb[0].mxu0
    %1773 = vdwg.mxu0
    %v1774 = vadd.f32 %v96, %v1768
    %v1775 = vadd.f32 %v97, %v1771
    %v1776 = vsel %vm98, %v1774, 0.0
    %1777 = vadd.xlane.f32.xlu0 %v1776
    %v1778 = vpop.xlane.xlu0 %1777
    %v1779 = vsel %vm98, %v1775, 0.0
    %1780 = vadd.xlane.f32.xlu0 %v1779
    %v1781 = vpop.xlane.xlu0 %1780
    %v1782 = vmul.f32 %v1778, %v105
    %v1783 = vmul.f32 %v1781, %v105
    %v1784 = vsub.f32 %v1774, %v1782
    %v1785 = vsub.f32 %v1775, %v1783
    %v1786 = vmul.f32 %v1784, %v1784
    %v1787 = vmul.f32 %v1785, %v1785
    %v1788 = vsel %vm98, %v1786, 0.0
    %1789 = vadd.xlane.f32.xlu0 %v1788
    %v1790 = vpop.xlane.xlu0 %1789
    %v1791 = vsel %vm98, %v1787, 0.0
    %1792 = vadd.xlane.f32.xlu0 %v1791
    %v1793 = vpop.xlane.xlu0 %1792
    %v1794 = vmul.f32 %v1790, 0.032258064
    %v1795 = vmul.f32 %v1793, 0.032258064
    %v1796 = vld [vmem:[#allocation10 + $0x9] sm:$0x1]
    %v1797 = vlaneseq
    %v1798 = vshrl.u32 %v1797, 7
    %v1799 = vsub.s32 0, %v1798
    %v1800 = vrot.slane %v1796, %v1799
    %v1801 = vmul.f32 %v1800, %v1784
    %v1802 = vmul.f32 %v1800, %v1785
    %v1803 = vrsqrt.pop %v1794
    %v1804 = vmul.f32 %v1794, %v1803
    %vm1805 = vcmp.eq.f32.partialorder %v1794, inf
    %v1806 = vsel %vm1805, %v1794, %v1804
    %vm1807 = vcmp.eq.f32.partialorder %v1794, 0.0
    %v1808 = vand.u32 %v1794, 2147483648
    %v1809 = vsel %vm1807, %v1808, %v1806
    %v1810 = vrsqrt.pop %v1795
    %v1811 = vmul.f32 %v1795, %v1810
    %vm1812 = vcmp.eq.f32.partialorder %v1795, inf
    %v1813 = vsel %vm1812, %v1795, %v1811
    %vm1814 = vcmp.eq.f32.partialorder %v1795, 0.0
    %v1815 = vand.u32 %v1795, 2147483648
    %v1816 = vsel %vm1814, %v1815, %v1813
    %v1817 = vadd.f32 %v1809, 1e-06
    %v1818 = vadd.f32 %v1816, 1e-06
    %v1819 = vrcp.pop %v1817
    %v1820 = vmul.f32 %v1801, %v1819
    %v1821 = vrcp.pop %v1818
    %v1822 = vmul.f32 %v1802, %v1821
    %v1823 = vld [vmem:[#allocation10 + $0xa] sm:$0x1]
    %v1824 = vlaneseq
    %v1825 = vshrl.u32 %v1824, 7
    %v1826 = vsub.s32 0, %v1825
    %v1827 = vrot.slane %v1823, %v1826
    %v1828 = vadd.f32 %v1820, %v1827
    %v1829 = vadd.f32 %v1822, %v1827
    %v1830 = vld [vmem:[%s4 + $0x4] sm:$0xf]
    %v1831 = vld [vmem:[%s4 + $0x10] sm:$0xf]
    %v1832 = vld [vmem:[%s4 + $0x1c] sm:$0xf]
    %v1833 = vld [vmem:[%s4 + $0x28] sm:$0xf]
    %v1834 = vpack.c.bf16 %v1829, %v1828
    %v1835 = vld [vmem:[#allocation10 + $0x2] sm:$0x1]
    %v1836 = vlaneseq
    %v1837 = vshrl.u32 %v1836, 7
    %v1838 = vsub.s32 0, %v1837
    %v1839 = vrot.slane %v1835, %v1838
    %v1844 = vunpack.c.l.b16 %v1830
    %v1845 = vunpack.c.l.b16 %v1831
    %v1846 = vunpack.c.l.b16 %v1832
    %v1847 = vunpack.c.l.b16 %v1833
    %v1848 = vpack.c.b16 %v1845, %v1844
    %v1849 = vpack.c.b16 %v1847, %v1846
    %v1853 = vsel %vm98, %v1834, 0
    %1855 = vmatprep.subr.bf16.mxu0 0
    %1856 = vmatpush1.bf16.msra.mxu0 %v1848
    %1857 = vmatprep.subr.bf16.mxu0 0
    %1858 = vmatpush1.bf16.msra.mxu0 %v1849
    %1859 = vmatprep.subr.bf16.mxu0 0
    %1860 = vmatpush1.bf16.msra.mxu0 0
    %1861 = vmatprep.subr.bf16.mxu0 0
    %1862 = vmatpush1.bf16.msra.mxu0 0
    %1863 = vmatprep.subr.bf16.mxu0 0
    %1864 = vmatpush1.bf16.msra.mxu0 0
    %1865 = vmatprep.subr.bf16.mxu0 0
    %1866 = vmatpush1.bf16.msra.mxu0 0
    %1867 = vmatprep.subr.bf16.mxu0 0
    %1868 = vmatpush1.bf16.msra.mxu0 0
    %1869 = vmatprep.subr.bf16.mxu0 0
    %1870 = vmatpush1.bf16.msra.mxu0 0
    %1871 = vmatprep.subr.bf16.mxu0 0
    %1872 = vmatpush1.bf16.msra.mxu0 0
    %1873 = vmatprep.subr.bf16.mxu0 0
    %1874 = vmatpush1.bf16.msra.mxu0 0
    %1875 = vmatprep.subr.bf16.mxu0 0
    %1876 = vmatpush1.bf16.msra.mxu0 0
    %1877 = vmatprep.subr.bf16.mxu0 0
    %1878 = vmatpush1.bf16.msra.mxu0 0
    %1879 = vmatprep.subr.bf16.mxu0 0
    %1880 = vmatpush1.bf16.msra.mxu0 0
    %1881 = vmatprep.subr.bf16.mxu0 0
    %1882 = vmatpush1.bf16.msra.mxu0 0
    %1883 = vmatprep.subr.bf16.mxu0 0
    %1884 = vmatpush1.bf16.msra.mxu0 0
    %1885 = vmatprep.subr.bf16.mxu0 0
    %1886 = vmatpush1.bf16.msra.mxu0 0
    %1887 = vmatprep.mubr.bf16.mxu0 0
    %1888 = vmatmul.mubr.bf16.gmra.mrb[0].mxu0 %v1853
    %v1889 = vpop.f32.mrb[0].mxu0
    %v1890 = vadd.f32 %v1839, %v1889
    %v1891 = vpop.f32.mrb[0].mxu0
    %v1892 = vpop.f32.mrb[0].mxu0
    %v1893 = vadd.f32 %v1839, %v1892
    %v1894 = vpop.f32.mrb[0].mxu0
    %1895 = vdwg.mxu0
    %v1896 = vld [vmem:[#allocation5] sm:$0xff]
    %v1897 = vld [vmem:[#allocation5 + $0x8] sm:$0xff]
    %v1898 = vpack.c.bf16 %v1897, %v1896
    %v1899 = vld [vmem:[#allocation10 + $0x3] sm:$0x1]
    %v1900 = vlaneseq
    %v1901 = vshrl.u32 %v1900, 7
    %v1902 = vsub.s32 0, %v1901
    %v1903 = vrot.slane %v1899, %v1902
    %1904 = vrot.lane.b32.xlu0 %v1848, 96
    %v1905 = vpop.permute.xlu0 %1904
    %1906 = vrot.lane.b32.xlu0 %v1849, 96
    %v1907 = vpop.permute.xlu0 %1906
    %v1911 = vsel %vm98, %v1898, 0
    %1913 = vmatprep.subr.bf16.mxu0 0
    %1914 = vmatpush1.bf16.msra.mxu0 %v1905
    %1915 = vmatprep.subr.bf16.mxu0 0
    %1916 = vmatpush1.bf16.msra.mxu0 %v1907
    %1917 = vmatprep.subr.bf16.mxu0 0
    %1918 = vmatpush1.bf16.msra.mxu0 0
    %1919 = vmatprep.subr.bf16.mxu0 0
    %1920 = vmatpush1.bf16.msra.mxu0 0
    %1921 = vmatprep.subr.bf16.mxu0 0
    %1922 = vmatpush1.bf16.msra.mxu0 0
    %1923 = vmatprep.subr.bf16.mxu0 0
    %1924 = vmatpush1.bf16.msra.mxu0 0
    %1925 = vmatprep.subr.bf16.mxu0 0
    %1926 = vmatpush1.bf16.msra.mxu0 0
    %1927 = vmatprep.subr.bf16.mxu0 0
    %1928 = vmatpush1.bf16.msra.mxu0 0
    %1929 = vmatprep.subr.bf16.mxu0 0
    %1930 = vmatpush1.bf16.msra.mxu0 0
    %1931 = vmatprep.subr.bf16.mxu0 0
    %1932 = vmatpush1.bf16.msra.mxu0 0
    %1933 = vmatprep.subr.bf16.mxu0 0
    %1934 = vmatpush1.bf16.msra.mxu0 0
    %1935 = vmatprep.subr.bf16.mxu0 0
    %1936 = vmatpush1.bf16.msra.mxu0 0
    %1937 = vmatprep.subr.bf16.mxu0 0
    %1938 = vmatpush1.bf16.msra.mxu0 0
    %1939 = vmatprep.subr.bf16.mxu0 0
    %1940 = vmatpush1.bf16.msra.mxu0 0
    %1941 = vmatprep.subr.bf16.mxu0 0
    %1942 = vmatpush1.bf16.msra.mxu0 0
    %1943 = vmatprep.subr.bf16.mxu0 0
    %1944 = vmatpush1.bf16.msra.mxu0 0
    %1945 = vmatprep.mubr.bf16.mxu0 0
    %1946 = vmatmul.mubr.bf16.gmra.mrb[0].mxu0 %v1911
    %v1947 = vpop.f32.mrb[0].mxu0
    %v1948 = vadd.f32 %v1903, %v1947
    %v1949 = vpop.f32.mrb[0].mxu0
    %v1950 = vpop.f32.mrb[0].mxu0
    %v1951 = vadd.f32 %v1903, %v1950
    %v1952 = vpop.f32.mrb[0].mxu0
    %1953 = vdwg.mxu0
    %v1954 = vld [vmem:[#allocation8] sm:$0xff]
    %v1955 = vld [vmem:[#allocation8 + $0x8] sm:$0xff]
    %v1956 = vld [vmem:[#allocation8 + $0x10] sm:$0xff]
    %v1957 = vld [vmem:[#allocation8 + $0x18] sm:$0xff]
    %v1958 = vld [vmem:[#allocation8 + $0x20] sm:$0xff]
    %v1959 = vld [vmem:[#allocation8 + $0x28] sm:$0xff]
    %v1960 = vld [vmem:[#allocation8 + $0x30] sm:$0xff]
    %v1961 = vld [vmem:[#allocation8 + $0x38] sm:$0xff]
    %1964 = vrot.lane.b32.xlu0 %v1890, 120
    %v1965 = vpop.permute.xlu0 %1964
    %1966 = vrot.lane.b32.xlu0 %v1893, 120
    %v1967 = vpop.permute.xlu0 %1966
    %1970 = vrot.lane.b32.xlu0 %v1890, 112
    %v1971 = vpop.permute.xlu0 %1970
    %1972 = vrot.lane.b32.xlu0 %v1893, 112
    %v1973 = vpop.permute.xlu0 %1972
    %1976 = vrot.lane.b32.xlu0 %v1890, 104
    %v1977 = vpop.permute.xlu0 %1976
    %1978 = vrot.lane.b32.xlu0 %v1893, 104
    %v1979 = vpop.permute.xlu0 %1978
    %v1982 = vcombine.low %v1890, %v1971
    %v1983 = vcombine.high %v1890, %v1971
    %v1985 = vunpack.c.l.s4 1983009808
    %v1986 = vunpack.c.0.s8 %v1985
    %v1987 = vlaneseq
    %v1988 = vshrl.u32 %v1987, 7
    %v1989 = vsub.s32 %v1986, %v1988
    %v1990 = vrot.slane %v1982, %v1989
    %v1992 = vunpack.c.l.s4 1983009808
    %v1993 = vunpack.c.0.s8 %v1992
    %v1994 = vlaneseq
    %v1995 = vshrl.u32 %v1994, 7
    %v1996 = vsub.s32 %v1993, %v1995
    %v1997 = vrot.slane %v1983, %v1996
    %v1998 = vcombine.low %v1965, %v1977
    %v1999 = vcombine.high %v1965, %v1977
    %v2001 = vunpack.c.l.s4 1983009808
    %v2002 = vunpack.c.0.s8 %v2001
    %v2003 = vlaneseq
    %v2004 = vshrl.u32 %v2003, 7
    %v2005 = vsub.s32 %v2002, %v2004
    %v2006 = vrot.slane %v1998, %v2005
    %v2008 = vunpack.c.l.s4 1983009808
    %v2009 = vunpack.c.0.s8 %v2008
    %v2010 = vlaneseq
    %v2011 = vshrl.u32 %v2010, 7
    %v2012 = vsub.s32 %v2009, %v2011
    %v2013 = vrot.slane %v1999, %v2012
    %v2014 = vcombine.low %v1990, %v2006
    %v2015 = vcombine.high %v1990, %v2006
    %v2017 = vunpack.c.l.s4 1934713408
    %v2018 = vunpack.c.0.s8 %v2017
    %v2019 = vlaneseq
    %v2020 = vshrl.u32 %v2019, 7
    %v2021 = vsub.s32 %v2018, %v2020
    %v2022 = vrot.slane %v2014, %v2021
    %v2024 = vunpack.c.l.s4 1934713408
    %v2025 = vunpack.c.0.s8 %v2024
    %v2026 = vlaneseq
    %v2027 = vshrl.u32 %v2026, 7
    %v2028 = vsub.s32 %v2025, %v2027
    %v2029 = vrot.slane %v2015, %v2028
    %v2030 = vcombine.low %v1997, %v2013
    %v2031 = vcombine.high %v1997, %v2013
    %v2033 = vunpack.c.l.s4 1934713408
    %v2034 = vunpack.c.0.s8 %v2033
    %v2035 = vlaneseq
    %v2036 = vshrl.u32 %v2035, 7
    %v2037 = vsub.s32 %v2034, %v2036
    %v2038 = vrot.slane %v2030, %v2037
    %v2040 = vunpack.c.l.s4 1934713408
    %v2041 = vunpack.c.0.s8 %v2040
    %v2042 = vlaneseq
    %v2043 = vshrl.u32 %v2042, 7
    %v2044 = vsub.s32 %v2041, %v2043
    %v2045 = vrot.slane %v2031, %v2044
    %v2046 = vcombine.high %v2022, 0.0
    %v2047 = vcombine.high %v2029, 0.0
    %v2048 = vcombine.high %v2038, 0.0
    %v2049 = vcombine.high %v2045, 0.0
    %v2050 = vcombine.low %v1893, %v1973
    %v2051 = vcombine.high %v1893, %v1973
    %v2053 = vunpack.c.l.s4 1983009808
    %v2054 = vunpack.c.0.s8 %v2053
    %v2055 = vlaneseq
    %v2056 = vshrl.u32 %v2055, 7
    %v2057 = vsub.s32 %v2054, %v2056
    %v2058 = vrot.slane %v2050, %v2057
    %v2060 = vunpack.c.l.s4 1983009808
    %v2061 = vunpack.c.0.s8 %v2060
    %v2062 = vlaneseq
    %v2063 = vshrl.u32 %v2062, 7
    %v2064 = vsub.s32 %v2061, %v2063
    %v2065 = vrot.slane %v2051, %v2064
    %v2066 = vcombine.low %v1967, %v1979
    %v2067 = vcombine.high %v1967, %v1979
    %v2069 = vunpack.c.l.s4 1983009808
    %v2070 = vunpack.c.0.s8 %v2069
    %v2071 = vlaneseq
    %v2072 = vshrl.u32 %v2071, 7
    %v2073 = vsub.s32 %v2070, %v2072
    %v2074 = vrot.slane %v2066, %v2073
    %v2076 = vunpack.c.l.s4 1983009808
    %v2077 = vunpack.c.0.s8 %v2076
    %v2078 = vlaneseq
    %v2079 = vshrl.u32 %v2078, 7
    %v2080 = vsub.s32 %v2077, %v2079
    %v2081 = vrot.slane %v2067, %v2080
    %v2082 = vcombine.low %v2058, %v2074
    %v2083 = vcombine.high %v2058, %v2074
    %v2085 = vunpack.c.l.s4 1934713408
    %v2086 = vunpack.c.0.s8 %v2085
    %v2087 = vlaneseq
    %v2088 = vshrl.u32 %v2087, 7
    %v2089 = vsub.s32 %v2086, %v2088
    %v2090 = vrot.slane %v2082, %v2089
    %v2092 = vunpack.c.l.s4 1934713408
    %v2093 = vunpack.c.0.s8 %v2092
    %v2094 = vlaneseq
    %v2095 = vshrl.u32 %v2094, 7
    %v2096 = vsub.s32 %v2093, %v2095
    %v2097 = vrot.slane %v2083, %v2096
    %v2098 = vcombine.low %v2065, %v2081
    %v2099 = vcombine.high %v2065, %v2081
    %v2101 = vunpack.c.l.s4 1934713408
    %v2102 = vunpack.c.0.s8 %v2101
    %v2103 = vlaneseq
    %v2104 = vshrl.u32 %v2103, 7
    %v2105 = vsub.s32 %v2102, %v2104
    %v2106 = vrot.slane %v2098, %v2105
    %v2108 = vunpack.c.l.s4 1934713408
    %v2109 = vunpack.c.0.s8 %v2108
    %v2110 = vlaneseq
    %v2111 = vshrl.u32 %v2110, 7
    %v2112 = vsub.s32 %v2109, %v2111
    %v2113 = vrot.slane %v2099, %v2112
    %v2114 = vcombine.high %v2090, 0.0
    %v2115 = vcombine.high %v2097, 0.0
    %v2116 = vcombine.high %v2106, 0.0
    %v2117 = vcombine.high %v2113, 0.0
    %v2118 = vcombine.low %v2022, %v2029
    %v2120 = vunpack.c.l.s4 1983009808
    %v2121 = vunpack.c.0.s8 %v2120
    %v2122 = vlaneseq
    %v2123 = vshrl.u32 %v2122, 7
    %v2124 = vsub.s32 %v2121, %v2123
    %v2125 = vrot.slane %v2118, %v2124
    %v2126 = vcombine.low %v2046, %v2047
    %v2128 = vunpack.c.l.s4 1983009808
    %v2129 = vunpack.c.0.s8 %v2128
    %v2130 = vlaneseq
    %v2131 = vshrl.u32 %v2130, 7
    %v2132 = vsub.s32 %v2129, %v2131
    %v2133 = vrot.slane %v2126, %v2132
    %v2134 = vcombine.low %v2038, %v2045
    %v2136 = vunpack.c.l.s4 1983009808
    %v2137 = vunpack.c.0.s8 %v2136
    %v2138 = vlaneseq
    %v2139 = vshrl.u32 %v2138, 7
    %v2140 = vsub.s32 %v2137, %v2139
    %v2141 = vrot.slane %v2134, %v2140
    %v2142 = vcombine.low %v2048, %v2049
    %v2144 = vunpack.c.l.s4 1983009808
    %v2145 = vunpack.c.0.s8 %v2144
    %v2146 = vlaneseq
    %v2147 = vshrl.u32 %v2146, 7
    %v2148 = vsub.s32 %v2145, %v2147
    %v2149 = vrot.slane %v2142, %v2148
    %v2150 = vcombine.low %v2125, %v2133
    %v2151 = vcombine.high %v2125, %v2133
    %v2153 = vunpack.c.l.s4 1934713408
    %v2154 = vunpack.c.0.s8 %v2153
    %v2155 = vlaneseq
    %v2156 = vshrl.u32 %v2155, 7
    %v2157 = vsub.s32 %v2154, %v2156
    %v2158 = vrot.slane %v2150, %v2157
    %v2160 = vunpack.c.l.s4 1934713408
    %v2161 = vunpack.c.0.s8 %v2160
    %v2162 = vlaneseq
    %v2163 = vshrl.u32 %v2162, 7
    %v2164 = vsub.s32 %v2161, %v2163
    %v2165 = vrot.slane %v2151, %v2164
    %v2166 = vcombine.low %v2141, %v2149
    %v2167 = vcombine.high %v2141, %v2149
    %v2169 = vunpack.c.l.s4 1934713408
    %v2170 = vunpack.c.0.s8 %v2169
    %v2171 = vlaneseq
    %v2172 = vshrl.u32 %v2171, 7
    %v2173 = vsub.s32 %v2170, %v2172
    %v2174 = vrot.slane %v2166, %v2173
    %v2176 = vunpack.c.l.s4 1934713408
    %v2177 = vunpack.c.0.s8 %v2176
    %v2178 = vlaneseq
    %v2179 = vshrl.u32 %v2178, 7
    %v2180 = vsub.s32 %v2177, %v2179
    %v2181 = vrot.slane %v2167, %v2180
    %v2182 = vcombine.low %v2158, %v2174
    %v2183 = vcombine.high %v2158, %v2174
    %v2184 = vcombine.low %v2165, %v2181
    %v2185 = vcombine.high %v2165, %v2181
    %v2186 = vcombine.low %v2090, %v2097
    %v2188 = vunpack.c.l.s4 1983009808
    %v2189 = vunpack.c.0.s8 %v2188
    %v2190 = vlaneseq
    %v2191 = vshrl.u32 %v2190, 7
    %v2192 = vsub.s32 %v2189, %v2191
    %v2193 = vrot.slane %v2186, %v2192
    %v2194 = vcombine.low %v2114, %v2115
    %v2196 = vunpack.c.l.s4 1983009808
    %v2197 = vunpack.c.0.s8 %v2196
    %v2198 = vlaneseq
    %v2199 = vshrl.u32 %v2198, 7
    %v2200 = vsub.s32 %v2197, %v2199
    %v2201 = vrot.slane %v2194, %v2200
    %v2202 = vcombine.low %v2106, %v2113
    %v2204 = vunpack.c.l.s4 1983009808
    %v2205 = vunpack.c.0.s8 %v2204
    %v2206 = vlaneseq
    %v2207 = vshrl.u32 %v2206, 7
    %v2208 = vsub.s32 %v2205, %v2207
    %v2209 = vrot.slane %v2202, %v2208
    %v2210 = vcombine.low %v2116, %v2117
    %v2212 = vunpack.c.l.s4 1983009808
    %v2213 = vunpack.c.0.s8 %v2212
    %v2214 = vlaneseq
    %v2215 = vshrl.u32 %v2214, 7
    %v2216 = vsub.s32 %v2213, %v2215
    %v2217 = vrot.slane %v2210, %v2216
    %v2218 = vcombine.low %v2193, %v2201
    %v2219 = vcombine.high %v2193, %v2201
    %v2221 = vunpack.c.l.s4 1934713408
    %v2222 = vunpack.c.0.s8 %v2221
    %v2223 = vlaneseq
    %v2224 = vshrl.u32 %v2223, 7
    %v2225 = vsub.s32 %v2222, %v2224
    %v2226 = vrot.slane %v2218, %v2225
    %v2228 = vunpack.c.l.s4 1934713408
    %v2229 = vunpack.c.0.s8 %v2228
    %v2230 = vlaneseq
    %v2231 = vshrl.u32 %v2230, 7
    %v2232 = vsub.s32 %v2229, %v2231
    %v2233 = vrot.slane %v2219, %v2232
    %v2234 = vcombine.low %v2209, %v2217
    %v2235 = vcombine.high %v2209, %v2217
    %v2237 = vunpack.c.l.s4 1934713408
    %v2238 = vunpack.c.0.s8 %v2237
    %v2239 = vlaneseq
    %v2240 = vshrl.u32 %v2239, 7
    %v2241 = vsub.s32 %v2238, %v2240
    %v2242 = vrot.slane %v2234, %v2241
    %v2244 = vunpack.c.l.s4 1934713408
    %v2245 = vunpack.c.0.s8 %v2244
    %v2246 = vlaneseq
    %v2247 = vshrl.u32 %v2246, 7
    %v2248 = vsub.s32 %v2245, %v2247
    %v2249 = vrot.slane %v2235, %v2248
    %v2250 = vcombine.low %v2226, %v2242
    %v2251 = vcombine.high %v2226, %v2242
    %v2252 = vcombine.low %v2233, %v2249
    %v2253 = vcombine.high %v2233, %v2249
    %v2254 = vpack.c.bf16 %v2183, %v2182
    %v2255 = vpack.c.bf16 %v2185, %v2184
    %v2256 = vpack.c.bf16 %v2251, %v2250
    %v2257 = vpack.c.bf16 %v2253, %v2252
    %2260 = vrot.lane.b32.xlu0 %v1948, 120
    %v2261 = vpop.permute.xlu0 %2260
    %2262 = vrot.lane.b32.xlu0 %v1951, 120
    %v2263 = vpop.permute.xlu0 %2262
    %2266 = vrot.lane.b32.xlu0 %v1948, 112
    %v2267 = vpop.permute.xlu0 %2266
    %2268 = vrot.lane.b32.xlu0 %v1951, 112
    %v2269 = vpop.permute.xlu0 %2268
    %2272 = vrot.lane.b32.xlu0 %v1948, 104
    %v2273 = vpop.permute.xlu0 %2272
    %2274 = vrot.lane.b32.xlu0 %v1951, 104
    %v2275 = vpop.permute.xlu0 %2274
    %v2278 = vcombine.low %v1948, %v2267
    %v2279 = vcombine.high %v1948, %v2267
    %v2281 = vunpack.c.l.s4 1983009808
    %v2282 = vunpack.c.0.s8 %v2281
    %v2283 = vlaneseq
    %v2284 = vshrl.u32 %v2283, 7
    %v2285 = vsub.s32 %v2282, %v2284
    %v2286 = vrot.slane %v2278, %v2285
    %v2288 = vunpack.c.l.s4 1983009808
    %v2289 = vunpack.c.0.s8 %v2288
    %v2290 = vlaneseq
    %v2291 = vshrl.u32 %v2290, 7
    %v2292 = vsub.s32 %v2289, %v2291
    %v2293 = vrot.slane %v2279, %v2292
    %v2294 = vcombine.low %v2261, %v2273
    %v2295 = vcombine.high %v2261, %v2273
    %v2297 = vunpack.c.l.s4 1983009808
    %v2298 = vunpack.c.0.s8 %v2297
    %v2299 = vlaneseq
    %v2300 = vshrl.u32 %v2299, 7
    %v2301 = vsub.s32 %v2298, %v2300
    %v2302 = vrot.slane %v2294, %v2301
    %v2304 = vunpack.c.l.s4 1983009808
    %v2305 = vunpack.c.0.s8 %v2304
    %v2306 = vlaneseq
    %v2307 = vshrl.u32 %v2306, 7
    %v2308 = vsub.s32 %v2305, %v2307
    %v2309 = vrot.slane %v2295, %v2308
    %v2310 = vcombine.low %v2286, %v2302
    %v2311 = vcombine.high %v2286, %v2302
    %v2313 = vunpack.c.l.s4 1934713408
    %v2314 = vunpack.c.0.s8 %v2313
    %v2315 = vlaneseq
    %v2316 = vshrl.u32 %v2315, 7
    %v2317 = vsub.s32 %v2314, %v2316
    %v2318 = vrot.slane %v2310, %v2317
    %v2320 = vunpack.c.l.s4 1934713408
    %v2321 = vunpack.c.0.s8 %v2320
    %v2322 = vlaneseq
    %v2323 = vshrl.u32 %v2322, 7
    %v2324 = vsub.s32 %v2321, %v2323
    %v2325 = vrot.slane %v2311, %v2324
    %v2326 = vcombine.low %v2293, %v2309
    %v2327 = vcombine.high %v2293, %v2309
    %v2329 = vunpack.c.l.s4 1934713408
    %v2330 = vunpack.c.0.s8 %v2329
    %v2331 = vlaneseq
    %v2332 = vshrl.u32 %v2331, 7
    %v2333 = vsub.s32 %v2330, %v2332
    %v2334 = vrot.slane %v2326, %v2333
    %v2336 = vunpack.c.l.s4 1934713408
    %v2337 = vunpack.c.0.s8 %v2336
    %v2338 = vlaneseq
    %v2339 = vshrl.u32 %v2338, 7
    %v2340 = vsub.s32 %v2337, %v2339
    %v2341 = vrot.slane %v2327, %v2340
    %v2342 = vcombine.high %v2318, 0.0
    %v2343 = vcombine.high %v2325, 0.0
    %v2344 = vcombine.high %v2334, 0.0
    %v2345 = vcombine.high %v2341, 0.0
    %v2346 = vcombine.low %v1951, %v2269
    %v2347 = vcombine.high %v1951, %v2269
    %v2349 = vunpack.c.l.s4 1983009808
    %v2350 = vunpack.c.0.s8 %v2349
    %v2351 = vlaneseq
    %v2352 = vshrl.u32 %v2351, 7
    %v2353 = vsub.s32 %v2350, %v2352
    %v2354 = vrot.slane %v2346, %v2353
    %v2356 = vunpack.c.l.s4 1983009808
    %v2357 = vunpack.c.0.s8 %v2356
    %v2358 = vlaneseq
    %v2359 = vshrl.u32 %v2358, 7
    %v2360 = vsub.s32 %v2357, %v2359
    %v2361 = vrot.slane %v2347, %v2360
    %v2362 = vcombine.low %v2263, %v2275
    %v2363 = vcombine.high %v2263, %v2275
    %v2365 = vunpack.c.l.s4 1983009808
    %v2366 = vunpack.c.0.s8 %v2365
    %v2367 = vlaneseq
    %v2368 = vshrl.u32 %v2367, 7
    %v2369 = vsub.s32 %v2366, %v2368
    %v2370 = vrot.slane %v2362, %v2369
    %v2372 = vunpack.c.l.s4 1983009808
    %v2373 = vunpack.c.0.s8 %v2372
    %v2374 = vlaneseq
    %v2375 = vshrl.u32 %v2374, 7
    %v2376 = vsub.s32 %v2373, %v2375
    %v2377 = vrot.slane %v2363, %v2376
    %v2378 = vcombine.low %v2354, %v2370
    %v2379 = vcombine.high %v2354, %v2370
    %v2381 = vunpack.c.l.s4 1934713408
    %v2382 = vunpack.c.0.s8 %v2381
    %v2383 = vlaneseq
    %v2384 = vshrl.u32 %v2383, 7
    %v2385 = vsub.s32 %v2382, %v2384
    %v2386 = vrot.slane %v2378, %v2385
    %v2388 = vunpack.c.l.s4 1934713408
    %v2389 = vunpack.c.0.s8 %v2388
    %v2390 = vlaneseq
    %v2391 = vshrl.u32 %v2390, 7
    %v2392 = vsub.s32 %v2389, %v2391
    %v2393 = vrot.slane %v2379, %v2392
    %v2394 = vcombine.low %v2361, %v2377
    %v2395 = vcombine.high %v2361, %v2377
    %v2397 = vunpack.c.l.s4 1934713408
    %v2398 = vunpack.c.0.s8 %v2397
    %v2399 = vlaneseq
    %v2400 = vshrl.u32 %v2399, 7
    %v2401 = vsub.s32 %v2398, %v2400
    %v2402 = vrot.slane %v2394, %v2401
    %v2404 = vunpack.c.l.s4 1934713408
    %v2405 = vunpack.c.0.s8 %v2404
    %v2406 = vlaneseq
    %v2407 = vshrl.u32 %v2406, 7
    %v2408 = vsub.s32 %v2405, %v2407
    %v2409 = vrot.slane %v2395, %v2408
    %v2410 = vcombine.high %v2386, 0.0
    %v2411 = vcombine.high %v2393, 0.0
    %v2412 = vcombine.high %v2402, 0.0
    %v2413 = vcombine.high %v2409, 0.0
    %v2414 = vcombine.low %v2318, %v2325
    %v2416 = vunpack.c.l.s4 1983009808
    %v2417 = vunpack.c.0.s8 %v2416
    %v2418 = vlaneseq
    %v2419 = vshrl.u32 %v2418, 7
    %v2420 = vsub.s32 %v2417, %v2419
    %v2421 = vrot.slane %v2414, %v2420
    %v2422 = vcombine.low %v2342, %v2343
    %v2424 = vunpack.c.l.s4 1983009808
    %v2425 = vunpack.c.0.s8 %v2424
    %v2426 = vlaneseq
    %v2427 = vshrl.u32 %v2426, 7
    %v2428 = vsub.s32 %v2425, %v2427
    %v2429 = vrot.slane %v2422, %v2428
    %v2430 = vcombine.low %v2334, %v2341
    %v2432 = vunpack.c.l.s4 1983009808
    %v2433 = vunpack.c.0.s8 %v2432
    %v2434 = vlaneseq
    %v2435 = vshrl.u32 %v2434, 7
    %v2436 = vsub.s32 %v2433, %v2435
    %v2437 = vrot.slane %v2430, %v2436
    %v2438 = vcombine.low %v2344, %v2345
    %v2440 = vunpack.c.l.s4 1983009808
    %v2441 = vunpack.c.0.s8 %v2440
    %v2442 = vlaneseq
    %v2443 = vshrl.u32 %v2442, 7
    %v2444 = vsub.s32 %v2441, %v2443
    %v2445 = vrot.slane %v2438, %v2444
    %v2446 = vcombine.low %v2421, %v2429
    %v2447 = vcombine.high %v2421, %v2429
    %v2449 = vunpack.c.l.s4 1934713408
    %v2450 = vunpack.c.0.s8 %v2449
    %v2451 = vlaneseq
    %v2452 = vshrl.u32 %v2451, 7
    %v2453 = vsub.s32 %v2450, %v2452
    %v2454 = vrot.slane %v2446, %v2453
    %v2456 = vunpack.c.l.s4 1934713408
    %v2457 = vunpack.c.0.s8 %v2456
    %v2458 = vlaneseq
    %v2459 = vshrl.u32 %v2458, 7
    %v2460 = vsub.s32 %v2457, %v2459
    %v2461 = vrot.slane %v2447, %v2460
    %v2462 = vcombine.low %v2437, %v2445
    %v2463 = vcombine.high %v2437, %v2445
    %v2465 = vunpack.c.l.s4 1934713408
    %v2466 = vunpack.c.0.s8 %v2465
    %v2467 = vlaneseq
    %v2468 = vshrl.u32 %v2467, 7
    %v2469 = vsub.s32 %v2466, %v2468
    %v2470 = vrot.slane %v2462, %v2469
    %v2472 = vunpack.c.l.s4 1934713408
    %v2473 = vunpack.c.0.s8 %v2472
    %v2474 = vlaneseq
    %v2475 = vshrl.u32 %v2474, 7
    %v2476 = vsub.s32 %v2473, %v2475
    %v2477 = vrot.slane %v2463, %v2476
    %v2478 = vcombine.low %v2454, %v2470
    %v2479 = vcombine.high %v2454, %v2470
    %v2480 = vcombine.low %v2461, %v2477
    %v2481 = vcombine.high %v2461, %v2477
    %v2482 = vcombine.low %v2386, %v2393
    %v2484 = vunpack.c.l.s4 1983009808
    %v2485 = vunpack.c.0.s8 %v2484
    %v2486 = vlaneseq
    %v2487 = vshrl.u32 %v2486, 7
    %v2488 = vsub.s32 %v2485, %v2487
    %v2489 = vrot.slane %v2482, %v2488
    %v2490 = vcombine.low %v2410, %v2411
    %v2492 = vunpack.c.l.s4 1983009808
    %v2493 = vunpack.c.0.s8 %v2492
    %v2494 = vlaneseq
    %v2495 = vshrl.u32 %v2494, 7
    %v2496 = vsub.s32 %v2493, %v2495
    %v2497 = vrot.slane %v2490, %v2496
    %v2498 = vcombine.low %v2402, %v2409
    %v2500 = vunpack.c.l.s4 1983009808
    %v2501 = vunpack.c.0.s8 %v2500
    %v2502 = vlaneseq
    %v2503 = vshrl.u32 %v2502, 7
    %v2504 = vsub.s32 %v2501, %v2503
    %v2505 = vrot.slane %v2498, %v2504
    %v2506 = vcombine.low %v2412, %v2413
    %v2508 = vunpack.c.l.s4 1983009808
    %v2509 = vunpack.c.0.s8 %v2508
    %v2510 = vlaneseq
    %v2511 = vshrl.u32 %v2510, 7
    %v2512 = vsub.s32 %v2509, %v2511
    %v2513 = vrot.slane %v2506, %v2512
    %v2514 = vcombine.low %v2489, %v2497
    %v2515 = vcombine.high %v2489, %v2497
    %v2517 = vunpack.c.l.s4 1934713408
    %v2518 = vunpack.c.0.s8 %v2517
    %v2519 = vlaneseq
    %v2520 = vshrl.u32 %v2519, 7
    %v2521 = vsub.s32 %v2518, %v2520
    %v2522 = vrot.slane %v2514, %v2521
    %v2524 = vunpack.c.l.s4 1934713408
    %v2525 = vunpack.c.0.s8 %v2524
    %v2526 = vlaneseq
    %v2527 = vshrl.u32 %v2526, 7
    %v2528 = vsub.s32 %v2525, %v2527
    %v2529 = vrot.slane %v2515, %v2528
    %v2530 = vcombine.low %v2505, %v2513
    %v2531 = vcombine.high %v2505, %v2513
    %v2533 = vunpack.c.l.s4 1934713408
    %v2534 = vunpack.c.0.s8 %v2533
    %v2535 = vlaneseq
    %v2536 = vshrl.u32 %v2535, 7
    %v2537 = vsub.s32 %v2534, %v2536
    %v2538 = vrot.slane %v2530, %v2537
    %v2540 = vunpack.c.l.s4 1934713408
    %v2541 = vunpack.c.0.s8 %v2540
    %v2542 = vlaneseq
    %v2543 = vshrl.u32 %v2542, 7
    %v2544 = vsub.s32 %v2541, %v2543
    %v2545 = vrot.slane %v2531, %v2544
    %v2546 = vcombine.low %v2522, %v2538
    %v2547 = vcombine.high %v2522, %v2538
    %v2548 = vcombine.low %v2529, %v2545
    %v2549 = vcombine.high %v2529, %v2545
    %v2550 = vpack.c.bf16 %v2479, %v2478
    %v2551 = vpack.c.bf16 %v2481, %v2480
    %v2552 = vpack.c.bf16 %v2547, %v2546
    %v2553 = vpack.c.bf16 %v2549, %v2548
    %2554 = vrot.lane.b32.xlu0 %v1948, 96
    %v2555 = vpop.permute.xlu0 %2554
    %2556 = vrot.lane.b32.xlu0 %v1951, 96
    %v2557 = vpop.permute.xlu0 %2556
    %2558 = vrot.lane.b32.xlu0 %v2261, 96
    %v2559 = vpop.permute.xlu0 %2558
    %2560 = vrot.lane.b32.xlu0 %v2263, 96
    %v2561 = vpop.permute.xlu0 %2560
    %2562 = vrot.lane.b32.xlu0 %v2267, 96
    %v2563 = vpop.permute.xlu0 %2562
    %2564 = vrot.lane.b32.xlu0 %v2269, 96
    %v2565 = vpop.permute.xlu0 %2564
    %2566 = vrot.lane.b32.xlu0 %v2273, 96
    %v2567 = vpop.permute.xlu0 %2566
    %2568 = vrot.lane.b32.xlu0 %v2275, 96
    %v2569 = vpop.permute.xlu0 %2568
    %v2578 = vcombine.low %v2555, %v2563
    %v2579 = vcombine.high %v2555, %v2563
    %v2581 = vunpack.c.l.s4 1983009808
    %v2582 = vunpack.c.0.s8 %v2581
    %v2583 = vlaneseq
    %v2584 = vshrl.u32 %v2583, 7
    %v2585 = vsub.s32 %v2582, %v2584
    %v2586 = vrot.slane %v2578, %v2585
    %v2588 = vunpack.c.l.s4 1983009808
    %v2589 = vunpack.c.0.s8 %v2588
    %v2590 = vlaneseq
    %v2591 = vshrl.u32 %v2590, 7
    %v2592 = vsub.s32 %v2589, %v2591
    %v2593 = vrot.slane %v2579, %v2592
    %v2594 = vcombine.low %v2559, %v2567
    %v2595 = vcombine.high %v2559, %v2567
    %v2597 = vunpack.c.l.s4 1983009808
    %v2598 = vunpack.c.0.s8 %v2597
    %v2599 = vlaneseq
    %v2600 = vshrl.u32 %v2599, 7
    %v2601 = vsub.s32 %v2598, %v2600
    %v2602 = vrot.slane %v2594, %v2601
    %v2604 = vunpack.c.l.s4 1983009808
    %v2605 = vunpack.c.0.s8 %v2604
    %v2606 = vlaneseq
    %v2607 = vshrl.u32 %v2606, 7
    %v2608 = vsub.s32 %v2605, %v2607
    %v2609 = vrot.slane %v2595, %v2608
    %v2610 = vcombine.low %v2586, %v2602
    %v2611 = vcombine.high %v2586, %v2602
    %v2613 = vunpack.c.l.s4 1934713408
    %v2614 = vunpack.c.0.s8 %v2613
    %v2615 = vlaneseq
    %v2616 = vshrl.u32 %v2615, 7
    %v2617 = vsub.s32 %v2614, %v2616
    %v2618 = vrot.slane %v2610, %v2617
    %v2620 = vunpack.c.l.s4 1934713408
    %v2621 = vunpack.c.0.s8 %v2620
    %v2622 = vlaneseq
    %v2623 = vshrl.u32 %v2622, 7
    %v2624 = vsub.s32 %v2621, %v2623
    %v2625 = vrot.slane %v2611, %v2624
    %v2626 = vcombine.low %v2593, %v2609
    %v2627 = vcombine.high %v2593, %v2609
    %v2629 = vunpack.c.l.s4 1934713408
    %v2630 = vunpack.c.0.s8 %v2629
    %v2631 = vlaneseq
    %v2632 = vshrl.u32 %v2631, 7
    %v2633 = vsub.s32 %v2630, %v2632
    %v2634 = vrot.slane %v2626, %v2633
    %v2636 = vunpack.c.l.s4 1934713408
    %v2637 = vunpack.c.0.s8 %v2636
    %v2638 = vlaneseq
    %v2639 = vshrl.u32 %v2638, 7
    %v2640 = vsub.s32 %v2637, %v2639
    %v2641 = vrot.slane %v2627, %v2640
    %v2642 = vcombine.high %v2618, 0.0
    %v2643 = vcombine.high %v2625, 0.0
    %v2644 = vcombine.high %v2634, 0.0
    %v2645 = vcombine.high %v2641, 0.0
    %v2646 = vcombine.low %v2557, %v2565
    %v2647 = vcombine.high %v2557, %v2565
    %v2649 = vunpack.c.l.s4 1983009808
    %v2650 = vunpack.c.0.s8 %v2649
    %v2651 = vlaneseq
    %v2652 = vshrl.u32 %v2651, 7
    %v2653 = vsub.s32 %v2650, %v2652
    %v2654 = vrot.slane %v2646, %v2653
    %v2656 = vunpack.c.l.s4 1983009808
    %v2657 = vunpack.c.0.s8 %v2656
    %v2658 = vlaneseq
    %v2659 = vshrl.u32 %v2658, 7
    %v2660 = vsub.s32 %v2657, %v2659
    %v2661 = vrot.slane %v2647, %v2660
    %v2662 = vcombine.low %v2561, %v2569
    %v2663 = vcombine.high %v2561, %v2569
    %v2665 = vunpack.c.l.s4 1983009808
    %v2666 = vunpack.c.0.s8 %v2665
    %v2667 = vlaneseq
    %v2668 = vshrl.u32 %v2667, 7
    %v2669 = vsub.s32 %v2666, %v2668
    %v2670 = vrot.slane %v2662, %v2669
    %v2672 = vunpack.c.l.s4 1983009808
    %v2673 = vunpack.c.0.s8 %v2672
    %v2674 = vlaneseq
    %v2675 = vshrl.u32 %v2674, 7
    %v2676 = vsub.s32 %v2673, %v2675
    %v2677 = vrot.slane %v2663, %v2676
    %v2678 = vcombine.low %v2654, %v2670
    %v2679 = vcombine.high %v2654, %v2670
    %v2681 = vunpack.c.l.s4 1934713408
    %v2682 = vunpack.c.0.s8 %v2681
    %v2683 = vlaneseq
    %v2684 = vshrl.u32 %v2683, 7
    %v2685 = vsub.s32 %v2682, %v2684
    %v2686 = vrot.slane %v2678, %v2685
    %v2688 = vunpack.c.l.s4 1934713408
    %v2689 = vunpack.c.0.s8 %v2688
    %v2690 = vlaneseq
    %v2691 = vshrl.u32 %v2690, 7
    %v2692 = vsub.s32 %v2689, %v2691
    %v2693 = vrot.slane %v2679, %v2692
    %v2694 = vcombine.low %v2661, %v2677
    %v2695 = vcombine.high %v2661, %v2677
    %v2697 = vunpack.c.l.s4 1934713408
    %v2698 = vunpack.c.0.s8 %v2697
    %v2699 = vlaneseq
    %v2700 = vshrl.u32 %v2699, 7
    %v2701 = vsub.s32 %v2698, %v2700
    %v2702 = vrot.slane %v2694, %v2701
    %v2704 = vunpack.c.l.s4 1934713408
    %v2705 = vunpack.c.0.s8 %v2704
    %v2706 = vlaneseq
    %v2707 = vshrl.u32 %v2706, 7
    %v2708 = vsub.s32 %v2705, %v2707
    %v2709 = vrot.slane %v2695, %v2708
    %v2710 = vcombine.high %v2686, 0.0
    %v2711 = vcombine.high %v2693, 0.0
    %v2712 = vcombine.high %v2702, 0.0
    %v2713 = vcombine.high %v2709, 0.0
    %v2714 = vcombine.low %v2618, %v2625
    %v2716 = vunpack.c.l.s4 1983009808
    %v2717 = vunpack.c.0.s8 %v2716
    %v2718 = vlaneseq
    %v2719 = vshrl.u32 %v2718, 7
    %v2720 = vsub.s32 %v2717, %v2719
    %v2721 = vrot.slane %v2714, %v2720
    %v2722 = vcombine.low %v2642, %v2643
    %v2724 = vunpack.c.l.s4 1983009808
    %v2725 = vunpack.c.0.s8 %v2724
    %v2726 = vlaneseq
    %v2727 = vshrl.u32 %v2726, 7
    %v2728 = vsub.s32 %v2725, %v2727
    %v2729 = vrot.slane %v2722, %v2728
    %v2730 = vcombine.low %v2634, %v2641
    %v2732 = vunpack.c.l.s4 1983009808
    %v2733 = vunpack.c.0.s8 %v2732
    %v2734 = vlaneseq
    %v2735 = vshrl.u32 %v2734, 7
    %v2736 = vsub.s32 %v2733, %v2735
    %v2737 = vrot.slane %v2730, %v2736
    %v2738 = vcombine.low %v2644, %v2645
    %v2740 = vunpack.c.l.s4 1983009808
    %v2741 = vunpack.c.0.s8 %v2740
    %v2742 = vlaneseq
    %v2743 = vshrl.u32 %v2742, 7
    %v2744 = vsub.s32 %v2741, %v2743
    %v2745 = vrot.slane %v2738, %v2744
    %v2746 = vcombine.low %v2721, %v2729
    %v2747 = vcombine.high %v2721, %v2729
    %v2749 = vunpack.c.l.s4 1934713408
    %v2750 = vunpack.c.0.s8 %v2749
    %v2751 = vlaneseq
    %v2752 = vshrl.u32 %v2751, 7
    %v2753 = vsub.s32 %v2750, %v2752
    %v2754 = vrot.slane %v2746, %v2753
    %v2756 = vunpack.c.l.s4 1934713408
    %v2757 = vunpack.c.0.s8 %v2756
    %v2758 = vlaneseq
    %v2759 = vshrl.u32 %v2758, 7
    %v2760 = vsub.s32 %v2757, %v2759
    %v2761 = vrot.slane %v2747, %v2760
    %v2762 = vcombine.low %v2737, %v2745
    %v2763 = vcombine.high %v2737, %v2745
    %v2765 = vunpack.c.l.s4 1934713408
    %v2766 = vunpack.c.0.s8 %v2765
    %v2767 = vlaneseq
    %v2768 = vshrl.u32 %v2767, 7
    %v2769 = vsub.s32 %v2766, %v2768
    %v2770 = vrot.slane %v2762, %v2769
    %v2772 = vunpack.c.l.s4 1934713408
    %v2773 = vunpack.c.0.s8 %v2772
    %v2774 = vlaneseq
    %v2775 = vshrl.u32 %v2774, 7
    %v2776 = vsub.s32 %v2773, %v2775
    %v2777 = vrot.slane %v2763, %v2776
    %v2778 = vcombine.low %v2754, %v2770
    %v2779 = vcombine.high %v2754, %v2770
    %v2780 = vcombine.low %v2761, %v2777
    %v2781 = vcombine.high %v2761, %v2777
    %v2782 = vcombine.low %v2686, %v2693
    %v2784 = vunpack.c.l.s4 1983009808
    %v2785 = vunpack.c.0.s8 %v2784
    %v2786 = vlaneseq
    %v2787 = vshrl.u32 %v2786, 7
    %v2788 = vsub.s32 %v2785, %v2787
    %v2789 = vrot.slane %v2782, %v2788
    %v2790 = vcombine.low %v2710, %v2711
    %v2792 = vunpack.c.l.s4 1983009808
    %v2793 = vunpack.c.0.s8 %v2792
    %v2794 = vlaneseq
    %v2795 = vshrl.u32 %v2794, 7
    %v2796 = vsub.s32 %v2793, %v2795
    %v2797 = vrot.slane %v2790, %v2796
    %v2798 = vcombine.low %v2702, %v2709
    %v2800 = vunpack.c.l.s4 1983009808
    %v2801 = vunpack.c.0.s8 %v2800
    %v2802 = vlaneseq
    %v2803 = vshrl.u32 %v2802, 7
    %v2804 = vsub.s32 %v2801, %v2803
    %v2805 = vrot.slane %v2798, %v2804
    %v2806 = vcombine.low %v2712, %v2713
    %v2808 = vunpack.c.l.s4 1983009808
    %v2809 = vunpack.c.0.s8 %v2808
    %v2810 = vlaneseq
    %v2811 = vshrl.u32 %v2810, 7
    %v2812 = vsub.s32 %v2809, %v2811
    %v2813 = vrot.slane %v2806, %v2812
    %v2814 = vcombine.low %v2789, %v2797
    %v2815 = vcombine.high %v2789, %v2797
    %v2817 = vunpack.c.l.s4 1934713408
    %v2818 = vunpack.c.0.s8 %v2817
    %v2819 = vlaneseq
    %v2820 = vshrl.u32 %v2819, 7
    %v2821 = vsub.s32 %v2818, %v2820
    %v2822 = vrot.slane %v2814, %v2821
    %v2824 = vunpack.c.l.s4 1934713408
    %v2825 = vunpack.c.0.s8 %v2824
    %v2826 = vlaneseq
    %v2827 = vshrl.u32 %v2826, 7
    %v2828 = vsub.s32 %v2825, %v2827
    %v2829 = vrot.slane %v2815, %v2828
    %v2830 = vcombine.low %v2805, %v2813
    %v2831 = vcombine.high %v2805, %v2813
    %v2833 = vunpack.c.l.s4 1934713408
    %v2834 = vunpack.c.0.s8 %v2833
    %v2835 = vlaneseq
    %v2836 = vshrl.u32 %v2835, 7
    %v2837 = vsub.s32 %v2834, %v2836
    %v2838 = vrot.slane %v2830, %v2837
    %v2840 = vunpack.c.l.s4 1934713408
    %v2841 = vunpack.c.0.s8 %v2840
    %v2842 = vlaneseq
    %v2843 = vshrl.u32 %v2842, 7
    %v2844 = vsub.s32 %v2841, %v2843
    %v2845 = vrot.slane %v2831, %v2844
    %v2846 = vcombine.low %v2822, %v2838
    %v2847 = vcombine.high %v2822, %v2838
    %v2848 = vcombine.low %v2829, %v2845
    %v2849 = vcombine.high %v2829, %v2845
    %v2850 = vpack.c.bf16 %v2779, %v2778
    %v2851 = vpack.c.bf16 %v2781, %v2780
    %v2852 = vpack.c.bf16 %v2847, %v2846
    %v2853 = vpack.c.bf16 %v2849, %v2848
    %v2855 = vsel %vm1124, %v2254, 0
    %v2858 = vsel %vm1124, %v2255, 0
    %v2861 = vsel %vm1124, %v2256, 0
    %v2864 = vsel %vm1124, %v2257, 0
    %v2867 = vsel %vm1124, %v2550, 0
    %v2870 = vsel %vm1124, %v2551, 0
    %v2873 = vsel %vm1124, %v2552, 0
    %v2876 = vsel %vm1124, %v2553, 0
    %2878 = vmatprep.subr.bf16.mxu0 0
    %2879 = vmatpush1.bf16.xpose.msra.mxu0 %v2867
    %2880 = vmatprep.subr.bf16.mxu0 0
    %2881 = vmatpush1.bf16.xpose.msra.mxu0 %v2870
    %2882 = vmatprep.subr.bf16.mxu0 0
    %2883 = vmatpush1.bf16.xpose.msra.mxu0 %v2873
    %2884 = vmatprep.subr.bf16.mxu0 0
    %2885 = vmatpush1.bf16.xpose.msra.mxu0 %v2876
    %2886 = vmatprep.subr.bf16.mxu0 0
    %2887 = vmatpush1.bf16.xpose.msra.mxu0 0
    %2888 = vmatprep.subr.bf16.mxu0 0
    %2889 = vmatpush1.bf16.xpose.msra.mxu0 0
    %2890 = vmatprep.subr.bf16.mxu0 0
    %2891 = vmatpush1.bf16.xpose.msra.mxu0 0
    %2892 = vmatprep.subr.bf16.mxu0 0
    %2893 = vmatpush1.bf16.xpose.msra.mxu0 0
    %2894 = vmatprep.subr.bf16.mxu0 0
    %2895 = vmatpush1.bf16.xpose.msra.mxu0 0
    %2896 = vmatprep.subr.bf16.mxu0 0
    %2897 = vmatpush1.bf16.xpose.msra.mxu0 0
    %2898 = vmatprep.subr.bf16.mxu0 0
    %2899 = vmatpush1.bf16.xpose.msra.mxu0 0
    %2900 = vmatprep.subr.bf16.mxu0 0
    %2901 = vmatpush1.bf16.xpose.msra.mxu0 0
    %2902 = vmatprep.subr.bf16.mxu0 0
    %2903 = vmatpush1.bf16.xpose.msra.mxu0 0
    %2904 = vmatprep.subr.bf16.mxu0 0
    %2905 = vmatpush1.bf16.xpose.msra.mxu0 0
    %2906 = vmatprep.subr.bf16.mxu0 0
    %2907 = vmatpush1.bf16.xpose.msra.mxu0 0
    %2908 = vmatprep.subr.bf16.mxu0 0
    %2909 = vmatpush1.bf16.xpose.msra.mxu0 0
    %2910 = vmatprep.mubr.bf16.mxu0 0
    %2911 = vmatmul.mubr.bf16.gmra.mrb[0].mxu0 %v2855
    %v2912 = vpop.f32.mrb[0].mxu0
    %v2913 = vadd.f32 0.0, %v2912
    %v2914 = vpop.f32.mrb[0].mxu0
    %v2915 = vpop.f32.mrb[0].mxu0
    %v2916 = vadd.f32 0.0, %v2915
    %v2917 = vpop.f32.mrb[0].mxu0
    %2918 = vmatprep.mubr.bf16.mxu0 0
    %2919 = vmatmul.mubr.bf16.gmra.mrb[0].mxu0 %v2858
    %v2920 = vpop.f32.mrb[0].mxu0
    %v2921 = vadd.f32 0.0, %v2920
    %v2922 = vpop.f32.mrb[0].mxu0
    %v2923 = vpop.f32.mrb[0].mxu0
    %v2924 = vadd.f32 0.0, %v2923
    %v2925 = vpop.f32.mrb[0].mxu0
    %2926 = vmatprep.mubr.bf16.mxu0 0
    %2927 = vmatmul.mubr.bf16.gmra.mrb[0].mxu0 %v2861
    %v2928 = vpop.f32.mrb[0].mxu0
    %v2929 = vadd.f32 0.0, %v2928
    %v2930 = vpop.f32.mrb[0].mxu0
    %v2931 = vpop.f32.mrb[0].mxu0
    %v2932 = vadd.f32 0.0, %v2931
    %v2933 = vpop.f32.mrb[0].mxu0
    %2934 = vmatprep.mubr.bf16.mxu0 0
    %2935 = vmatmul.mubr.bf16.gmra.mrb[0].mxu0 %v2864
    %v2936 = vpop.f32.mrb[0].mxu0
    %v2937 = vadd.f32 0.0, %v2936
    %v2938 = vpop.f32.mrb[0].mxu0
    %v2939 = vpop.f32.mrb[0].mxu0
    %v2940 = vadd.f32 0.0, %v2939
    %v2941 = vpop.f32.mrb[0].mxu0
    %2942 = vdwg.mxu0
    %v2943 = vmul.f32 %v2913, 0.35355338
    %v2944 = vmul.f32 %v2916, 0.35355338
    %v2945 = vmul.f32 %v2921, 0.35355338
    %v2946 = vmul.f32 %v2924, 0.35355338
    %v2947 = vmul.f32 %v2929, 0.35355338
    %v2948 = vmul.f32 %v2932, 0.35355338
    %v2949 = vmul.f32 %v2937, 0.35355338
    %v2950 = vmul.f32 %v2940, 0.35355338
    %v2951 = vadd.f32 %v2943, %v1954
    %v2952 = vadd.f32 %v2944, %v1955
    %v2953 = vadd.f32 %v2945, %v1956
    %v2954 = vadd.f32 %v2946, %v1957
    %v2955 = vadd.f32 %v2947, %v1958
    %v2956 = vadd.f32 %v2948, %v1959
    %v2957 = vadd.f32 %v2949, %v1960
    %v2958 = vadd.f32 %v2950, %v1961
    %v2959 = vsel %vm1230, %v2951, -inf
    %2960 = vmax.xlane.f32.xlu0 %v2959
    %v2961 = vpop.xlane.xlu0 %2960
    %v2962 = vsel %vm1230, %v2952, -inf
    %2963 = vmax.xlane.f32.xlu0 %v2962
    %v2964 = vpop.xlane.xlu0 %2963
    %v2965 = vsel %vm1230, %v2953, -inf
    %2966 = vmax.xlane.f32.xlu0 %v2965
    %v2967 = vpop.xlane.xlu0 %2966
    %v2968 = vsel %vm1230, %v2954, -inf
    %2969 = vmax.xlane.f32.xlu0 %v2968
    %v2970 = vpop.xlane.xlu0 %2969
    %v2971 = vsel %vm1230, %v2955, -inf
    %2972 = vmax.xlane.f32.xlu0 %v2971
    %v2973 = vpop.xlane.xlu0 %2972
    %v2974 = vsel %vm1230, %v2956, -inf
    %2975 = vmax.xlane.f32.xlu0 %v2974
    %v2976 = vpop.xlane.xlu0 %2975
    %v2977 = vsel %vm1230, %v2957, -inf
    %2978 = vmax.xlane.f32.xlu0 %v2977
    %v2979 = vpop.xlane.xlu0 %2978
    %v2980 = vsel %vm1230, %v2958, -inf
    %2981 = vmax.xlane.f32.xlu0 %v2980
    %v2982 = vpop.xlane.xlu0 %2981
    %v2983 = vsub.f32 %v2951, %v2961
    %v2984 = vsub.f32 %v2952, %v2964
    %v2985 = vsub.f32 %v2953, %v2967
    %v2986 = vsub.f32 %v2954, %v2970
    %v2987 = vsub.f32 %v2955, %v2973
    %v2988 = vsub.f32 %v2956, %v2976
    %v2989 = vsub.f32 %v2957, %v2979
    %v2990 = vsub.f32 %v2958, %v2982
    %v2991 = vmul.f32 %v2983, 1.442695
    %v2992 = vpow.pop %v2991
    %v2993 = vmul.f32 %v2984, 1.442695
    %v2994 = vpow.pop %v2993
    %v2995 = vmul.f32 %v2985, 1.442695
    %v2996 = vpow.pop %v2995
    %v2997 = vmul.f32 %v2986, 1.442695
    %v2998 = vpow.pop %v2997
    %v2999 = vmul.f32 %v2987, 1.442695
    %v3000 = vpow.pop %v2999
    %v3001 = vmul.f32 %v2988, 1.442695
    %v3002 = vpow.pop %v3001
    %v3003 = vmul.f32 %v2989, 1.442695
    %v3004 = vpow.pop %v3003
    %v3005 = vmul.f32 %v2990, 1.442695
    %v3006 = vpow.pop %v3005
    %v3007 = vsel %vm1230, %v2992, 0.0
    %3008 = vadd.xlane.f32.xlu0 %v3007
    %v3009 = vpop.xlane.xlu0 %3008
    %v3010 = vsel %vm1230, %v2994, 0.0
    %3011 = vadd.xlane.f32.xlu0 %v3010
    %v3012 = vpop.xlane.xlu0 %3011
    %v3013 = vsel %vm1230, %v2996, 0.0
    %3014 = vadd.xlane.f32.xlu0 %v3013
    %v3015 = vpop.xlane.xlu0 %3014
    %v3016 = vsel %vm1230, %v2998, 0.0
    %3017 = vadd.xlane.f32.xlu0 %v3016
    %v3018 = vpop.xlane.xlu0 %3017
    %v3019 = vsel %vm1230, %v3000, 0.0
    %3020 = vadd.xlane.f32.xlu0 %v3019
    %v3021 = vpop.xlane.xlu0 %3020
    %v3022 = vsel %vm1230, %v3002, 0.0
    %3023 = vadd.xlane.f32.xlu0 %v3022
    %v3024 = vpop.xlane.xlu0 %3023
    %v3025 = vsel %vm1230, %v3004, 0.0
    %3026 = vadd.xlane.f32.xlu0 %v3025
    %v3027 = vpop.xlane.xlu0 %3026
    %v3028 = vsel %vm1230, %v3006, 0.0
    %3029 = vadd.xlane.f32.xlu0 %v3028
    %v3030 = vpop.xlane.xlu0 %3029
    %v3031 = vrcp.pop %v3009
    %v3032 = vrcp.pop %v3012
    %v3033 = vrcp.pop %v3015
    %v3034 = vrcp.pop %v3018
    %v3035 = vrcp.pop %v3021
    %v3036 = vrcp.pop %v3024
    %v3037 = vrcp.pop %v3027
    %v3038 = vrcp.pop %v3030
    %v3039 = vmul.f32 %v2992, %v3031
    %v3040 = vmul.f32 %v2994, %v3032
    %v3041 = vmul.f32 %v2996, %v3033
    %v3042 = vmul.f32 %v2998, %v3034
    %v3043 = vmul.f32 %v3000, %v3035
    %v3044 = vmul.f32 %v3002, %v3036
    %v3045 = vmul.f32 %v3004, %v3037
    %v3046 = vmul.f32 %v3006, %v3038
    %v3047 = vpack.c.bf16 %v3040, %v3039
    %v3048 = vpack.c.bf16 %v3042, %v3041
    %v3049 = vpack.c.bf16 %v3044, %v3043
    %v3050 = vpack.c.bf16 %v3046, %v3045
    %v3052 = vsel %vm1230, %v3047, 0
    %v3055 = vsel %vm1230, %v3048, 0
    %v3058 = vsel %vm1230, %v3049, 0
    %v3061 = vsel %vm1230, %v3050, 0
    %3063 = vmatprep.subr.bf16.mxu0 0
    %3064 = vmatpush1.bf16.msra.mxu0 %v2850
    %3065 = vmatprep.subr.bf16.mxu0 0
    %3066 = vmatpush1.bf16.msra.mxu0 %v2851
    %3067 = vmatprep.subr.bf16.mxu0 0
    %3068 = vmatpush1.bf16.msra.mxu0 %v2852
    %3069 = vmatprep.subr.bf16.mxu0 0
    %3070 = vmatpush1.bf16.msra.mxu0 %v2853
    %3071 = vmatprep.subr.bf16.mxu0 0
    %3072 = vmatpush1.bf16.msra.mxu0 0
    %3073 = vmatprep.subr.bf16.mxu0 0
    %3074 = vmatpush1.bf16.msra.mxu0 0
    %3075 = vmatprep.subr.bf16.mxu0 0
    %3076 = vmatpush1.bf16.msra.mxu0 0
    %3077 = vmatprep.subr.bf16.mxu0 0
    %3078 = vmatpush1.bf16.msra.mxu0 0
    %3079 = vmatprep.subr.bf16.mxu0 0
    %3080 = vmatpush1.bf16.msra.mxu0 0
    %3081 = vmatprep.subr.bf16.mxu0 0
    %3082 = vmatpush1.bf16.msra.mxu0 0
    %3083 = vmatprep.subr.bf16.mxu0 0
    %3084 = vmatpush1.bf16.msra.mxu0 0
    %3085 = vmatprep.subr.bf16.mxu0 0
    %3086 = vmatpush1.bf16.msra.mxu0 0
    %3087 = vmatprep.subr.bf16.mxu0 0
    %3088 = vmatpush1.bf16.msra.mxu0 0
    %3089 = vmatprep.subr.bf16.mxu0 0
    %3090 = vmatpush1.bf16.msra.mxu0 0
    %3091 = vmatprep.subr.bf16.mxu0 0
    %3092 = vmatpush1.bf16.msra.mxu0 0
    %3093 = vmatprep.subr.bf16.mxu0 0
    %3094 = vmatpush1.bf16.msra.mxu0 0
    %3095 = vmatprep.mubr.bf16.mxu0 0
    %3096 = vmatmul.mubr.bf16.gmra.mrb[0].mxu0 %v3052
    %v3097 = vpop.f32.mrb[0].mxu0
    %v3098 = vadd.f32 0.0, %v3097
    %v3099 = vpop.f32.mrb[0].mxu0
    %v3100 = vpop.f32.mrb[0].mxu0
    %v3101 = vadd.f32 0.0, %v3100
    %v3102 = vpop.f32.mrb[0].mxu0
    %3103 = vmatprep.mubr.bf16.mxu0 0
    %3104 = vmatmul.mubr.bf16.gmra.mrb[0].mxu0 %v3055
    %v3105 = vpop.f32.mrb[0].mxu0
    %v3106 = vadd.f32 0.0, %v3105
    %v3107 = vpop.f32.mrb[0].mxu0
    %v3108 = vpop.f32.mrb[0].mxu0
    %v3109 = vadd.f32 0.0, %v3108
    %v3110 = vpop.f32.mrb[0].mxu0
    %3111 = vmatprep.mubr.bf16.mxu0 0
    %3112 = vmatmul.mubr.bf16.gmra.mrb[0].mxu0 %v3058
    %v3113 = vpop.f32.mrb[0].mxu0
    %v3114 = vadd.f32 0.0, %v3113
    %v3115 = vpop.f32.mrb[0].mxu0
    %v3116 = vpop.f32.mrb[0].mxu0
    %v3117 = vadd.f32 0.0, %v3116
    %v3118 = vpop.f32.mrb[0].mxu0
    %3119 = vmatprep.mubr.bf16.mxu0 0
    %3120 = vmatmul.mubr.bf16.gmra.mrb[0].mxu0 %v3061
    %v3121 = vpop.f32.mrb[0].mxu0
    %v3122 = vadd.f32 0.0, %v3121
    %v3123 = vpop.f32.mrb[0].mxu0
    %v3124 = vpop.f32.mrb[0].mxu0
    %v3125 = vadd.f32 0.0, %v3124
    %v3126 = vpop.f32.mrb[0].mxu0
    %3127 = vdwg.mxu0
    %v3128 = vcombine.low %v3098, %v3106
    %v3129 = vcombine.high %v3098, %v3106
    %v3131 = vunpack.c.l.s4 1983009808
    %v3132 = vunpack.c.0.s8 %v3131
    %v3133 = vlaneseq
    %v3134 = vshrl.u32 %v3133, 7
    %v3135 = vsub.s32 %v3132, %v3134
    %v3136 = vrot.slane %v3128, %v3135
    %v3138 = vunpack.c.l.s4 1983009808
    %v3139 = vunpack.c.0.s8 %v3138
    %v3140 = vlaneseq
    %v3141 = vshrl.u32 %v3140, 7
    %v3142 = vsub.s32 %v3139, %v3141
    %v3143 = vrot.slane %v3129, %v3142
    %v3144 = vcombine.low %v3101, %v3109
    %v3145 = vcombine.high %v3101, %v3109
    %v3147 = vunpack.c.l.s4 1983009808
    %v3148 = vunpack.c.0.s8 %v3147
    %v3149 = vlaneseq
    %v3150 = vshrl.u32 %v3149, 7
    %v3151 = vsub.s32 %v3148, %v3150
    %v3152 = vrot.slane %v3144, %v3151
    %v3154 = vunpack.c.l.s4 1983009808
    %v3155 = vunpack.c.0.s8 %v3154
    %v3156 = vlaneseq
    %v3157 = vshrl.u32 %v3156, 7
    %v3158 = vsub.s32 %v3155, %v3157
    %v3159 = vrot.slane %v3145, %v3158
    %v3160 = vcombine.low %v3136, %v3152
    %v3161 = vcombine.high %v3136, %v3152
    %v3163 = vunpack.c.l.s4 1934713408
    %v3164 = vunpack.c.0.s8 %v3163
    %v3165 = vlaneseq
    %v3166 = vshrl.u32 %v3165, 7
    %v3167 = vsub.s32 %v3164, %v3166
    %v3168 = vrot.slane %v3160, %v3167
    %v3170 = vunpack.c.l.s4 1934713408
    %v3171 = vunpack.c.0.s8 %v3170
    %v3172 = vlaneseq
    %v3173 = vshrl.u32 %v3172, 7
    %v3174 = vsub.s32 %v3171, %v3173
    %v3175 = vrot.slane %v3161, %v3174
    %v3176 = vcombine.low %v3143, %v3159
    %v3177 = vcombine.high %v3143, %v3159
    %v3179 = vunpack.c.l.s4 1934713408
    %v3180 = vunpack.c.0.s8 %v3179
    %v3181 = vlaneseq
    %v3182 = vshrl.u32 %v3181, 7
    %v3183 = vsub.s32 %v3180, %v3182
    %v3184 = vrot.slane %v3176, %v3183
    %v3186 = vunpack.c.l.s4 1934713408
    %v3187 = vunpack.c.0.s8 %v3186
    %v3188 = vlaneseq
    %v3189 = vshrl.u32 %v3188, 7
    %v3190 = vsub.s32 %v3187, %v3189
    %v3191 = vrot.slane %v3177, %v3190
    %v3192 = vcombine.high %v3168, 0.0
    %v3193 = vcombine.high %v3175, 0.0
    %v3194 = vcombine.high %v3184, 0.0
    %v3195 = vcombine.high %v3191, 0.0
    %v3196 = vcombine.low %v3114, %v3122
    %v3197 = vcombine.high %v3114, %v3122
    %v3199 = vunpack.c.l.s4 1983009808
    %v3200 = vunpack.c.0.s8 %v3199
    %v3201 = vlaneseq
    %v3202 = vshrl.u32 %v3201, 7
    %v3203 = vsub.s32 %v3200, %v3202
    %v3204 = vrot.slane %v3196, %v3203
    %v3206 = vunpack.c.l.s4 1983009808
    %v3207 = vunpack.c.0.s8 %v3206
    %v3208 = vlaneseq
    %v3209 = vshrl.u32 %v3208, 7
    %v3210 = vsub.s32 %v3207, %v3209
    %v3211 = vrot.slane %v3197, %v3210
    %v3212 = vcombine.low %v3117, %v3125
    %v3213 = vcombine.high %v3117, %v3125
    %v3215 = vunpack.c.l.s4 1983009808
    %v3216 = vunpack.c.0.s8 %v3215
    %v3217 = vlaneseq
    %v3218 = vshrl.u32 %v3217, 7
    %v3219 = vsub.s32 %v3216, %v3218
    %v3220 = vrot.slane %v3212, %v3219
    %v3222 = vunpack.c.l.s4 1983009808
    %v3223 = vunpack.c.0.s8 %v3222
    %v3224 = vlaneseq
    %v3225 = vshrl.u32 %v3224, 7
    %v3226 = vsub.s32 %v3223, %v3225
    %v3227 = vrot.slane %v3213, %v3226
    %v3228 = vcombine.low %v3204, %v3220
    %v3229 = vcombine.high %v3204, %v3220
    %v3231 = vunpack.c.l.s4 1934713408
    %v3232 = vunpack.c.0.s8 %v3231
    %v3233 = vlaneseq
    %v3234 = vshrl.u32 %v3233, 7
    %v3235 = vsub.s32 %v3232, %v3234
    %v3236 = vrot.slane %v3228, %v3235
    %v3238 = vunpack.c.l.s4 1934713408
    %v3239 = vunpack.c.0.s8 %v3238
    %v3240 = vlaneseq
    %v3241 = vshrl.u32 %v3240, 7
    %v3242 = vsub.s32 %v3239, %v3241
    %v3243 = vrot.slane %v3229, %v3242
    %v3244 = vcombine.low %v3211, %v3227
    %v3245 = vcombine.high %v3211, %v3227
    %v3247 = vunpack.c.l.s4 1934713408
    %v3248 = vunpack.c.0.s8 %v3247
    %v3249 = vlaneseq
    %v3250 = vshrl.u32 %v3249, 7
    %v3251 = vsub.s32 %v3248, %v3250
    %v3252 = vrot.slane %v3244, %v3251
    %v3254 = vunpack.c.l.s4 1934713408
    %v3255 = vunpack.c.0.s8 %v3254
    %v3256 = vlaneseq
    %v3257 = vshrl.u32 %v3256, 7
    %v3258 = vsub.s32 %v3255, %v3257
    %v3259 = vrot.slane %v3245, %v3258
    %v3260 = vcombine.high %v3236, 0.0
    %v3261 = vcombine.high %v3243, 0.0
    %v3262 = vcombine.high %v3252, 0.0
    %v3263 = vcombine.high %v3259, 0.0
    %v3264 = vcombine.low %v3168, %v3175
    %v3266 = vunpack.c.l.s4 1983009808
    %v3267 = vunpack.c.0.s8 %v3266
    %v3268 = vlaneseq
    %v3269 = vshrl.u32 %v3268, 7
    %v3270 = vsub.s32 %v3267, %v3269
    %v3271 = vrot.slane %v3264, %v3270
    %v3272 = vcombine.low %v3192, %v3193
    %v3274 = vunpack.c.l.s4 1983009808
    %v3275 = vunpack.c.0.s8 %v3274
    %v3276 = vlaneseq
    %v3277 = vshrl.u32 %v3276, 7
    %v3278 = vsub.s32 %v3275, %v3277
    %v3279 = vrot.slane %v3272, %v3278
    %v3280 = vcombine.low %v3184, %v3191
    %v3282 = vunpack.c.l.s4 1983009808
    %v3283 = vunpack.c.0.s8 %v3282
    %v3284 = vlaneseq
    %v3285 = vshrl.u32 %v3284, 7
    %v3286 = vsub.s32 %v3283, %v3285
    %v3287 = vrot.slane %v3280, %v3286
    %v3288 = vcombine.low %v3194, %v3195
    %v3290 = vunpack.c.l.s4 1983009808
    %v3291 = vunpack.c.0.s8 %v3290
    %v3292 = vlaneseq
    %v3293 = vshrl.u32 %v3292, 7
    %v3294 = vsub.s32 %v3291, %v3293
    %v3295 = vrot.slane %v3288, %v3294
    %v3296 = vcombine.low %v3271, %v3279
    %v3297 = vcombine.high %v3271, %v3279
    %v3299 = vunpack.c.l.s4 1934713408
    %v3300 = vunpack.c.0.s8 %v3299
    %v3301 = vlaneseq
    %v3302 = vshrl.u32 %v3301, 7
    %v3303 = vsub.s32 %v3300, %v3302
    %v3304 = vrot.slane %v3296, %v3303
    %v3306 = vunpack.c.l.s4 1934713408
    %v3307 = vunpack.c.0.s8 %v3306
    %v3308 = vlaneseq
    %v3309 = vshrl.u32 %v3308, 7
    %v3310 = vsub.s32 %v3307, %v3309
    %v3311 = vrot.slane %v3297, %v3310
    %v3312 = vcombine.low %v3287, %v3295
    %v3313 = vcombine.high %v3287, %v3295
    %v3315 = vunpack.c.l.s4 1934713408
    %v3316 = vunpack.c.0.s8 %v3315
    %v3317 = vlaneseq
    %v3318 = vshrl.u32 %v3317, 7
    %v3319 = vsub.s32 %v3316, %v3318
    %v3320 = vrot.slane %v3312, %v3319
    %v3322 = vunpack.c.l.s4 1934713408
    %v3323 = vunpack.c.0.s8 %v3322
    %v3324 = vlaneseq
    %v3325 = vshrl.u32 %v3324, 7
    %v3326 = vsub.s32 %v3323, %v3325
    %v3327 = vrot.slane %v3313, %v3326
    %v3328 = vcombine.low %v3304, %v3320
    %v3329 = vcombine.high %v3304, %v3320
    %v3330 = vcombine.low %v3311, %v3327
    %v3331 = vcombine.high %v3311, %v3327
    %v3332 = vcombine.low %v3236, %v3243
    %v3334 = vunpack.c.l.s4 1983009808
    %v3335 = vunpack.c.0.s8 %v3334
    %v3336 = vlaneseq
    %v3337 = vshrl.u32 %v3336, 7
    %v3338 = vsub.s32 %v3335, %v3337
    %v3339 = vrot.slane %v3332, %v3338
    %v3340 = vcombine.low %v3260, %v3261
    %v3342 = vunpack.c.l.s4 1983009808
    %v3343 = vunpack.c.0.s8 %v3342
    %v3344 = vlaneseq
    %v3345 = vshrl.u32 %v3344, 7
    %v3346 = vsub.s32 %v3343, %v3345
    %v3347 = vrot.slane %v3340, %v3346
    %v3348 = vcombine.low %v3252, %v3259
    %v3350 = vunpack.c.l.s4 1983009808
    %v3351 = vunpack.c.0.s8 %v3350
    %v3352 = vlaneseq
    %v3353 = vshrl.u32 %v3352, 7
    %v3354 = vsub.s32 %v3351, %v3353
    %v3355 = vrot.slane %v3348, %v3354
    %v3356 = vcombine.low %v3262, %v3263
    %v3358 = vunpack.c.l.s4 1983009808
    %v3359 = vunpack.c.0.s8 %v3358
    %v3360 = vlaneseq
    %v3361 = vshrl.u32 %v3360, 7
    %v3362 = vsub.s32 %v3359, %v3361
    %v3363 = vrot.slane %v3356, %v3362
    %v3364 = vcombine.low %v3339, %v3347
    %v3365 = vcombine.high %v3339, %v3347
    %v3367 = vunpack.c.l.s4 1934713408
    %v3368 = vunpack.c.0.s8 %v3367
    %v3369 = vlaneseq
    %v3370 = vshrl.u32 %v3369, 7
    %v3371 = vsub.s32 %v3368, %v3370
    %v3372 = vrot.slane %v3364, %v3371
    %v3374 = vunpack.c.l.s4 1934713408
    %v3375 = vunpack.c.0.s8 %v3374
    %v3376 = vlaneseq
    %v3377 = vshrl.u32 %v3376, 7
    %v3378 = vsub.s32 %v3375, %v3377
    %v3379 = vrot.slane %v3365, %v3378
    %v3380 = vcombine.low %v3355, %v3363
    %v3381 = vcombine.high %v3355, %v3363
    %v3383 = vunpack.c.l.s4 1934713408
    %v3384 = vunpack.c.0.s8 %v3383
    %v3385 = vlaneseq
    %v3386 = vshrl.u32 %v3385, 7
    %v3387 = vsub.s32 %v3384, %v3386
    %v3388 = vrot.slane %v3380, %v3387
    %v3390 = vunpack.c.l.s4 1934713408
    %v3391 = vunpack.c.0.s8 %v3390
    %v3392 = vlaneseq
    %v3393 = vshrl.u32 %v3392, 7
    %v3394 = vsub.s32 %v3391, %v3393
    %v3395 = vrot.slane %v3381, %v3394
    %v3396 = vcombine.low %v3372, %v3388
    %v3397 = vcombine.high %v3372, %v3388
    %v3398 = vcombine.low %v3379, %v3395
    %v3399 = vcombine.high %v3379, %v3395
    %3402 = vrot.lane.b32.xlu0 %v3329, 8
    %v3403 = vpop.permute.xlu0 %3402
    %3404 = vrot.lane.b32.xlu0 %v3397, 8
    %v3405 = vpop.permute.xlu0 %3404
    %3410 = vrot.lane.b32.xlu0 %v3330, 16
    %v3411 = vpop.permute.xlu0 %3410
    %3412 = vrot.lane.b32.xlu0 %v3398, 16
    %v3413 = vpop.permute.xlu0 %3412
    %3418 = vrot.lane.b32.xlu0 %v3331, 24
    %v3419 = vpop.permute.xlu0 %3418
    %3420 = vrot.lane.b32.xlu0 %v3399, 24
    %v3421 = vpop.permute.xlu0 %3420
    %v3424 = vsel %vm1124, %v3328, %v3403
    %v3425 = vsel %vm1124, %v3396, %v3405
    %v3426 = vsel %vm1698, %v3424, %v3411
    %v3427 = vsel %vm1698, %v3425, %v3413
    %v3428 = vsel %vm1701, %v3426, %v3419
    %v3429 = vsel %vm1701, %v3427, %v3421
    %v3430 = vld [vmem:[%s4 + $0x4] sm:$0xf]
    %v3431 = vld [vmem:[%s4 + $0x10] sm:$0xf]
    %v3432 = vld [vmem:[%s4 + $0x1c] sm:$0xf]
    %v3433 = vld [vmem:[%s4 + $0x28] sm:$0xf]
    %v3434 = vpack.c.bf16 %v3429, %v3428
    %v3435 = vld [vmem:[#allocation10 + $0x4] sm:$0x1]
    %v3436 = vlaneseq
    %v3437 = vshrl.u32 %v3436, 7
    %v3438 = vsub.s32 0, %v3437
    %v3439 = vrot.slane %v3435, %v3438
    %v3444 = vunpack.c.l.b16 %v3430
    %v3445 = vunpack.c.l.b16 %v3431
    %v3446 = vunpack.c.l.b16 %v3432
    %v3447 = vunpack.c.l.b16 %v3433
    %v3448 = vpack.c.b16 %v3445, %v3444
    %v3449 = vpack.c.b16 %v3447, %v3446
    %3450 = vrot.lane.b32.xlu0 %v3448, 32
    %v3451 = vpop.permute.xlu0 %3450
    %3452 = vrot.lane.b32.xlu0 %v3449, 32
    %v3453 = vpop.permute.xlu0 %3452
    %v3457 = vsel %vm98, %v3434, 0
    %3459 = vmatprep.subr.bf16.mxu0 0
    %3460 = vmatpush1.bf16.msra.mxu0 %v3451
    %3461 = vmatprep.subr.bf16.mxu0 0
    %3462 = vmatpush1.bf16.msra.mxu0 %v3453
    %3463 = vmatprep.subr.bf16.mxu0 0
    %3464 = vmatpush1.bf16.msra.mxu0 0
    %3465 = vmatprep.subr.bf16.mxu0 0
    %3466 = vmatpush1.bf16.msra.mxu0 0
    %3467 = vmatprep.subr.bf16.mxu0 0
    %3468 = vmatpush1.bf16.msra.mxu0 0
    %3469 = vmatprep.subr.bf16.mxu0 0
    %3470 = vmatpush1.bf16.msra.mxu0 0
    %3471 = vmatprep.subr.bf16.mxu0 0
    %3472 = vmatpush1.bf16.msra.mxu0 0
    %3473 = vmatprep.subr.bf16.mxu0 0
    %3474 = vmatpush1.bf16.msra.mxu0 0
    %3475 = vmatprep.subr.bf16.mxu0 0
    %3476 = vmatpush1.bf16.msra.mxu0 0
    %3477 = vmatprep.subr.bf16.mxu0 0
    %3478 = vmatpush1.bf16.msra.mxu0 0
    %3479 = vmatprep.subr.bf16.mxu0 0
    %3480 = vmatpush1.bf16.msra.mxu0 0
    %3481 = vmatprep.subr.bf16.mxu0 0
    %3482 = vmatpush1.bf16.msra.mxu0 0
    %3483 = vmatprep.subr.bf16.mxu0 0
    %3484 = vmatpush1.bf16.msra.mxu0 0
    %3485 = vmatprep.subr.bf16.mxu0 0
    %3486 = vmatpush1.bf16.msra.mxu0 0
    %3487 = vmatprep.subr.bf16.mxu0 0
    %3488 = vmatpush1.bf16.msra.mxu0 0
    %3489 = vmatprep.subr.bf16.mxu0 0
    %3490 = vmatpush1.bf16.msra.mxu0 0
    %3491 = vmatprep.mubr.bf16.mxu0 0
    %3492 = vmatmul.mubr.bf16.gmra.mrb[0].mxu0 %v3457
    %v3493 = vpop.f32.mrb[0].mxu0
    %v3494 = vadd.f32 %v3439, %v3493
    %v3495 = vpop.f32.mrb[0].mxu0
    %v3496 = vpop.f32.mrb[0].mxu0
    %v3497 = vadd.f32 %v3439, %v3496
    %v3498 = vpop.f32.mrb[0].mxu0
    %3499 = vdwg.mxu0
    %v3500 = vadd.f32 %v1774, %v3494
    %v3501 = vadd.f32 %v1775, %v3497
    %v3502 = vsel %vm98, %v3500, 0.0
    %3503 = vadd.xlane.f32.xlu0 %v3502
    %v3504 = vpop.xlane.xlu0 %3503
    %v3505 = vsel %vm98, %v3501, 0.0
    %3506 = vadd.xlane.f32.xlu0 %v3505
    %v3507 = vpop.xlane.xlu0 %3506
    %v3508 = vmul.f32 %v3504, %v105
    %v3509 = vmul.f32 %v3507, %v105
    %v3510 = vsub.f32 %v3500, %v3508
    %v3511 = vsub.f32 %v3501, %v3509
    %v3512 = vmul.f32 %v3510, %v3510
    %v3513 = vmul.f32 %v3511, %v3511
    %v3514 = vsel %vm98, %v3512, 0.0
    %3515 = vadd.xlane.f32.xlu0 %v3514
    %v3516 = vpop.xlane.xlu0 %3515
    %v3517 = vsel %vm98, %v3513, 0.0
    %3518 = vadd.xlane.f32.xlu0 %v3517
    %v3519 = vpop.xlane.xlu0 %3518
    %v3520 = vmul.f32 %v3516, 0.032258064
    %v3521 = vmul.f32 %v3519, 0.032258064
    %v3522 = vld [vmem:[#allocation10 + $0xb] sm:$0x1]
    %v3523 = vlaneseq
    %v3524 = vshrl.u32 %v3523, 7
    %v3525 = vsub.s32 0, %v3524
    %v3526 = vrot.slane %v3522, %v3525
    %v3527 = vmul.f32 %v3526, %v3510
    %v3528 = vmul.f32 %v3526, %v3511
    %v3529 = vrsqrt.pop %v3520
    %v3530 = vmul.f32 %v3520, %v3529
    %vm3531 = vcmp.eq.f32.partialorder %v3520, inf
    %v3532 = vsel %vm3531, %v3520, %v3530
    %vm3533 = vcmp.eq.f32.partialorder %v3520, 0.0
    %v3534 = vand.u32 %v3520, 2147483648
    %v3535 = vsel %vm3533, %v3534, %v3532
    %v3536 = vrsqrt.pop %v3521
    %v3537 = vmul.f32 %v3521, %v3536
    %vm3538 = vcmp.eq.f32.partialorder %v3521, inf
    %v3539 = vsel %vm3538, %v3521, %v3537
    %vm3540 = vcmp.eq.f32.partialorder %v3521, 0.0
    %v3541 = vand.u32 %v3521, 2147483648
    %v3542 = vsel %vm3540, %v3541, %v3539
    %v3543 = vadd.f32 %v3535, 1e-06
    %v3544 = vadd.f32 %v3542, 1e-06
    %v3545 = vrcp.pop %v3543
    %v3546 = vmul.f32 %v3527, %v3545
    %v3547 = vrcp.pop %v3544
    %v3548 = vmul.f32 %v3528, %v3547
    %v3549 = vld [vmem:[#allocation10 + $0xc] sm:$0x1]
    %v3550 = vlaneseq
    %v3551 = vshrl.u32 %v3550, 7
    %v3552 = vsub.s32 0, %v3551
    %v3553 = vrot.slane %v3549, %v3552
    %v3554 = vadd.f32 %v3546, %v3553
    %v3555 = vadd.f32 %v3548, %v3553
    %v3556 = vld [vmem:[%s4 + $0x8] sm:$0xf]
    %v3557 = vld [vmem:[%s4 + $0x14] sm:$0xf]
    %v3558 = vld [vmem:[%s4 + $0x20] sm:$0xf]
    %v3559 = vld [vmem:[%s4 + $0x2c] sm:$0xf]
    %v3560 = vpack.c.bf16 %v3555, %v3554
    %v3561 = vld [vmem:[#allocation10 + $0x5] sm:$0x1]
    %v3562 = vlaneseq
    %v3563 = vshrl.u32 %v3562, 7
    %v3564 = vsub.s32 0, %v3563
    %v3565 = vrot.slane %v3561, %v3564
    %v3570 = vunpack.c.l.b16 %v3556
    %v3571 = vunpack.c.l.b16 %v3557
    %v3572 = vunpack.c.l.b16 %v3558
    %v3573 = vunpack.c.l.b16 %v3559
    %v3574 = vpack.c.b16 %v3571, %v3570
    %v3575 = vpack.c.b16 %v3573, %v3572
    %v3579 = vsel %vm98, %v3560, 0
    %3581 = vmatprep.subr.bf16.mxu0 0
    %3582 = vmatpush1.bf16.msra.mxu0 %v3574
    %3583 = vmatprep.subr.bf16.mxu0 0
    %3584 = vmatpush1.bf16.msra.mxu0 %v3575
    %3585 = vmatprep.subr.bf16.mxu0 0
    %3586 = vmatpush1.bf16.msra.mxu0 0
    %3587 = vmatprep.subr.bf16.mxu0 0
    %3588 = vmatpush1.bf16.msra.mxu0 0
    %3589 = vmatprep.subr.bf16.mxu0 0
    %3590 = vmatpush1.bf16.msra.mxu0 0
    %3591 = vmatprep.subr.bf16.mxu0 0
    %3592 = vmatpush1.bf16.msra.mxu0 0
    %3593 = vmatprep.subr.bf16.mxu0 0
    %3594 = vmatpush1.bf16.msra.mxu0 0
    %3595 = vmatprep.subr.bf16.mxu0 0
    %3596 = vmatpush1.bf16.msra.mxu0 0
    %3597 = vmatprep.subr.bf16.mxu0 0
    %3598 = vmatpush1.bf16.msra.mxu0 0
    %3599 = vmatprep.subr.bf16.mxu0 0
    %3600 = vmatpush1.bf16.msra.mxu0 0
    %3601 = vmatprep.subr.bf16.mxu0 0
    %3602 = vmatpush1.bf16.msra.mxu0 0
    %3603 = vmatprep.subr.bf16.mxu0 0
    %3604 = vmatpush1.bf16.msra.mxu0 0
    %3605 = vmatprep.subr.bf16.mxu0 0
    %3606 = vmatpush1.bf16.msra.mxu0 0
    %3607 = vmatprep.subr.bf16.mxu0 0
    %3608 = vmatpush1.bf16.msra.mxu0 0
    %3609 = vmatprep.subr.bf16.mxu0 0
    %3610 = vmatpush1.bf16.msra.mxu0 0
    %3611 = vmatprep.subr.bf16.mxu0 0
    %3612 = vmatpush1.bf16.msra.mxu0 0
    %3613 = vmatprep.mubr.bf16.mxu0 0
    %3614 = vmatmul.mubr.bf16.gmra.mrb[0].mxu0 %v3579
    %v3615 = vpop.f32.mrb[0].mxu0
    %v3616 = vadd.f32 %v3565, %v3615
    %v3617 = vpop.f32.mrb[0].mxu0
    %v3618 = vpop.f32.mrb[0].mxu0
    %v3619 = vadd.f32 %v3565, %v3618
    %v3620 = vpop.f32.mrb[0].mxu0
    %3621 = vdwg.mxu0
    %v3622 = vmax.f32 %v3616, 0.0
    %v3623 = vmax.f32 %v3619, 0.0
    %v3624 = vpack.c.bf16 %v3623, %v3622
    %v3625 = vld [vmem:[%s5] sm:$0xf]
    %v3626 = vld [vmem:[%s5 + $0x4] sm:$0xf]
    %v3627 = vld [vmem:[%s5 + $0x8] sm:$0xf]
    %v3628 = vld [vmem:[%s5 + $0xc] sm:$0xf]
    %v3629 = vld [vmem:[%s5 + $0x10] sm:$0xf]
    %v3630 = vld [vmem:[%s5 + $0x14] sm:$0xf]
    %v3631 = vld [vmem:[%s5 + $0x18] sm:$0xf]
    %v3632 = vld [vmem:[%s5 + $0x1c] sm:$0xf]
    %v3633 = vld [vmem:[#allocation10 + $0x6] sm:$0x1]
    %v3634 = vlaneseq
    %v3635 = vshrl.u32 %v3634, 7
    %v3636 = vsub.s32 0, %v3635
    %v3637 = vrot.slane %v3633, %v3636
    %v3646 = vunpack.c.l.b16 %v3625
    %v3647 = vunpack.c.l.b16 %v3626
    %v3648 = vunpack.c.l.b16 %v3627
    %v3649 = vunpack.c.l.b16 %v3628
    %v3650 = vunpack.c.l.b16 %v3629
    %v3651 = vunpack.c.l.b16 %v3630
    %v3652 = vunpack.c.l.b16 %v3631
    %v3653 = vunpack.c.l.b16 %v3632
    %v3654 = vpack.c.b16 %v3647, %v3646
    %v3655 = vpack.c.b16 %v3649, %v3648
    %v3656 = vpack.c.b16 %v3651, %v3650
    %v3657 = vpack.c.b16 %v3653, %v3652
    %v3663 = vsel %vm1230, %v3624, 0
    %3665 = vmatprep.subr.bf16.mxu0 0
    %3666 = vmatpush1.bf16.msra.mxu0 %v3654
    %3667 = vmatprep.subr.bf16.mxu0 0
    %3668 = vmatpush1.bf16.msra.mxu0 %v3655
    %3669 = vmatprep.subr.bf16.mxu0 0
    %3670 = vmatpush1.bf16.msra.mxu0 %v3656
    %3671 = vmatprep.subr.bf16.mxu0 0
    %3672 = vmatpush1.bf16.msra.mxu0 %v3657
    %3673 = vmatprep.subr.bf16.mxu0 0
    %3674 = vmatpush1.bf16.msra.mxu0 0
    %3675 = vmatprep.subr.bf16.mxu0 0
    %3676 = vmatpush1.bf16.msra.mxu0 0
    %3677 = vmatprep.subr.bf16.mxu0 0
    %3678 = vmatpush1.bf16.msra.mxu0 0
    %3679 = vmatprep.subr.bf16.mxu0 0
    %3680 = vmatpush1.bf16.msra.mxu0 0
    %3681 = vmatprep.subr.bf16.mxu0 0
    %3682 = vmatpush1.bf16.msra.mxu0 0
    %3683 = vmatprep.subr.bf16.mxu0 0
    %3684 = vmatpush1.bf16.msra.mxu0 0
    %3685 = vmatprep.subr.bf16.mxu0 0
    %3686 = vmatpush1.bf16.msra.mxu0 0
    %3687 = vmatprep.subr.bf16.mxu0 0
    %3688 = vmatpush1.bf16.msra.mxu0 0
    %3689 = vmatprep.subr.bf16.mxu0 0
    %3690 = vmatpush1.bf16.msra.mxu0 0
    %3691 = vmatprep.subr.bf16.mxu0 0
    %3692 = vmatpush1.bf16.msra.mxu0 0
    %3693 = vmatprep.subr.bf16.mxu0 0
    %3694 = vmatpush1.bf16.msra.mxu0 0
    %3695 = vmatprep.subr.bf16.mxu0 0
    %3696 = vmatpush1.bf16.msra.mxu0 0
    %3697 = vmatprep.mubr.bf16.mxu0 0
    %3698 = vmatmul.mubr.bf16.gmra.mrb[0].mxu0 %v3663
    %v3699 = vpop.f32.mrb[0].mxu0
    %v3700 = vadd.f32 %v3637, %v3699
    %v3701 = vpop.f32.mrb[0].mxu0
    %v3702 = vpop.f32.mrb[0].mxu0
    %v3703 = vadd.f32 %v3637, %v3702
    %v3704 = vpop.f32.mrb[0].mxu0
    %3705 = vdwg.mxu0
    %v3706 = vadd.f32 %v3500, %v3700
    %v3707 = vadd.f32 %v3501, %v3703
    %3708 = vst.msk [vmem:[#allocation11] sm:$0xff] %vm98, %v3706
    %3709 = vst.msk [vmem:[#allocation11 + $0x8] sm:$0xff] %vm98, %v3707
    // Predicated region
    $region50: #{tpu_custom_call.1} parent=1 // pred_check
      _
    $region51: #{tpu_custom_call.1} parent=1 // pred_check_branch
      %3711 = sbr.rel (0) target = $region53
    $region52: #{tpu_custom_call.1} parent=1 // pred_region
      %s3713 = ssub.s32 256, 256
      %3714 = vsyncadd [#allocation4], %s3713
      %s3715 = sshll.u32 [#allocation11], 4
      %s3716 = int_to_ptr.vmem [resolvable:$true] %s3715
      %3721 = dma.vmem_to_hbm [thread:$0]  %s3716, 256, %s7, [#allocation4], 128, 128, 8
    $region53: #{tpu_custom_call.1} parent=1 // pred_fallthru
      _
    // Predicated region
    $region54: #{tpu_custom_call.1} parent=1 // pred_check
      _
    $region55: #{tpu_custom_call.1} parent=1 // pred_check_branch
      %3723 = sbr.rel (0) target = $region57
    $region56: #{tpu_custom_call.1} parent=1 // pred_region
      %3724 = dma.done [#allocation4], 256
    $region57: #{tpu_custom_call.1} parent=1 // pred_fallthru
      _
    %3725 = vsyncpa [#allocation3], 1
    %3726 = vsyncpa [#allocation6], 1
    %3727 = vsyncpa [#allocation9], 1
    %3728 = vsyncpa [#allocation4], 1

</llo_original>
